<compile_context>
chip_gen: v7x
topology: tpu7x:2x2x1
jax: 0.10.0
libtpu: 0.0.40
codegen_flags: <defaults>
</compile_context>

<pallas_src>
import functools

import jax
import jax.numpy as jnp
from jax import lax
from jax.experimental import pallas as pl
from jax.experimental.pallas import tpu as pltpu


# ----------------------------------------------------------------------------
# Generation-aware VMEM budget
# ----------------------------------------------------------------------------
@functools.lru_cache(maxsize=1)
def _vmem_limit_bytes():
    cap = 128 * 1024 * 1024
    try:
        cap = int(pltpu.get_tpu_info().vmem_capacity_bytes)
    except Exception:
        pass
    # leave ~1/8 headroom for compiler-internal scratch; cap at 112 MiB
    return min(int(cap * 7 // 8), 112 * 1024 * 1024)


def _pick_i_tile(inter):
    if inter <= 512:
        return inter
    for cand in (512, 384, 256, 128):
        if inter % cand == 0:
            return cand
    return inter


# ----------------------------------------------------------------------------
# Kernels
# ----------------------------------------------------------------------------
def mamba_layer_kernel(*refs, eps, inter, state, conv_k, chunk, i_tile, unroll,
                       first_layer):
    n_scratch = 6
    scratch = refs[-n_scratch:]
    io = refs[:-n_scratch]
    if first_layer:
        (hs_ref, nw_ref, winx_ref, wing_ref, cw_ref, cb_ref,
         wxdt_ref, wxb_ref, wxc_ref, wdt_ref, dtb_ref, at_ref, d_ref,
         wout_ref, hs_out_ref, res_out_ref) = io
        res_ref = None
    else:
        (hs_ref, res_ref, nw_ref, winx_ref, wing_ref, cw_ref, cb_ref,
         wxdt_ref, wxb_ref, wxc_ref, wdt_ref, dtb_ref, at_ref, d_ref,
         wout_ref, hs_out_ref, res_out_ref) = io
    xpad_s, h_s, c_s, y_s, dA_s, dBx_s = scratch

    Tc, I, N, K, It = chunk, inter, state, conv_k, i_tile
    f32, bf16 = jnp.float32, jnp.bfloat16
    c_idx = pl.program_id(1)          # sequence-chunk index ("arbitrary" axis)

    # ---- residual add + RMSNorm (residual is None on the first layer) ----
    if first_layer:
        x = hs_ref[...]                                   # (Tc, H) f32
    else:
        x = hs_ref[...] + res_ref[...]
    res_out_ref[...] = x
    var = jnp.mean(x * x, axis=-1, keepdims=True)
    xn = (x * lax.rsqrt(var + eps) * nw_ref[...]).astype(bf16)

    # ---- in_proj: BOTH halves issued before the scan so the MXU work runs
    #      underneath the VPU/EUP-bound recurrence ----
    xpart = jnp.dot(xn, winx_ref[...], preferred_element_type=f32)   # (Tc, I)
    gate = jnp.dot(xn, wing_ref[...], preferred_element_type=f32)    # (Tc, I)

    # ---- causal depthwise conv1d via padded scratch (K-1 row carry) + SiLU --
    @pl.when(c_idx == 0)
    def _():
        xpad_s[0:K - 1, :] = jnp.zeros((K - 1, I), f32)   # zero initial state

    xpad_s[K - 1:K - 1 + Tc, :] = xpart
    conv = jnp.zeros((Tc, I), f32) + cb_ref[...]
    for k in range(K):                                    # K is tiny & static
        conv = conv + xpad_s[k:k + Tc, :] * cw_ref[k:k + 1, :]
    # carry the last K-1 conv input rows into the next chunk
    xpad_s[0:K - 1, :] = xpad_s[Tc:Tc + K - 1, :]
    xconv = conv * jax.nn.sigmoid(conv)                   # SiLU, f32 (Tc, I)
    xconv_b = xconv.astype(bf16)

    # ---- x_proj as three lane-aligned matmuls: dt | B | C ----
    dt_in = jnp.dot(xconv_b, wxdt_ref[...], preferred_element_type=f32)  # (Tc,Rp)
    b_mat = jnp.dot(xconv_b, wxb_ref[...], preferred_element_type=f32)   # (Tc,N)
    c_mat = jnp.dot(xconv_b, wxc_ref[...], preferred_element_type=f32)   # (Tc,N)

    # ---- dt_proj + bias + stable softplus (kept in f32) ----
    dt_raw = jnp.dot(dt_in.astype(bf16), wdt_ref[...],
                     preferred_element_type=f32) + dtb_ref[...]          # (Tc,I)
    dt = jnp.maximum(dt_raw, 0.0) + jnp.log(1.0 + jnp.exp(-jnp.abs(dt_raw)))
    dtx = dt * xconv                                                     # (Tc,I)

    # stash C rows for per-block reads inside the serial loop
    c_s[...] = c_mat

    @pl.when(c_idx == 0)
    def _():
        h_s[...] = jnp.zeros_like(h_s)                    # zero initial state

    # ---- selective scan, tiled over channels; h tile is a register-resident
    #      fori_loop carry; y_t = C_t . h_t is fused into the loop (XLU reduce)
    n_tiles = I // It
    for it in range(n_tiles):                             # static tile loop
        i0 = it * It
        a_tile = at_ref[:, i0:i0 + It]                                # (N, It)
        # per-tile staging (small): exp on EUP, outer-product on VPU
        dA_s[...] = jnp.exp(dt[:, i0:i0 + It][:, None, :] * a_tile[None, :, :])
        dBx_s[...] = b_mat[:, :, None] * dtx[:, i0:i0 + It][:, None, :]

        def time_body(tt, h, i0=i0):
            base = pl.multiple_of(tt * unroll, unroll)
            cb = c_s[pl.ds(base, unroll), :][:, :, None]              # (u,N,1)
            rows = []
            for u in range(unroll):                                   # static
                t = base + u
                h = dA_s[t] * h + dBx_s[t]                            # VPU FMA
                rows.append(jnp.sum(cb[u] * h, axis=0, keepdims=True))  # (1,It)
            y_s[pl.ds(base, unroll), pl.ds(i0, It)] = jnp.concatenate(rows, 0)
            return h

        h_fin = lax.fori_loop(0, Tc // unroll, time_body, h_s[:, i0:i0 + It])
        h_s[:, i0:i0 + It] = h_fin                         # one carry writeback

    # ---- skip term, SiLU gate, out_proj ----
    y = y_s[...] + d_ref[...] * xconv
    y = y * (gate * jax.nn.sigmoid(gate))
    hs_out_ref[...] = jnp.dot(y.astype(bf16), wout_ref[...],
                              preferred_element_type=f32)            # (Tc, H)


def rmsnorm_add_kernel(hs_ref, res_ref, w_ref, out_ref, *, eps):
    x = hs_ref[...] + res_ref[...]
    var = jnp.mean(x * x, axis=-1, keepdims=True)
    out_ref[...] = x * lax.rsqrt(var + eps) * w_ref[...]


# ----------------------------------------------------------------------------
# Wrappers
# ----------------------------------------------------------------------------
def mamba_decoder_layer(hs, res, w, cfg, *, first_layer):
    B, T, H = hs.shape
    I, N = cfg["intermediate"], cfg["state"]
    K = cfg["conv_kernel"]
    Tc = int(cfg.get("chunk", min(T, 128)))   # Tc=256 recommended on v6e/v7x
    assert T % Tc == 0 and Tc % 8 == 0 and Tc >= K, (T, Tc, K)
    n_chunks = T // Tc
    unroll = 8
    It = _pick_i_tile(I)
    assert I % It == 0

    kern = functools.partial(
        mamba_layer_kernel, eps=cfg["eps"], inter=I, state=N, conv_k=K,
        chunk=Tc, i_tile=It, unroll=unroll, first_layer=first_layer)

    hr_tile = pl.BlockSpec((None, Tc, H), lambda b, c: (b, c, 0))
    weights = (w["norm_w"], w["win_x"], w["win_g"], w["conv_wt"], w["conv_b"],
               w["wx_dt"], w["wx_b"], w["wx_c"], w["wdt_t"], w["dt_bias"],
               w["a_t"], w["d"], w["wout_t"])

    def build(single_buffer_weights):
        if single_buffer_weights:
            # constant index_map -> nothing to prefetch -> single buffer halves
            # the weight VMEM footprint (critical at production sizes on v7x)
            wspecs = [pl.BlockSpec(a.shape, lambda b, c: (0, 0),
                                   pipeline_mode=pl.Buffered(1))
                      for a in weights]
        else:
            wspecs = [pl.BlockSpec(a.shape, lambda b, c: (0, 0))
                      for a in weights]
        in_specs = ([hr_tile] if first_layer else [hr_tile, hr_tile]) + wspecs
        return pl.pallas_call(
            kern,
            out_shape=(jax.ShapeDtypeStruct((B, T, H), jnp.float32),
                       jax.ShapeDtypeStruct((B, T, H), jnp.float32)),
            grid=(B, n_chunks),
            in_specs=in_specs,
            out_specs=(hr_tile, hr_tile),
            scratch_shapes=[
                pltpu.VMEM((Tc + K - 1, I), jnp.float32),  # conv input + carry
                pltpu.VMEM((N, I), jnp.float32),           # carried SSM state h
                pltpu.VMEM((Tc, N), jnp.float32),          # per-chunk C rows
                pltpu.VMEM((Tc, I), jnp.float32),          # fused y accumulator
                pltpu.VMEM((Tc, N, It), jnp.float32),      # dA staging (I-tile)
                pltpu.VMEM((Tc, N, It), jnp.float32),      # dBx staging (I-tile)
            ],
            compiler_params=pltpu.CompilerParams(
                dimension_semantics=("parallel", "arbitrary"),
                vmem_limit_bytes=_vmem_limit_bytes()),
        )

    args = ((hs,) if first_layer else (hs, res)) + weights
    try:
        return build(True)(*args)
    except Exception:
        # Fallback if this JAX build rejects pl.Buffered(1) weight specs.
        return build(False)(*args)


def final_rmsnorm(hs, res, w, cfg):
    B, T, H = hs.shape
    Tc = int(cfg.get("chunk", min(T, 256)))
    assert T % Tc == 0
    tile = pl.BlockSpec((None, Tc, H), lambda b, c: (b, c, 0))
    return pl.pallas_call(
        functools.partial(rmsnorm_add_kernel, eps=cfg["eps"]),
        out_shape=jax.ShapeDtypeStruct((B, T, H), jnp.float32),
        grid=(B, T // Tc),
        in_specs=[tile, tile, pl.BlockSpec((1, H), lambda b, c: (0, 0))],
        out_specs=tile,
        compiler_params=pltpu.CompilerParams(
            dimension_semantics=("parallel", "parallel"),
            vmem_limit_bytes=_vmem_limit_bytes()),
    )(hs, res, w)


def mamba_model_forward(params, input_ids, positions, cfg):
    # positions are unused by Mamba (kept for API parity with the PyTorch model).
    del positions
    # Embedding lookup kept as a plain-JAX gather (glue, not the hot path).
    hs = jnp.take(params["embedding"], input_ids, axis=0)        # (B, T, H) f32
    res = None
    for li, lw in enumerate(params["layers"]):
        hs, res = mamba_decoder_layer(hs, res, lw, cfg, first_layer=(li == 0))
    return final_rmsnorm(hs, res, params["norm_f"], cfg)


# ----------------------------------------------------------------------------
# Pure-JAX reference (same bf16 / padded weights) for correctness checking
# ----------------------------------------------------------------------------
def _layer_ref(hs, res, w, cfg, first_layer):
    eps, I, N = cfg["eps"], cfg["intermediate"], cfg["state"]
    K = cfg["conv_kernel"]
    f32, bf16 = jnp.float32, jnp.bfloat16
    x = hs if first_layer else hs + res
    res_out = x
    xn = (x * lax.rsqrt(jnp.mean(x * x, -1, keepdims=True) + eps)
          * w["norm_w"]).astype(bf16)
    xpart = jnp.einsum("bth,hi->bti", xn, w["win_x"], preferred_element_type=f32)
    gate = jnp.einsum("bth,hi->bti", xn, w["win_g"], preferred_element_type=f32)
    B, T, _ = hs.shape
    xp = jnp.pad(xpart, ((0, 0), (K - 1, 0), (0, 0)))
    conv = jnp.zeros((B, T, I), f32) + w["conv_b"][None]
    for k in range(K):
        conv = conv + xp[:, k:k + T, :] * w["conv_wt"][k:k + 1, :][None]
    xc = conv * jax.nn.sigmoid(conv)
    xcb = xc.astype(bf16)
    dt_in = jnp.einsum("bti,ir->btr", xcb, w["wx_dt"], preferred_element_type=f32)
    b_m = jnp.einsum("bti,in->btn", xcb, w["wx_b"], preferred_element_type=f32)
    c_m = jnp.einsum("bti,in->btn", xcb, w["wx_c"], preferred_element_type=f32)
    dt_raw = jnp.einsum("btr,ri->bti", dt_in.astype(bf16), w["wdt_t"],
                        preferred_element_type=f32) + w["dt_bias"][None]
    dt = jax.nn.softplus(dt_raw)
    dA = jnp.exp(dt[:, :, None, :] * w["a_t"][None, None])          # (B,T,N,I)
    dBx = b_m[:, :, :, None] * (dt * xc)[:, :, None, :]             # (B,T,N,I)

    def scan_one(dA_b, dBx_b):
        def step(h, inp):
            a_t, b_t = inp
            h = a_t * h + b_t
            return h, h
        _, h_all = lax.scan(step, jnp.zeros((N, I), f32), (dA_b, dBx_b))
        return h_all

    h_all = jax.vmap(scan_one)(dA, dBx)                             # (B,T,N,I)
    y = jnp.sum(c_m[:, :, :, None] * h_all, axis=2) + w["d"][None] * xc
    y = y * (gate * jax.nn.sigmoid(gate))
    hs_out = jnp.einsum("bti,ih->bth", y.astype(bf16), w["wout_t"],
                        preferred_element_type=f32)
    return hs_out, res_out


def mamba_model_ref(params, input_ids, cfg):
    hs = jnp.take(params["embedding"], input_ids, axis=0)
    res = None
    for li, lw in enumerate(params["layers"]):
        hs, res = _layer_ref(hs, res, lw, cfg, li == 0)
    x = hs + res
    return (x * lax.rsqrt(jnp.mean(x * x, -1, keepdims=True) + cfg["eps"])
            * params["norm_f"])


# ----------------------------------------------------------------------------
# Deterministic synthetic parameters (shapes follow MambaMixer / MambaModel)
# ----------------------------------------------------------------------------
def init_model_params(key, cfg):
    H, I = cfg["hidden"], cfg["intermediate"]
    N, R, K = cfg["state"], cfg["dt_rank"], cfg["conv_kernel"]
    V, L = cfg["vocab"], cfg["layers"]
    bf16 = jnp.bfloat16
    R_pad = ((R + 127) // 128) * 128          # lane-dense dt_rank (zero-padded)
    keys = jax.random.split(key, 1 + L)
    params = {
        "embedding": 0.02 * jax.random.normal(keys[0], (V, H), jnp.float32),
        "norm_f": jnp.ones((1, H), jnp.float32),
        "layers": [],
    }
    s = 0.05
    for li in range(L):
        ks = jax.random.split(keys[1 + li], 7)
        in_w = s * jax.random.normal(ks[0], (2 * I, H), jnp.float32)      # in_proj.weight
        conv_w = s * jax.random.normal(ks[1], (I, 1, K), jnp.float32)     # conv1d.weight
        conv_b = s * jax.random.normal(ks[2], (I,), jnp.float32)          # conv1d.bias
        x_w = s * jax.random.normal(ks[3], (R + 2 * N, I), jnp.float32)   # x_proj.weight
        dt_w = s * jax.random.normal(ks[4], (I, R), jnp.float32)          # dt_proj.weight
        dt_b = s * jax.random.normal(ks[5], (I,), jnp.float32)            # dt_proj.bias
        out_w = s * jax.random.normal(ks[6], (H, I), jnp.float32)         # out_proj.weight
        A = -jnp.broadcast_to(jnp.arange(1, N + 1, dtype=jnp.float32), (I, N))
        D = jnp.ones((I,), jnp.float32)
        # zero-padded, exact-contribution-preserving dt_proj weights
        wx_dt = jnp.zeros((I, R_pad), jnp.float32).at[:, :R].set(x_w[:R, :].T)
        wdt_t = jnp.zeros((R_pad, I), jnp.float32).at[:R, :].set(dt_w.T)
        params["layers"].append({
            "norm_w": jnp.ones((1, H), jnp.float32),
            "win_x": in_w[:I, :].T.astype(bf16),      # (H, I)   bf16 matmul weight
            "win_g": in_w[I:, :].T.astype(bf16),      # (H, I)
            "conv_wt": conv_w[:, 0, :].T,             # (K, I)   f32 (elementwise)
            "conv_b": conv_b.reshape(1, I),
            "wx_dt": wx_dt.astype(bf16),              # (I, Rp)  lane-dense
            "wx_b": x_w[R:R + N, :].T.astype(bf16),   # (I, N)
            "wx_c": x_w[R + N:, :].T.astype(bf16),    # (I, N)
            "wdt_t": wdt_t.astype(bf16),              # (Rp, I)
            "dt_bias": dt_b.reshape(1, I),            # f32
            "a_t": A.T,                               # (N, I)   f32
            "d": D.reshape(1, I),                     # f32
            "wout_t": out_w.T.astype(bf16),           # (I, H)
        })
    return params


if __name__ == "__main__":
    cfg = dict(vocab=128, hidden=32, intermediate=64, state=16,
               conv_kernel=4, dt_rank=8, layers=2, eps=1e-5, chunk=8)
    B, T = 2, 16   # T=16 with chunk=8 exercises the cross-chunk conv/SSM carry

    key = jax.random.PRNGKey(0)
    pkey, ikey = jax.random.split(key)
    params = init_model_params(pkey, cfg)
    input_ids = jax.random.randint(ikey, (B, T), 0, cfg["vocab"], dtype=jnp.int32)
    positions = jnp.broadcast_to(jnp.arange(T, dtype=jnp.int32), (B, T))

    out = mamba_model_forward(params, input_ids, positions, cfg)
    out = jax.block_until_ready(out)

    assert out.shape == (B, T, cfg["hidden"]), out.shape
    assert bool(jnp.isfinite(out).all()), "non-finite output"

    ref = jax.block_until_ready(mamba_model_ref(params, input_ids, cfg))
    err = float(jnp.max(jnp.abs(out - ref)))
    assert err < 1e-2, f"mismatch vs pure-JAX reference: max abs err {err}"

    print("KERNEL_OK")
</pallas_src>

<mosaic_0001>
module attributes {stable_mosaic.version = 11 : i64} {
  func.func @mamba_layer_kernel(%arg0: i32, %arg1: i32, %arg2: memref<1x8x32xf32, #tpu.memory_space<vmem>>, %arg3: memref<1x32xf32, #tpu.memory_space<vmem>>, %arg4: memref<32x64xbf16, #tpu.memory_space<vmem>>, %arg5: memref<32x64xbf16, #tpu.memory_space<vmem>>, %arg6: memref<4x64xf32, #tpu.memory_space<vmem>>, %arg7: memref<1x64xf32, #tpu.memory_space<vmem>>, %arg8: memref<64x128xbf16, #tpu.memory_space<vmem>>, %arg9: memref<64x16xbf16, #tpu.memory_space<vmem>>, %arg10: memref<64x16xbf16, #tpu.memory_space<vmem>>, %arg11: memref<128x64xbf16, #tpu.memory_space<vmem>>, %arg12: memref<1x64xf32, #tpu.memory_space<vmem>>, %arg13: memref<16x64xf32, #tpu.memory_space<vmem>>, %arg14: memref<1x64xf32, #tpu.memory_space<vmem>>, %arg15: memref<64x32xbf16, #tpu.memory_space<vmem>>, %arg16: memref<1x8x32xf32, #tpu.memory_space<vmem>>, %arg17: memref<1x8x32xf32, #tpu.memory_space<vmem>>, %arg18: memref<11x64xf32, #tpu.memory_space<vmem>>, %arg19: memref<16x64xf32, #tpu.memory_space<vmem>>, %arg20: memref<8x16xf32, #tpu.memory_space<vmem>>, %arg21: memref<8x64xf32, #tpu.memory_space<vmem>>, %arg22: memref<8x16x64xf32, #tpu.memory_space<vmem>>, %arg23: memref<8x16x64xf32, #tpu.memory_space<vmem>>) attributes {dimension_semantics = [#tpu.dimension_semantics<parallel>, #tpu.dimension_semantics<arbitrary>], iteration_bounds = array<i64: 2, 2>, scalar_prefetch = 0 : i64, scratch_operands = 6 : i64, tpu.core_type = #tpu.core_type<tc>, window_params = [{transform_indices = @transform_0, window_bounds = array<i64: 1, 8, 32>}, {pipeline_mode = #tpu.pipeline_mode<synchronous>, transform_indices = @transform_1, window_bounds = array<i64: 1, 32>}, {pipeline_mode = #tpu.pipeline_mode<synchronous>, transform_indices = @transform_2, window_bounds = array<i64: 32, 64>}, {pipeline_mode = #tpu.pipeline_mode<synchronous>, transform_indices = @transform_3, window_bounds = array<i64: 32, 64>}, {pipeline_mode = #tpu.pipeline_mode<synchronous>, transform_indices = @transform_4, window_bounds = array<i64: 4, 64>}, {pipeline_mode = #tpu.pipeline_mode<synchronous>, transform_indices = @transform_5, window_bounds = array<i64: 1, 64>}, {pipeline_mode = #tpu.pipeline_mode<synchronous>, transform_indices = @transform_6, window_bounds = array<i64: 64, 128>}, {pipeline_mode = #tpu.pipeline_mode<synchronous>, transform_indices = @transform_7, window_bounds = array<i64: 64, 16>}, {pipeline_mode = #tpu.pipeline_mode<synchronous>, transform_indices = @transform_8, window_bounds = array<i64: 64, 16>}, {pipeline_mode = #tpu.pipeline_mode<synchronous>, transform_indices = @transform_9, window_bounds = array<i64: 128, 64>}, {pipeline_mode = #tpu.pipeline_mode<synchronous>, transform_indices = @transform_10, window_bounds = array<i64: 1, 64>}, {pipeline_mode = #tpu.pipeline_mode<synchronous>, transform_indices = @transform_11, window_bounds = array<i64: 16, 64>}, {pipeline_mode = #tpu.pipeline_mode<synchronous>, transform_indices = @transform_12, window_bounds = array<i64: 1, 64>}, {pipeline_mode = #tpu.pipeline_mode<synchronous>, transform_indices = @transform_13, window_bounds = array<i64: 64, 32>}, {transform_indices = @transform_14, window_bounds = array<i64: 1, 8, 32>}, {transform_indices = @transform_15, window_bounds = array<i64: 1, 8, 32>}]} {
    %c0 = arith.constant 0 : index
    %c0_0 = arith.constant 0 : index
    %c0_1 = arith.constant 0 : index
    %0 = vector.load %arg2[%c0, %c0_0, %c0_1] : memref<1x8x32xf32, #tpu.memory_space<vmem>>, vector<1x8x32xf32>
    %1 = vector.shape_cast %0 : vector<1x8x32xf32> to vector<8x32xf32>
    %c0_2 = arith.constant 0 : index
    %c0_3 = arith.constant 0 : index
    %c0_4 = arith.constant 0 : index
    %2 = vector.load %arg17[%c0_2, %c0_3, %c0_4] : memref<1x8x32xf32, #tpu.memory_space<vmem>>, vector<1x8x32xf32>
    %3 = vector.shape_cast %2 : vector<1x8x32xf32> to vector<8x32xf32>
    %4 = vector.shape_cast %1 : vector<8x32xf32> to vector<1x8x32xf32>
    tpu.vector_store %arg17[%c0_2, %c0_3, %c0_4], %4 {strides = array<i32>} : memref<1x8x32xf32, #tpu.memory_space<vmem>>, vector<1x8x32xf32>,
    %5 = arith.mulf %1, %1 : vector<8x32xf32>
    %cst = arith.constant dense<0.000000e+00> : vector<8xf32>
    %6 = vector.multi_reduction <add>, %5, %cst [1] : vector<8x32xf32> to vector<8xf32>
    %7 = vector.shape_cast %6 : vector<8xf32> to vector<8x1xf32>
    %cst_5 = arith.constant 3.200000e+01 : f32
    %8 = vector.broadcast %cst_5 : f32 to vector<8x1xf32>
    %9 = arith.divf %7, %8 : vector<8x1xf32>
    %cst_6 = arith.constant 9.99999974E-6 : f32
    %10 = vector.broadcast %cst_6 : f32 to vector<8x1xf32>
    %11 = arith.addf %9, %10 : vector<8x1xf32>
    %12 = math.rsqrt %11 : vector<8x1xf32>
    %13 = vector.broadcast %12 : vector<8x1xf32> to vector<8x32xf32>
    %14 = arith.mulf %1, %13 : vector<8x32xf32>
    %c0_7 = arith.constant 0 : index
    %c0_8 = arith.constant 0 : index
    %15 = vector.load %arg3[%c0_7, %c0_8] : memref<1x32xf32, #tpu.memory_space<vmem>>, vector<1x32xf32>
    %16 = vector.broadcast %15 : vector<1x32xf32> to vector<8x32xf32>
    %17 = arith.mulf %14, %16 : vector<8x32xf32>
    %18 = arith.truncf %17 : vector<8x32xf32> to vector<8x32xbf16>
    %c0_9 = arith.constant 0 : index
    %c0_10 = arith.constant 0 : index
    %19 = vector.load %arg4[%c0_9, %c0_10] : memref<32x64xbf16, #tpu.memory_space<vmem>>, vector<32x64xbf16>
    %cst_11 = arith.constant dense<0.000000e+00> : vector<8x64xf32>
    %20 = tpu.matmul %18, %19, %cst_11 {dimension_numbers = #tpu.dot_dimension_numbers<[1], [0], [0], [1], [0, 0, 1, 1], [], []>} : vector<8x32xbf16>, vector<32x64xbf16>, vector<8x64xf32> -> vector<8x64xf32>
    %c0_12 = arith.constant 0 : index
    %c0_13 = arith.constant 0 : index
    %21 = vector.load %arg5[%c0_12, %c0_13] : memref<32x64xbf16, #tpu.memory_space<vmem>>, vector<32x64xbf16>
    %cst_14 = arith.constant dense<0.000000e+00> : vector<8x64xf32>
    %22 = tpu.matmul %18, %21, %cst_14 {dimension_numbers = #tpu.dot_dimension_numbers<[1], [0], [0], [1], [0, 0, 1, 1], [], []>} : vector<8x32xbf16>, vector<32x64xbf16>, vector<8x64xf32> -> vector<8x64xf32>
    %c0_i32 = arith.constant 0 : i32
    %23 = arith.cmpi eq, %arg1, %c0_i32 : i32
    %24 = arith.extui %23 : i1 to i32
    %c0_i32_15 = arith.constant 0 : i32
    %25 = arith.cmpi ne, %24, %c0_i32_15 : i32
    scf.if %25 {
      %cst_127 = arith.constant 0.000000e+00 : f32
      %249 = vector.broadcast %cst_127 : f32 to vector<3x64xf32>
      %c0_128 = arith.constant 0 : index
      %c0_129 = arith.constant 0 : index
      %250 = vector.load %arg18[%c0_128, %c0_129] : memref<11x64xf32, #tpu.memory_space<vmem>>, vector<3x64xf32>
      tpu.vector_store %arg18[%c0_128, %c0_129], %249 {strides = array<i32>} : memref<11x64xf32, #tpu.memory_space<vmem>>, vector<3x64xf32>,
    } else {
    }
    %c3 = arith.constant 3 : index
    %c0_16 = arith.constant 0 : index
    %26 = vector.load %arg18[%c3, %c0_16] : memref<11x64xf32, #tpu.memory_space<vmem>>, vector<8x64xf32>
    tpu.vector_store %arg18[%c3, %c0_16], %20 {strides = array<i32>} : memref<11x64xf32, #tpu.memory_space<vmem>>, vector<8x64xf32>,
    %cst_17 = arith.constant 0.000000e+00 : f32
    %27 = vector.broadcast %cst_17 : f32 to vector<8x64xf32>
    %c0_18 = arith.constant 0 : index
    %c0_19 = arith.constant 0 : index
    %28 = vector.load %arg7[%c0_18, %c0_19] : memref<1x64xf32, #tpu.memory_space<vmem>>, vector<1x64xf32>
    %29 = vector.broadcast %28 : vector<1x64xf32> to vector<8x64xf32>
    %30 = arith.addf %27, %29 : vector<8x64xf32>
    %c0_20 = arith.constant 0 : index
    %c0_21 = arith.constant 0 : index
    %31 = vector.load %arg18[%c0_20, %c0_21] : memref<11x64xf32, #tpu.memory_space<vmem>>, vector<8x64xf32>
    %c0_22 = arith.constant 0 : index
    %c0_23 = arith.constant 0 : index
    %32 = vector.load %arg6[%c0_22, %c0_23] : memref<4x64xf32, #tpu.memory_space<vmem>>, vector<1x64xf32>
    %33 = vector.broadcast %32 : vector<1x64xf32> to vector<8x64xf32>
    %34 = arith.mulf %31, %33 : vector<8x64xf32>
    %35 = arith.addf %30, %34 : vector<8x64xf32>
    %c1 = arith.constant 1 : index
    %c0_24 = arith.constant 0 : index
    %36 = vector.load %arg18[%c1, %c0_24] : memref<11x64xf32, #tpu.memory_space<vmem>>, vector<8x64xf32>
    %c1_25 = arith.constant 1 : index
    %c0_26 = arith.constant 0 : index
    %37 = vector.load %arg6[%c1_25, %c0_26] : memref<4x64xf32, #tpu.memory_space<vmem>>, vector<1x64xf32>
    %38 = vector.broadcast %37 : vector<1x64xf32> to vector<8x64xf32>
    %39 = arith.mulf %36, %38 : vector<8x64xf32>
    %40 = arith.addf %35, %39 : vector<8x64xf32>
    %c2 = arith.constant 2 : index
    %c0_27 = arith.constant 0 : index
    %41 = vector.load %arg18[%c2, %c0_27] : memref<11x64xf32, #tpu.memory_space<vmem>>, vector<8x64xf32>
    %c2_28 = arith.constant 2 : index
    %c0_29 = arith.constant 0 : index
    %42 = vector.load %arg6[%c2_28, %c0_29] : memref<4x64xf32, #tpu.memory_space<vmem>>, vector<1x64xf32>
    %43 = vector.broadcast %42 : vector<1x64xf32> to vector<8x64xf32>
    %44 = arith.mulf %41, %43 : vector<8x64xf32>
    %45 = arith.addf %40, %44 : vector<8x64xf32>
    %c3_30 = arith.constant 3 : index
    %c0_31 = arith.constant 0 : index
    %46 = vector.load %arg18[%c3_30, %c0_31] : memref<11x64xf32, #tpu.memory_space<vmem>>, vector<8x64xf32>
    %c3_32 = arith.constant 3 : index
    %c0_33 = arith.constant 0 : index
    %47 = vector.load %arg6[%c3_32, %c0_33] : memref<4x64xf32, #tpu.memory_space<vmem>>, vector<1x64xf32>
    %48 = vector.broadcast %47 : vector<1x64xf32> to vector<8x64xf32>
    %49 = arith.mulf %46, %48 : vector<8x64xf32>
    %50 = arith.addf %45, %49 : vector<8x64xf32>
    %c8 = arith.constant 8 : index
    %c0_34 = arith.constant 0 : index
    %51 = vector.load %arg18[%c8, %c0_34] : memref<11x64xf32, #tpu.memory_space<vmem>>, vector<3x64xf32>
    %c0_35 = arith.constant 0 : index
    %c0_36 = arith.constant 0 : index
    %52 = vector.load %arg18[%c0_35, %c0_36] : memref<11x64xf32, #tpu.memory_space<vmem>>, vector<3x64xf32>
    tpu.vector_store %arg18[%c0_35, %c0_36], %51 {strides = array<i32>} : memref<11x64xf32, #tpu.memory_space<vmem>>, vector<3x64xf32>,
    %53 = arith.negf %50 : vector<8x64xf32>
    %54 = math.exp %53 : vector<8x64xf32>
    %cst_37 = arith.constant 1.000000e+00 : f32
    %55 = vector.broadcast %cst_37 : f32 to vector<8x64xf32>
    %56 = arith.addf %55, %54 : vector<8x64xf32>
    %57 = arith.divf %55, %56 : vector<8x64xf32>
    %58 = arith.mulf %50, %57 : vector<8x64xf32>
    %59 = arith.truncf %58 : vector<8x64xf32> to vector<8x64xbf16>
    %c0_38 = arith.constant 0 : index
    %c0_39 = arith.constant 0 : index
    %60 = vector.load %arg8[%c0_38, %c0_39] : memref<64x128xbf16, #tpu.memory_space<vmem>>, vector<64x128xbf16>
    %cst_40 = arith.constant dense<0.000000e+00> : vector<8x128xf32>
    %61 = tpu.matmul %59, %60, %cst_40 {dimension_numbers = #tpu.dot_dimension_numbers<[1], [0], [0], [1], [0, 0, 1, 1], [], []>} : vector<8x64xbf16>, vector<64x128xbf16>, vector<8x128xf32> -> vector<8x128xf32>
    %c0_41 = arith.constant 0 : index
    %c0_42 = arith.constant 0 : index
    %62 = vector.load %arg9[%c0_41, %c0_42] : memref<64x16xbf16, #tpu.memory_space<vmem>>, vector<64x16xbf16>
    %cst_43 = arith.constant dense<0.000000e+00> : vector<8x16xf32>
    %63 = tpu.matmul %59, %62, %cst_43 {dimension_numbers = #tpu.dot_dimension_numbers<[1], [0], [0], [1], [0, 0, 1, 1], [], []>} : vector<8x64xbf16>, vector<64x16xbf16>, vector<8x16xf32> -> vector<8x16xf32>
    %c0_44 = arith.constant 0 : index
    %c0_45 = arith.constant 0 : index
    %64 = vector.load %arg10[%c0_44, %c0_45] : memref<64x16xbf16, #tpu.memory_space<vmem>>, vector<64x16xbf16>
    %cst_46 = arith.constant dense<0.000000e+00> : vector<8x16xf32>
    %65 = tpu.matmul %59, %64, %cst_46 {dimension_numbers = #tpu.dot_dimension_numbers<[1], [0], [0], [1], [0, 0, 1, 1], [], []>} : vector<8x64xbf16>, vector<64x16xbf16>, vector<8x16xf32> -> vector<8x16xf32>
    %66 = arith.truncf %61 : vector<8x128xf32> to vector<8x128xbf16>
    %c0_47 = arith.constant 0 : index
    %c0_48 = arith.constant 0 : index
    %67 = vector.load %arg11[%c0_47, %c0_48] : memref<128x64xbf16, #tpu.memory_space<vmem>>, vector<128x64xbf16>
    %cst_49 = arith.constant dense<0.000000e+00> : vector<8x64xf32>
    %68 = tpu.matmul %66, %67, %cst_49 {dimension_numbers = #tpu.dot_dimension_numbers<[1], [0], [0], [1], [0, 0, 1, 1], [], []>} : vector<8x128xbf16>, vector<128x64xbf16>, vector<8x64xf32> -> vector<8x64xf32>
    %c0_50 = arith.constant 0 : index
    %c0_51 = arith.constant 0 : index
    %69 = vector.load %arg12[%c0_50, %c0_51] : memref<1x64xf32, #tpu.memory_space<vmem>>, vector<1x64xf32>
    %70 = vector.broadcast %69 : vector<1x64xf32> to vector<8x64xf32>
    %71 = arith.addf %68, %70 : vector<8x64xf32>
    %cst_52 = arith.constant 0.000000e+00 : f32
    %72 = vector.broadcast %cst_52 : f32 to vector<8x64xf32>
    %73 = arith.maximumf %71, %72 : vector<8x64xf32>
    %74 = math.absf %71 : vector<8x64xf32>
    %cst_53 = arith.constant 0.000000e+00 : f32
    %75 = vector.broadcast %cst_53 : f32 to vector<8x64xf32>
    %76 = arith.subf %75, %74 : vector<8x64xf32>
    %77 = math.exp %76 : vector<8x64xf32>
    %cst_54 = arith.constant 1.000000e+00 : f32
    %78 = vector.broadcast %cst_54 : f32 to vector<8x64xf32>
    %79 = arith.addf %78, %77 : vector<8x64xf32>
    %80 = math.log %79 : vector<8x64xf32>
    %81 = arith.addf %73, %80 : vector<8x64xf32>
    %82 = arith.mulf %81, %58 : vector<8x64xf32>
    %c0_55 = arith.constant 0 : index
    %c0_56 = arith.constant 0 : index
    %83 = vector.load %arg20[%c0_55, %c0_56] : memref<8x16xf32, #tpu.memory_space<vmem>>, vector<8x16xf32>
    tpu.vector_store %arg20[%c0_55, %c0_56], %65 {strides = array<i32>} : memref<8x16xf32, #tpu.memory_space<vmem>>, vector<8x16xf32>,
    %c0_i32_57 = arith.constant 0 : i32
    %84 = arith.cmpi eq, %arg1, %c0_i32_57 : i32
    %85 = arith.extui %84 : i1 to i32
    %c0_i32_58 = arith.constant 0 : i32
    %86 = arith.cmpi ne, %85, %c0_i32_58 : i32
    scf.if %86 {
      %cst_127 = arith.constant 0.000000e+00 : f32
      %249 = vector.broadcast %cst_127 : f32 to vector<16x64xf32>
      %c0_128 = arith.constant 0 : index
      %c0_129 = arith.constant 0 : index
      %250 = vector.load %arg19[%c0_128, %c0_129] : memref<16x64xf32, #tpu.memory_space<vmem>>, vector<16x64xf32>
      tpu.vector_store %arg19[%c0_128, %c0_129], %249 {strides = array<i32>} : memref<16x64xf32, #tpu.memory_space<vmem>>, vector<16x64xf32>,
    } else {
    }
    %c0_59 = arith.constant 0 : index
    %c0_60 = arith.constant 0 : index
    %87 = vector.load %arg13[%c0_59, %c0_60] : memref<16x64xf32, #tpu.memory_space<vmem>>, vector<16x64xf32>
    %88 = vector.shape_cast %81 : vector<8x64xf32> to vector<8x1x64xf32>
    %89 = vector.shape_cast %87 : vector<16x64xf32> to vector<1x16x64xf32>
    %90 = vector.broadcast %88 : vector<8x1x64xf32> to vector<8x16x64xf32>
    %91 = vector.broadcast %89 : vector<1x16x64xf32> to vector<8x16x64xf32>
    %92 = arith.mulf %90, %91 : vector<8x16x64xf32>
    %93 = math.exp %92 : vector<8x16x64xf32>
    %c0_61 = arith.constant 0 : index
    %c0_62 = arith.constant 0 : index
    %c0_63 = arith.constant 0 : index
    %94 = vector.load %arg22[%c0_61, %c0_62, %c0_63] : memref<8x16x64xf32, #tpu.memory_space<vmem>>, vector<8x16x64xf32>
    tpu.vector_store %arg22[%c0_61, %c0_62, %c0_63], %93 {strides = array<i32>} : memref<8x16x64xf32, #tpu.memory_space<vmem>>, vector<8x16x64xf32>,
    %95 = vector.shape_cast %63 : vector<8x16xf32> to vector<8x16x1xf32>
    %96 = vector.shape_cast %82 : vector<8x64xf32> to vector<8x1x64xf32>
    %97 = vector.broadcast %95 : vector<8x16x1xf32> to vector<8x16x64xf32>
    %98 = vector.broadcast %96 : vector<8x1x64xf32> to vector<8x16x64xf32>
    %99 = arith.mulf %97, %98 : vector<8x16x64xf32>
    %c0_64 = arith.constant 0 : index
    %c0_65 = arith.constant 0 : index
    %c0_66 = arith.constant 0 : index
    %100 = vector.load %arg23[%c0_64, %c0_65, %c0_66] : memref<8x16x64xf32, #tpu.memory_space<vmem>>, vector<8x16x64xf32>
    tpu.vector_store %arg23[%c0_64, %c0_65, %c0_66], %99 {strides = array<i32>} : memref<8x16x64xf32, #tpu.memory_space<vmem>>, vector<8x16x64xf32>,
    %c0_67 = arith.constant 0 : index
    %c0_68 = arith.constant 0 : index
    %101 = vector.load %arg19[%c0_67, %c0_68] : memref<16x64xf32, #tpu.memory_space<vmem>>, vector<16x64xf32>
    %c0_i32_69 = arith.constant 0 : i32
    %c8_i32 = arith.constant 8 : i32
    %102 = arith.muli %c0_i32_69, %c8_i32 : i32
    %103 = tpu.assume_multiple %102, 8 : i32
    %104 = arith.index_cast %103 : i32 to index
    %c0_70 = arith.constant 0 : index
    %105 = vector.load %arg20[%104, %c0_70] : memref<8x16xf32, #tpu.memory_space<vmem>>, vector<8x16xf32>
    %106 = vector.shape_cast %105 : vector<8x16xf32> to vector<8x16x1xf32>
    %c0_i32_71 = arith.constant 0 : i32
    %107 = arith.addi %103, %c0_i32_71 : i32
    %108 = arith.index_cast %107 : i32 to index
    %c0_72 = arith.constant 0 : index
    %c0_73 = arith.constant 0 : index
    %109 = vector.load %arg22[%108, %c0_72, %c0_73] : memref<8x16x64xf32, #tpu.memory_space<vmem>>, vector<1x16x64xf32>
    %110 = vector.shape_cast %109 : vector<1x16x64xf32> to vector<16x64xf32>
    %111 = arith.mulf %110, %101 : vector<16x64xf32>
    %112 = arith.index_cast %107 : i32 to index
    %c0_74 = arith.constant 0 : index
    %c0_75 = arith.constant 0 : index
    %113 = vector.load %arg23[%112, %c0_74, %c0_75] : memref<8x16x64xf32, #tpu.memory_space<vmem>>, vector<1x16x64xf32>
    %114 = vector.shape_cast %113 : vector<1x16x64xf32> to vector<16x64xf32>
    %115 = arith.addf %111, %114 : vector<16x64xf32>
    %116 = vector.extract_strided_slice %106 {offsets = [0, 0, 0], sizes = [1, 16, 1], strides = [1, 1, 1]} : vector<8x16x1xf32> to vector<1x16x1xf32>
    %117 = vector.shape_cast %116 : vector<1x16x1xf32> to vector<16x1xf32>
    %118 = vector.broadcast %117 : vector<16x1xf32> to vector<16x64xf32>
    %119 = arith.mulf %118, %115 : vector<16x64xf32>
    %cst_76 = arith.constant dense<0.000000e+00> : vector<64xf32>
    %120 = vector.multi_reduction <add>, %119, %cst_76 [0] : vector<16x64xf32> to vector<64xf32>
    %121 = vector.shape_cast %120 : vector<64xf32> to vector<1x64xf32>
    %c1_i32 = arith.constant 1 : i32
    %122 = arith.addi %103, %c1_i32 : i32
    %123 = arith.index_cast %122 : i32 to index
    %c0_77 = arith.constant 0 : index
    %c0_78 = arith.constant 0 : index
    %124 = vector.load %arg22[%123, %c0_77, %c0_78] : memref<8x16x64xf32, #tpu.memory_space<vmem>>, vector<1x16x64xf32>
    %125 = vector.shape_cast %124 : vector<1x16x64xf32> to vector<16x64xf32>
    %126 = arith.mulf %125, %115 : vector<16x64xf32>
    %127 = arith.index_cast %122 : i32 to index
    %c0_79 = arith.constant 0 : index
    %c0_80 = arith.constant 0 : index
    %128 = vector.load %arg23[%127, %c0_79, %c0_80] : memref<8x16x64xf32, #tpu.memory_space<vmem>>, vector<1x16x64xf32>
    %129 = vector.shape_cast %128 : vector<1x16x64xf32> to vector<16x64xf32>
    %130 = arith.addf %126, %129 : vector<16x64xf32>
    %131 = vector.extract_strided_slice %106 {offsets = [1, 0, 0], sizes = [1, 16, 1], strides = [1, 1, 1]} : vector<8x16x1xf32> to vector<1x16x1xf32>
    %132 = vector.shape_cast %131 : vector<1x16x1xf32> to vector<16x1xf32>
    %133 = vector.broadcast %132 : vector<16x1xf32> to vector<16x64xf32>
    %134 = arith.mulf %133, %130 : vector<16x64xf32>
    %cst_81 = arith.constant dense<0.000000e+00> : vector<64xf32>
    %135 = vector.multi_reduction <add>, %134, %cst_81 [0] : vector<16x64xf32> to vector<64xf32>
    %136 = vector.shape_cast %135 : vector<64xf32> to vector<1x64xf32>
    %c2_i32 = arith.constant 2 : i32
    %137 = arith.addi %103, %c2_i32 : i32
    %138 = arith.index_cast %137 : i32 to index
    %c0_82 = arith.constant 0 : index
    %c0_83 = arith.constant 0 : index
    %139 = vector.load %arg22[%138, %c0_82, %c0_83] : memref<8x16x64xf32, #tpu.memory_space<vmem>>, vector<1x16x64xf32>
    %140 = vector.shape_cast %139 : vector<1x16x64xf32> to vector<16x64xf32>
    %141 = arith.mulf %140, %130 : vector<16x64xf32>
    %142 = arith.index_cast %137 : i32 to index
    %c0_84 = arith.constant 0 : index
    %c0_85 = arith.constant 0 : index
    %143 = vector.load %arg23[%142, %c0_84, %c0_85] : memref<8x16x64xf32, #tpu.memory_space<vmem>>, vector<1x16x64xf32>
    %144 = vector.shape_cast %143 : vector<1x16x64xf32> to vector<16x64xf32>
    %145 = arith.addf %141, %144 : vector<16x64xf32>
    %146 = vector.extract_strided_slice %106 {offsets = [2, 0, 0], sizes = [1, 16, 1], strides = [1, 1, 1]} : vector<8x16x1xf32> to vector<1x16x1xf32>
    %147 = vector.shape_cast %146 : vector<1x16x1xf32> to vector<16x1xf32>
    %148 = vector.broadcast %147 : vector<16x1xf32> to vector<16x64xf32>
    %149 = arith.mulf %148, %145 : vector<16x64xf32>
    %cst_86 = arith.constant dense<0.000000e+00> : vector<64xf32>
    %150 = vector.multi_reduction <add>, %149, %cst_86 [0] : vector<16x64xf32> to vector<64xf32>
    %151 = vector.shape_cast %150 : vector<64xf32> to vector<1x64xf32>
    %c3_i32 = arith.constant 3 : i32
    %152 = arith.addi %103, %c3_i32 : i32
    %153 = arith.index_cast %152 : i32 to index
    %c0_87 = arith.constant 0 : index
    %c0_88 = arith.constant 0 : index
    %154 = vector.load %arg22[%153, %c0_87, %c0_88] : memref<8x16x64xf32, #tpu.memory_space<vmem>>, vector<1x16x64xf32>
    %155 = vector.shape_cast %154 : vector<1x16x64xf32> to vector<16x64xf32>
    %156 = arith.mulf %155, %145 : vector<16x64xf32>
    %157 = arith.index_cast %152 : i32 to index
    %c0_89 = arith.constant 0 : index
    %c0_90 = arith.constant 0 : index
    %158 = vector.load %arg23[%157, %c0_89, %c0_90] : memref<8x16x64xf32, #tpu.memory_space<vmem>>, vector<1x16x64xf32>
    %159 = vector.shape_cast %158 : vector<1x16x64xf32> to vector<16x64xf32>
    %160 = arith.addf %156, %159 : vector<16x64xf32>
    %161 = vector.extract_strided_slice %106 {offsets = [3, 0, 0], sizes = [1, 16, 1], strides = [1, 1, 1]} : vector<8x16x1xf32> to vector<1x16x1xf32>
    %162 = vector.shape_cast %161 : vector<1x16x1xf32> to vector<16x1xf32>
    %163 = vector.broadcast %162 : vector<16x1xf32> to vector<16x64xf32>
    %164 = arith.mulf %163, %160 : vector<16x64xf32>
    %cst_91 = arith.constant dense<0.000000e+00> : vector<64xf32>
    %165 = vector.multi_reduction <add>, %164, %cst_91 [0] : vector<16x64xf32> to vector<64xf32>
    %166 = vector.shape_cast %165 : vector<64xf32> to vector<1x64xf32>
    %c4_i32 = arith.constant 4 : i32
    %167 = arith.addi %103, %c4_i32 : i32
    %168 = arith.index_cast %167 : i32 to index
    %c0_92 = arith.constant 0 : index
    %c0_93 = arith.constant 0 : index
    %169 = vector.load %arg22[%168, %c0_92, %c0_93] : memref<8x16x64xf32, #tpu.memory_space<vmem>>, vector<1x16x64xf32>
    %170 = vector.shape_cast %169 : vector<1x16x64xf32> to vector<16x64xf32>
    %171 = arith.mulf %170, %160 : vector<16x64xf32>
    %172 = arith.index_cast %167 : i32 to index
    %c0_94 = arith.constant 0 : index
    %c0_95 = arith.constant 0 : index
    %173 = vector.load %arg23[%172, %c0_94, %c0_95] : memref<8x16x64xf32, #tpu.memory_space<vmem>>, vector<1x16x64xf32>
    %174 = vector.shape_cast %173 : vector<1x16x64xf32> to vector<16x64xf32>
    %175 = arith.addf %171, %174 : vector<16x64xf32>
    %176 = vector.extract_strided_slice %106 {offsets = [4, 0, 0], sizes = [1, 16, 1], strides = [1, 1, 1]} : vector<8x16x1xf32> to vector<1x16x1xf32>
    %177 = vector.shape_cast %176 : vector<1x16x1xf32> to vector<16x1xf32>
    %178 = vector.broadcast %177 : vector<16x1xf32> to vector<16x64xf32>
    %179 = arith.mulf %178, %175 : vector<16x64xf32>
    %cst_96 = arith.constant dense<0.000000e+00> : vector<64xf32>
    %180 = vector.multi_reduction <add>, %179, %cst_96 [0] : vector<16x64xf32> to vector<64xf32>
    %181 = vector.shape_cast %180 : vector<64xf32> to vector<1x64xf32>
    %c5_i32 = arith.constant 5 : i32
    %182 = arith.addi %103, %c5_i32 : i32
    %183 = arith.index_cast %182 : i32 to index
    %c0_97 = arith.constant 0 : index
    %c0_98 = arith.constant 0 : index
    %184 = vector.load %arg22[%183, %c0_97, %c0_98] : memref<8x16x64xf32, #tpu.memory_space<vmem>>, vector<1x16x64xf32>
    %185 = vector.shape_cast %184 : vector<1x16x64xf32> to vector<16x64xf32>
    %186 = arith.mulf %185, %175 : vector<16x64xf32>
    %187 = arith.index_cast %182 : i32 to index
    %c0_99 = arith.constant 0 : index
    %c0_100 = arith.constant 0 : index
    %188 = vector.load %arg23[%187, %c0_99, %c0_100] : memref<8x16x64xf32, #tpu.memory_space<vmem>>, vector<1x16x64xf32>
    %189 = vector.shape_cast %188 : vector<1x16x64xf32> to vector<16x64xf32>
    %190 = arith.addf %186, %189 : vector<16x64xf32>
    %191 = vector.extract_strided_slice %106 {offsets = [5, 0, 0], sizes = [1, 16, 1], strides = [1, 1, 1]} : vector<8x16x1xf32> to vector<1x16x1xf32>
    %192 = vector.shape_cast %191 : vector<1x16x1xf32> to vector<16x1xf32>
    %193 = vector.broadcast %192 : vector<16x1xf32> to vector<16x64xf32>
    %194 = arith.mulf %193, %190 : vector<16x64xf32>
    %cst_101 = arith.constant dense<0.000000e+00> : vector<64xf32>
    %195 = vector.multi_reduction <add>, %194, %cst_101 [0] : vector<16x64xf32> to vector<64xf32>
    %196 = vector.shape_cast %195 : vector<64xf32> to vector<1x64xf32>
    %c6_i32 = arith.constant 6 : i32
    %197 = arith.addi %103, %c6_i32 : i32
    %198 = arith.index_cast %197 : i32 to index
    %c0_102 = arith.constant 0 : index
    %c0_103 = arith.constant 0 : index
    %199 = vector.load %arg22[%198, %c0_102, %c0_103] : memref<8x16x64xf32, #tpu.memory_space<vmem>>, vector<1x16x64xf32>
    %200 = vector.shape_cast %199 : vector<1x16x64xf32> to vector<16x64xf32>
    %201 = arith.mulf %200, %190 : vector<16x64xf32>
    %202 = arith.index_cast %197 : i32 to index
    %c0_104 = arith.constant 0 : index
    %c0_105 = arith.constant 0 : index
    %203 = vector.load %arg23[%202, %c0_104, %c0_105] : memref<8x16x64xf32, #tpu.memory_space<vmem>>, vector<1x16x64xf32>
    %204 = vector.shape_cast %203 : vector<1x16x64xf32> to vector<16x64xf32>
    %205 = arith.addf %201, %204 : vector<16x64xf32>
    %206 = vector.extract_strided_slice %106 {offsets = [6, 0, 0], sizes = [1, 16, 1], strides = [1, 1, 1]} : vector<8x16x1xf32> to vector<1x16x1xf32>
    %207 = vector.shape_cast %206 : vector<1x16x1xf32> to vector<16x1xf32>
    %208 = vector.broadcast %207 : vector<16x1xf32> to vector<16x64xf32>
    %209 = arith.mulf %208, %205 : vector<16x64xf32>
    %cst_106 = arith.constant dense<0.000000e+00> : vector<64xf32>
    %210 = vector.multi_reduction <add>, %209, %cst_106 [0] : vector<16x64xf32> to vector<64xf32>
    %211 = vector.shape_cast %210 : vector<64xf32> to vector<1x64xf32>
    %c7_i32 = arith.constant 7 : i32
    %212 = arith.addi %103, %c7_i32 : i32
    %213 = arith.index_cast %212 : i32 to index
    %c0_107 = arith.constant 0 : index
    %c0_108 = arith.constant 0 : index
    %214 = vector.load %arg22[%213, %c0_107, %c0_108] : memref<8x16x64xf32, #tpu.memory_space<vmem>>, vector<1x16x64xf32>
    %215 = vector.shape_cast %214 : vector<1x16x64xf32> to vector<16x64xf32>
    %216 = arith.mulf %215, %205 : vector<16x64xf32>
    %217 = arith.index_cast %212 : i32 to index
    %c0_109 = arith.constant 0 : index
    %c0_110 = arith.constant 0 : index
    %218 = vector.load %arg23[%217, %c0_109, %c0_110] : memref<8x16x64xf32, #tpu.memory_space<vmem>>, vector<1x16x64xf32>
    %219 = vector.shape_cast %218 : vector<1x16x64xf32> to vector<16x64xf32>
    %220 = arith.addf %216, %219 : vector<16x64xf32>
    %221 = vector.extract_strided_slice %106 {offsets = [7, 0, 0], sizes = [1, 16, 1], strides = [1, 1, 1]} : vector<8x16x1xf32> to vector<1x16x1xf32>
    %222 = vector.shape_cast %221 : vector<1x16x1xf32> to vector<16x1xf32>
    %223 = vector.broadcast %222 : vector<16x1xf32> to vector<16x64xf32>
    %224 = arith.mulf %223, %220 : vector<16x64xf32>
    %cst_111 = arith.constant dense<0.000000e+00> : vector<64xf32>
    %225 = vector.multi_reduction <add>, %224, %cst_111 [0] : vector<16x64xf32> to vector<64xf32>
    %226 = vector.shape_cast %225 : vector<64xf32> to vector<1x64xf32>
    %227 = tpu.concatenate %121, %136, %151, %166, %181, %196, %211, %226 in 0 : vector<1x64xf32>, vector<1x64xf32>, vector<1x64xf32>, vector<1x64xf32>, vector<1x64xf32>, vector<1x64xf32>, vector<1x64xf32>, vector<1x64xf32> -> vector<8x64xf32>
    %228 = arith.index_cast %103 : i32 to index
    %c0_112 = arith.constant 0 : index
    %229 = vector.load %arg21[%228, %c0_112] : memref<8x64xf32, #tpu.memory_space<vmem>>, vector<8x64xf32>
    tpu.vector_store %arg21[%228, %c0_112], %227 {strides = array<i32>} : memref<8x64xf32, #tpu.memory_space<vmem>>, vector<8x64xf32>,
    %c1_i32_113 = arith.constant 1 : i32
    %c0_114 = arith.constant 0 : index
    %c0_115 = arith.constant 0 : index
    %230 = vector.load %arg19[%c0_114, %c0_115] : memref<16x64xf32, #tpu.memory_space<vmem>>, vector<16x64xf32>
    tpu.vector_store %arg19[%c0_114, %c0_115], %220 {strides = array<i32>} : memref<16x64xf32, #tpu.memory_space<vmem>>, vector<16x64xf32>,
    %c0_116 = arith.constant 0 : index
    %c0_117 = arith.constant 0 : index
    %231 = vector.load %arg21[%c0_116, %c0_117] : memref<8x64xf32, #tpu.memory_space<vmem>>, vector<8x64xf32>
    %c0_118 = arith.constant 0 : index
    %c0_119 = arith.constant 0 : index
    %232 = vector.load %arg14[%c0_118, %c0_119] : memref<1x64xf32, #tpu.memory_space<vmem>>, vector<1x64xf32>
    %233 = vector.broadcast %232 : vector<1x64xf32> to vector<8x64xf32>
    %234 = arith.mulf %233, %58 : vector<8x64xf32>
    %235 = arith.addf %231, %234 : vector<8x64xf32>
    %236 = arith.negf %22 : vector<8x64xf32>
    %237 = math.exp %236 : vector<8x64xf32>
    %cst_120 = arith.constant 1.000000e+00 : f32
    %238 = vector.broadcast %cst_120 : f32 to vector<8x64xf32>
    %239 = arith.addf %238, %237 : vector<8x64xf32>
    %240 = arith.divf %238, %239 : vector<8x64xf32>
    %241 = arith.mulf %22, %240 : vector<8x64xf32>
    %242 = arith.mulf %235, %241 : vector<8x64xf32>
    %243 = arith.truncf %242 : vector<8x64xf32> to vector<8x64xbf16>
    %c0_121 = arith.constant 0 : index
    %c0_122 = arith.constant 0 : index
    %244 = vector.load %arg15[%c0_121, %c0_122] : memref<64x32xbf16, #tpu.memory_space<vmem>>, vector<64x32xbf16>
    %cst_123 = arith.constant dense<0.000000e+00> : vector<8x32xf32>
    %245 = tpu.matmul %243, %244, %cst_123 {dimension_numbers = #tpu.dot_dimension_numbers<[1], [0], [0], [1], [0, 0, 1, 1], [], []>} : vector<8x64xbf16>, vector<64x32xbf16>, vector<8x32xf32> -> vector<8x32xf32>
    %c0_124 = arith.constant 0 : index
    %c0_125 = arith.constant 0 : index
    %c0_126 = arith.constant 0 : index
    %246 = vector.load %arg16[%c0_124, %c0_125, %c0_126] : memref<1x8x32xf32, #tpu.memory_space<vmem>>, vector<1x8x32xf32>
    %247 = vector.shape_cast %246 : vector<1x8x32xf32> to vector<8x32xf32>
    %248 = vector.shape_cast %245 : vector<8x32xf32> to vector<1x8x32xf32>
    tpu.vector_store %arg16[%c0_124, %c0_125, %c0_126], %248 {strides = array<i32>} : memref<1x8x32xf32, #tpu.memory_space<vmem>>, vector<1x8x32xf32>,
    return
  }
  func.func @transform_0(%arg0: i32, %arg1: i32) -> (i32, i32, i32) {
    %c0_i32 = arith.constant 0 : i32
    %c0_i32_0 = arith.constant 0 : i32
    return %arg0, %arg1, %c0_i32 : i32, i32, i32
  }
  func.func @transform_1(%arg0: i32, %arg1: i32) -> (i32, i32) {
    %c0_i32 = arith.constant 0 : i32
    %c0_i32_0 = arith.constant 0 : i32
    %c0_i32_1 = arith.constant 0 : i32
    return %c0_i32, %c0_i32_0 : i32, i32
  }
  func.func @transform_2(%arg0: i32, %arg1: i32) -> (i32, i32) {
    %c0_i32 = arith.constant 0 : i32
    %c0_i32_0 = arith.constant 0 : i32
    %c0_i32_1 = arith.constant 0 : i32
    return %c0_i32, %c0_i32_0 : i32, i32
  }
  func.func @transform_3(%arg0: i32, %arg1: i32) -> (i32, i32) {
    %c0_i32 = arith.constant 0 : i32
    %c0_i32_0 = arith.constant 0 : i32
    %c0_i32_1 = arith.constant 0 : i32
    return %c0_i32, %c0_i32_0 : i32, i32
  }
  func.func @transform_4(%arg0: i32, %arg1: i32) -> (i32, i32) {
    %c0_i32 = arith.constant 0 : i32
    %c0_i32_0 = arith.constant 0 : i32
    %c0_i32_1 = arith.constant 0 : i32
    return %c0_i32, %c0_i32_0 : i32, i32
  }
  func.func @transform_5(%arg0: i32, %arg1: i32) -> (i32, i32) {
    %c0_i32 = arith.constant 0 : i32
    %c0_i32_0 = arith.constant 0 : i32
    %c0_i32_1 = arith.constant 0 : i32
    return %c0_i32, %c0_i32_0 : i32, i32
  }
  func.func @transform_6(%arg0: i32, %arg1: i32) -> (i32, i32) {
    %c0_i32 = arith.constant 0 : i32
    %c0_i32_0 = arith.constant 0 : i32
    %c0_i32_1 = arith.constant 0 : i32
    return %c0_i32, %c0_i32_0 : i32, i32
  }
  func.func @transform_7(%arg0: i32, %arg1: i32) -> (i32, i32) {
    %c0_i32 = arith.constant 0 : i32
    %c0_i32_0 = arith.constant 0 : i32
    %c0_i32_1 = arith.constant 0 : i32
    return %c0_i32, %c0_i32_0 : i32, i32
  }
  func.func @transform_8(%arg0: i32, %arg1: i32) -> (i32, i32) {
    %c0_i32 = arith.constant 0 : i32
    %c0_i32_0 = arith.constant 0 : i32
    %c0_i32_1 = arith.constant 0 : i32
    return %c0_i32, %c0_i32_0 : i32, i32
  }
  func.func @transform_9(%arg0: i32, %arg1: i32) -> (i32, i32) {
    %c0_i32 = arith.constant 0 : i32
    %c0_i32_0 = arith.constant 0 : i32
    %c0_i32_1 = arith.constant 0 : i32
    return %c0_i32, %c0_i32_0 : i32, i32
  }
  func.func @transform_10(%arg0: i32, %arg1: i32) -> (i32, i32) {
    %c0_i32 = arith.constant 0 : i32
    %c0_i32_0 = arith.constant 0 : i32
    %c0_i32_1 = arith.constant 0 : i32
    return %c0_i32, %c0_i32_0 : i32, i32
  }
  func.func @transform_11(%arg0: i32, %arg1: i32) -> (i32, i32) {
    %c0_i32 = arith.constant 0 : i32
    %c0_i32_0 = arith.constant 0 : i32
    %c0_i32_1 = arith.constant 0 : i32
    return %c0_i32, %c0_i32_0 : i32, i32
  }
  func.func @transform_12(%arg0: i32, %arg1: i32) -> (i32, i32) {
    %c0_i32 = arith.constant 0 : i32
    %c0_i32_0 = arith.constant 0 : i32
    %c0_i32_1 = arith.constant 0 : i32
    return %c0_i32, %c0_i32_0 : i32, i32
  }
  func.func @transform_13(%arg0: i32, %arg1: i32) -> (i32, i32) {
    %c0_i32 = arith.constant 0 : i32
    %c0_i32_0 = arith.constant 0 : i32
    %c0_i32_1 = arith.constant 0 : i32
    return %c0_i32, %c0_i32_0 : i32, i32
  }
  func.func @transform_14(%arg0: i32, %arg1: i32) -> (i32, i32, i32) {
    %c0_i32 = arith.constant 0 : i32
    %c0_i32_0 = arith.constant 0 : i32
    return %arg0, %arg1, %c0_i32 : i32, i32, i32
  }
  func.func @transform_15(%arg0: i32, %arg1: i32) -> (i32, i32, i32) {
    %c0_i32 = arith.constant 0 : i32
    %c0_i32_0 = arith.constant 0 : i32
    return %arg0, %arg1, %c0_i32 : i32, i32, i32
  }
}

module attributes {stable_mosaic.version = 11 : i64} {
  func.func @mamba_layer_kernel(%arg0: i32, %arg1: i32, %arg2: memref<1x8x32xf32, #tpu.memory_space<vmem>>, %arg3: memref<1x32xf32, #tpu.memory_space<vmem>>, %arg4: memref<32x64xbf16, #tpu.memory_space<vmem>>, %arg5: memref<32x64xbf16, #tpu.memory_space<vmem>>, %arg6: memref<4x64xf32, #tpu.memory_space<vmem>>, %arg7: memref<1x64xf32, #tpu.memory_space<vmem>>, %arg8: memref<64x128xbf16, #tpu.memory_space<vmem>>, %arg9: memref<64x16xbf16, #tpu.memory_space<vmem>>, %arg10: memref<64x16xbf16, #tpu.memory_space<vmem>>, %arg11: memref<128x64xbf16, #tpu.memory_space<vmem>>, %arg12: memref<1x64xf32, #tpu.memory_space<vmem>>, %arg13: memref<16x64xf32, #tpu.memory_space<vmem>>, %arg14: memref<1x64xf32, #tpu.memory_space<vmem>>, %arg15: memref<64x32xbf16, #tpu.memory_space<vmem>>, %arg16: memref<1x8x32xf32, #tpu.memory_space<vmem>>, %arg17: memref<1x8x32xf32, #tpu.memory_space<vmem>>, %arg18: memref<11x64xf32, #tpu.memory_space<vmem>>, %arg19: memref<16x64xf32, #tpu.memory_space<vmem>>, %arg20: memref<8x16xf32, #tpu.memory_space<vmem>>, %arg21: memref<8x64xf32, #tpu.memory_space<vmem>>, %arg22: memref<8x16x64xf32, #tpu.memory_space<vmem>>, %arg23: memref<8x16x64xf32, #tpu.memory_space<vmem>>) attributes {dimension_semantics = [#tpu.dimension_semantics<parallel>, #tpu.dimension_semantics<arbitrary>], iteration_bounds = array<i64: 2, 2>, scalar_prefetch = 0 : i64, scratch_operands = 6 : i64, tpu.core_type = #tpu.core_type<tc>, window_params = [{transform_indices = @transform_0, window_bounds = array<i64: 1, 8, 32>}, {pipeline_mode = #tpu.pipeline_mode<synchronous>, transform_indices = @transform_1, window_bounds = array<i64: 1, 32>}, {pipeline_mode = #tpu.pipeline_mode<synchronous>, transform_indices = @transform_2, window_bounds = array<i64: 32, 64>}, {pipeline_mode = #tpu.pipeline_mode<synchronous>, transform_indices = @transform_3, window_bounds = array<i64: 32, 64>}, {pipeline_mode = #tpu.pipeline_mode<synchronous>, transform_indices = @transform_4, window_bounds = array<i64: 4, 64>}, {pipeline_mode = #tpu.pipeline_mode<synchronous>, transform_indices = @transform_5, window_bounds = array<i64: 1, 64>}, {pipeline_mode = #tpu.pipeline_mode<synchronous>, transform_indices = @transform_6, window_bounds = array<i64: 64, 128>}, {pipeline_mode = #tpu.pipeline_mode<synchronous>, transform_indices = @transform_7, window_bounds = array<i64: 64, 16>}, {pipeline_mode = #tpu.pipeline_mode<synchronous>, transform_indices = @transform_8, window_bounds = array<i64: 64, 16>}, {pipeline_mode = #tpu.pipeline_mode<synchronous>, transform_indices = @transform_9, window_bounds = array<i64: 128, 64>}, {pipeline_mode = #tpu.pipeline_mode<synchronous>, transform_indices = @transform_10, window_bounds = array<i64: 1, 64>}, {pipeline_mode = #tpu.pipeline_mode<synchronous>, transform_indices = @transform_11, window_bounds = array<i64: 16, 64>}, {pipeline_mode = #tpu.pipeline_mode<synchronous>, transform_indices = @transform_12, window_bounds = array<i64: 1, 64>}, {pipeline_mode = #tpu.pipeline_mode<synchronous>, transform_indices = @transform_13, window_bounds = array<i64: 64, 32>}, {transform_indices = @transform_14, window_bounds = array<i64: 1, 8, 32>}, {transform_indices = @transform_15, window_bounds = array<i64: 1, 8, 32>}]} {
    %c0 = arith.constant 0 : index
    %c0_0 = arith.constant 0 : index
    %c0_1 = arith.constant 0 : index
    %0 = vector.load %arg2[%c0, %c0_0, %c0_1] : memref<1x8x32xf32, #tpu.memory_space<vmem>>, vector<1x8x32xf32>
    %1 = vector.shape_cast %0 : vector<1x8x32xf32> to vector<8x32xf32>
    %c0_2 = arith.constant 0 : index
    %c0_3 = arith.constant 0 : index
    %c0_4 = arith.constant 0 : index
    %2 = vector.load %arg17[%c0_2, %c0_3, %c0_4] : memref<1x8x32xf32, #tpu.memory_space<vmem>>, vector<1x8x32xf32>
    %3 = vector.shape_cast %2 : vector<1x8x32xf32> to vector<8x32xf32>
    %4 = vector.shape_cast %1 : vector<8x32xf32> to vector<1x8x32xf32>
    tpu.vector_store %arg17[%c0_2, %c0_3, %c0_4], %4 {strides = array<i32>} : memref<1x8x32xf32, #tpu.memory_space<vmem>>, vector<1x8x32xf32>,
    %5 = arith.mulf %1, %1 : vector<8x32xf32>
    %cst = arith.constant dense<0.000000e+00> : vector<8xf32>
    %6 = vector.multi_reduction <add>, %5, %cst [1] : vector<8x32xf32> to vector<8xf32>
    %7 = vector.shape_cast %6 : vector<8xf32> to vector<8x1xf32>
    %cst_5 = arith.constant 3.200000e+01 : f32
    %8 = vector.broadcast %cst_5 : f32 to vector<8x1xf32>
    %9 = arith.divf %7, %8 : vector<8x1xf32>
    %cst_6 = arith.constant 9.99999974E-6 : f32
    %10 = vector.broadcast %cst_6 : f32 to vector<8x1xf32>
    %11 = arith.addf %9, %10 : vector<8x1xf32>
    %12 = math.rsqrt %11 : vector<8x1xf32>
    %13 = vector.broadcast %12 : vector<8x1xf32> to vector<8x32xf32>
    %14 = arith.mulf %1, %13 : vector<8x32xf32>
    %c0_7 = arith.constant 0 : index
    %c0_8 = arith.constant 0 : index
    %15 = vector.load %arg3[%c0_7, %c0_8] : memref<1x32xf32, #tpu.memory_space<vmem>>, vector<1x32xf32>
    %16 = vector.broadcast %15 : vector<1x32xf32> to vector<8x32xf32>
    %17 = arith.mulf %14, %16 : vector<8x32xf32>
    %18 = arith.truncf %17 : vector<8x32xf32> to vector<8x32xbf16>
    %c0_9 = arith.constant 0 : index
    %c0_10 = arith.constant 0 : index
    %19 = vector.load %arg4[%c0_9, %c0_10] : memref<32x64xbf16, #tpu.memory_space<vmem>>, vector<32x64xbf16>
    %cst_11 = arith.constant dense<0.000000e+00> : vector<8x64xf32>
    %20 = tpu.matmul %18, %19, %cst_11 {dimension_numbers = #tpu.dot_dimension_numbers<[1], [0], [0], [1], [0, 0, 1, 1], [], []>} : vector<8x32xbf16>, vector<32x64xbf16>, vector<8x64xf32> -> vector<8x64xf32>
    %c0_12 = arith.constant 0 : index
    %c0_13 = arith.constant 0 : index
    %21 = vector.load %arg5[%c0_12, %c0_13] : memref<32x64xbf16, #tpu.memory_space<vmem>>, vector<32x64xbf16>
    %cst_14 = arith.constant dense<0.000000e+00> : vector<8x64xf32>
    %22 = tpu.matmul %18, %21, %cst_14 {dimension_numbers = #tpu.dot_dimension_numbers<[1], [0], [0], [1], [0, 0, 1, 1], [], []>} : vector<8x32xbf16>, vector<32x64xbf16>, vector<8x64xf32> -> vector<8x64xf32>
    %c0_i32 = arith.constant 0 : i32
    %23 = arith.cmpi eq, %arg1, %c0_i32 : i32
    %24 = arith.extui %23 : i1 to i32
    %c0_i32_15 = arith.constant 0 : i32
    %25 = arith.cmpi ne, %24, %c0_i32_15 : i32
    scf.if %25 {
      %cst_127 = arith.constant 0.000000e+00 : f32
      %249 = vector.broadcast %cst_127 : f32 to vector<3x64xf32>
      %c0_128 = arith.constant 0 : index
      %c0_129 = arith.constant 0 : index
      %250 = vector.load %arg18[%c0_128, %c0_129] : memref<11x64xf32, #tpu.memory_space<vmem>>, vector<3x64xf32>
      tpu.vector_store %arg18[%c0_128, %c0_129], %249 {strides = array<i32>} : memref<11x64xf32, #tpu.memory_space<vmem>>, vector<3x64xf32>,
    } else {
    }
    %c3 = arith.constant 3 : index
    %c0_16 = arith.constant 0 : index
    %26 = vector.load %arg18[%c3, %c0_16] : memref<11x64xf32, #tpu.memory_space<vmem>>, vector<8x64xf32>
    tpu.vector_store %arg18[%c3, %c0_16], %20 {strides = array<i32>} : memref<11x64xf32, #tpu.memory_space<vmem>>, vector<8x64xf32>,
    %cst_17 = arith.constant 0.000000e+00 : f32
    %27 = vector.broadcast %cst_17 : f32 to vector<8x64xf32>
    %c0_18 = arith.constant 0 : index
    %c0_19 = arith.constant 0 : index
    %28 = vector.load %arg7[%c0_18, %c0_19] : memref<1x64xf32, #tpu.memory_space<vmem>>, vector<1x64xf32>
    %29 = vector.broadcast %28 : vector<1x64xf32> to vector<8x64xf32>
    %30 = arith.addf %27, %29 : vector<8x64xf32>
    %c0_20 = arith.constant 0 : index
    %c0_21 = arith.constant 0 : index
    %31 = vector.load %arg18[%c0_20, %c0_21] : memref<11x64xf32, #tpu.memory_space<vmem>>, vector<8x64xf32>
    %c0_22 = arith.constant 0 : index
    %c0_23 = arith.constant 0 : index
    %32 = vector.load %arg6[%c0_22, %c0_23] : memref<4x64xf32, #tpu.memory_space<vmem>>, vector<1x64xf32>
    %33 = vector.broadcast %32 : vector<1x64xf32> to vector<8x64xf32>
    %34 = arith.mulf %31, %33 : vector<8x64xf32>
    %35 = arith.addf %30, %34 : vector<8x64xf32>
    %c1 = arith.constant 1 : index
    %c0_24 = arith.constant 0 : index
    %36 = vector.load %arg18[%c1, %c0_24] : memref<11x64xf32, #tpu.memory_space<vmem>>, vector<8x64xf32>
    %c1_25 = arith.constant 1 : index
    %c0_26 = arith.constant 0 : index
    %37 = vector.load %arg6[%c1_25, %c0_26] : memref<4x64xf32, #tpu.memory_space<vmem>>, vector<1x64xf32>
    %38 = vector.broadcast %37 : vector<1x64xf32> to vector<8x64xf32>
    %39 = arith.mulf %36, %38 : vector<8x64xf32>
    %40 = arith.addf %35, %39 : vector<8x64xf32>
    %c2 = arith.constant 2 : index
    %c0_27 = arith.constant 0 : index
    %41 = vector.load %arg18[%c2, %c0_27] : memref<11x64xf32, #tpu.memory_space<vmem>>, vector<8x64xf32>
    %c2_28 = arith.constant 2 : index
    %c0_29 = arith.constant 0 : index
    %42 = vector.load %arg6[%c2_28, %c0_29] : memref<4x64xf32, #tpu.memory_space<vmem>>, vector<1x64xf32>
    %43 = vector.broadcast %42 : vector<1x64xf32> to vector<8x64xf32>
    %44 = arith.mulf %41, %43 : vector<8x64xf32>
    %45 = arith.addf %40, %44 : vector<8x64xf32>
    %c3_30 = arith.constant 3 : index
    %c0_31 = arith.constant 0 : index
    %46 = vector.load %arg18[%c3_30, %c0_31] : memref<11x64xf32, #tpu.memory_space<vmem>>, vector<8x64xf32>
    %c3_32 = arith.constant 3 : index
    %c0_33 = arith.constant 0 : index
    %47 = vector.load %arg6[%c3_32, %c0_33] : memref<4x64xf32, #tpu.memory_space<vmem>>, vector<1x64xf32>
    %48 = vector.broadcast %47 : vector<1x64xf32> to vector<8x64xf32>
    %49 = arith.mulf %46, %48 : vector<8x64xf32>
    %50 = arith.addf %45, %49 : vector<8x64xf32>
    %c8 = arith.constant 8 : index
    %c0_34 = arith.constant 0 : index
    %51 = vector.load %arg18[%c8, %c0_34] : memref<11x64xf32, #tpu.memory_space<vmem>>, vector<3x64xf32>
    %c0_35 = arith.constant 0 : index
    %c0_36 = arith.constant 0 : index
    %52 = vector.load %arg18[%c0_35, %c0_36] : memref<11x64xf32, #tpu.memory_space<vmem>>, vector<3x64xf32>
    tpu.vector_store %arg18[%c0_35, %c0_36], %51 {strides = array<i32>} : memref<11x64xf32, #tpu.memory_space<vmem>>, vector<3x64xf32>,
    %53 = arith.negf %50 : vector<8x64xf32>
    %54 = math.exp %53 : vector<8x64xf32>
    %cst_37 = arith.constant 1.000000e+00 : f32
    %55 = vector.broadcast %cst_37 : f32 to vector<8x64xf32>
    %56 = arith.addf %55, %54 : vector<8x64xf32>
    %57 = arith.divf %55, %56 : vector<8x64xf32>
    %58 = arith.mulf %50, %57 : vector<8x64xf32>
    %59 = arith.truncf %58 : vector<8x64xf32> to vector<8x64xbf16>
    %c0_38 = arith.constant 0 : index
    %c0_39 = arith.constant 0 : index
    %60 = vector.load %arg8[%c0_38, %c0_39] : memref<64x128xbf16, #tpu.memory_space<vmem>>, vector<64x128xbf16>
    %cst_40 = arith.constant dense<0.000000e+00> : vector<8x128xf32>
    %61 = tpu.matmul %59, %60, %cst_40 {dimension_numbers = #tpu.dot_dimension_numbers<[1], [0], [0], [1], [0, 0, 1, 1], [], []>} : vector<8x64xbf16>, vector<64x128xbf16>, vector<8x128xf32> -> vector<8x128xf32>
    %c0_41 = arith.constant 0 : index
    %c0_42 = arith.constant 0 : index
    %62 = vector.load %arg9[%c0_41, %c0_42] : memref<64x16xbf16, #tpu.memory_space<vmem>>, vector<64x16xbf16>
    %cst_43 = arith.constant dense<0.000000e+00> : vector<8x16xf32>
    %63 = tpu.matmul %59, %62, %cst_43 {dimension_numbers = #tpu.dot_dimension_numbers<[1], [0], [0], [1], [0, 0, 1, 1], [], []>} : vector<8x64xbf16>, vector<64x16xbf16>, vector<8x16xf32> -> vector<8x16xf32>
    %c0_44 = arith.constant 0 : index
    %c0_45 = arith.constant 0 : index
    %64 = vector.load %arg10[%c0_44, %c0_45] : memref<64x16xbf16, #tpu.memory_space<vmem>>, vector<64x16xbf16>
    %cst_46 = arith.constant dense<0.000000e+00> : vector<8x16xf32>
    %65 = tpu.matmul %59, %64, %cst_46 {dimension_numbers = #tpu.dot_dimension_numbers<[1], [0], [0], [1], [0, 0, 1, 1], [], []>} : vector<8x64xbf16>, vector<64x16xbf16>, vector<8x16xf32> -> vector<8x16xf32>
    %66 = arith.truncf %61 : vector<8x128xf32> to vector<8x128xbf16>
    %c0_47 = arith.constant 0 : index
    %c0_48 = arith.constant 0 : index
    %67 = vector.load %arg11[%c0_47, %c0_48] : memref<128x64xbf16, #tpu.memory_space<vmem>>, vector<128x64xbf16>
    %cst_49 = arith.constant dense<0.000000e+00> : vector<8x64xf32>
    %68 = tpu.matmul %66, %67, %cst_49 {dimension_numbers = #tpu.dot_dimension_numbers<[1], [0], [0], [1], [0, 0, 1, 1], [], []>} : vector<8x128xbf16>, vector<128x64xbf16>, vector<8x64xf32> -> vector<8x64xf32>
    %c0_50 = arith.constant 0 : index
    %c0_51 = arith.constant 0 : index
    %69 = vector.load %arg12[%c0_50, %c0_51] : memref<1x64xf32, #tpu.memory_space<vmem>>, vector<1x64xf32>
    %70 = vector.broadcast %69 : vector<1x64xf32> to vector<8x64xf32>
    %71 = arith.addf %68, %70 : vector<8x64xf32>
    %cst_52 = arith.constant 0.000000e+00 : f32
    %72 = vector.broadcast %cst_52 : f32 to vector<8x64xf32>
    %73 = arith.maximumf %71, %72 : vector<8x64xf32>
    %74 = math.absf %71 : vector<8x64xf32>
    %cst_53 = arith.constant 0.000000e+00 : f32
    %75 = vector.broadcast %cst_53 : f32 to vector<8x64xf32>
    %76 = arith.subf %75, %74 : vector<8x64xf32>
    %77 = math.exp %76 : vector<8x64xf32>
    %cst_54 = arith.constant 1.000000e+00 : f32
    %78 = vector.broadcast %cst_54 : f32 to vector<8x64xf32>
    %79 = arith.addf %78, %77 : vector<8x64xf32>
    %80 = math.log %79 : vector<8x64xf32>
    %81 = arith.addf %73, %80 : vector<8x64xf32>
    %82 = arith.mulf %81, %58 : vector<8x64xf32>
    %c0_55 = arith.constant 0 : index
    %c0_56 = arith.constant 0 : index
    %83 = vector.load %arg20[%c0_55, %c0_56] : memref<8x16xf32, #tpu.memory_space<vmem>>, vector<8x16xf32>
    tpu.vector_store %arg20[%c0_55, %c0_56], %65 {strides = array<i32>} : memref<8x16xf32, #tpu.memory_space<vmem>>, vector<8x16xf32>,
    %c0_i32_57 = arith.constant 0 : i32
    %84 = arith.cmpi eq, %arg1, %c0_i32_57 : i32
    %85 = arith.extui %84 : i1 to i32
    %c0_i32_58 = arith.constant 0 : i32
    %86 = arith.cmpi ne, %85, %c0_i32_58 : i32
    scf.if %86 {
      %cst_127 = arith.constant 0.000000e+00 : f32
      %249 = vector.broadcast %cst_127 : f32 to vector<16x64xf32>
      %c0_128 = arith.constant 0 : index
      %c0_129 = arith.constant 0 : index
      %250 = vector.load %arg19[%c0_128, %c0_129] : memref<16x64xf32, #tpu.memory_space<vmem>>, vector<16x64xf32>
      tpu.vector_store %arg19[%c0_128, %c0_129], %249 {strides = array<i32>} : memref<16x64xf32, #tpu.memory_space<vmem>>, vector<16x64xf32>,
    } else {
    }
    %c0_59 = arith.constant 0 : index
    %c0_60 = arith.constant 0 : index
    %87 = vector.load %arg13[%c0_59, %c0_60] : memref<16x64xf32, #tpu.memory_space<vmem>>, vector<16x64xf32>
    %88 = vector.shape_cast %81 : vector<8x64xf32> to vector<8x1x64xf32>
    %89 = vector.shape_cast %87 : vector<16x64xf32> to vector<1x16x64xf32>
    %90 = vector.broadcast %88 : vector<8x1x64xf32> to vector<8x16x64xf32>
    %91 = vector.broadcast %89 : vector<1x16x64xf32> to vector<8x16x64xf32>
    %92 = arith.mulf %90, %91 : vector<8x16x64xf32>
    %93 = math.exp %92 : vector<8x16x64xf32>
    %c0_61 = arith.constant 0 : index
    %c0_62 = arith.constant 0 : index
    %c0_63 = arith.constant 0 : index
    %94 = vector.load %arg22[%c0_61, %c0_62, %c0_63] : memref<8x16x64xf32, #tpu.memory_space<vmem>>, vector<8x16x64xf32>
    tpu.vector_store %arg22[%c0_61, %c0_62, %c0_63], %93 {strides = array<i32>} : memref<8x16x64xf32, #tpu.memory_space<vmem>>, vector<8x16x64xf32>,
    %95 = vector.shape_cast %63 : vector<8x16xf32> to vector<8x16x1xf32>
    %96 = vector.shape_cast %82 : vector<8x64xf32> to vector<8x1x64xf32>
    %97 = vector.broadcast %95 : vector<8x16x1xf32> to vector<8x16x64xf32>
    %98 = vector.broadcast %96 : vector<8x1x64xf32> to vector<8x16x64xf32>
    %99 = arith.mulf %97, %98 : vector<8x16x64xf32>
    %c0_64 = arith.constant 0 : index
    %c0_65 = arith.constant 0 : index
    %c0_66 = arith.constant 0 : index
    %100 = vector.load %arg23[%c0_64, %c0_65, %c0_66] : memref<8x16x64xf32, #tpu.memory_space<vmem>>, vector<8x16x64xf32>
    tpu.vector_store %arg23[%c0_64, %c0_65, %c0_66], %99 {strides = array<i32>} : memref<8x16x64xf32, #tpu.memory_space<vmem>>, vector<8x16x64xf32>,
    %c0_67 = arith.constant 0 : index
    %c0_68 = arith.constant 0 : index
    %101 = vector.load %arg19[%c0_67, %c0_68] : memref<16x64xf32, #tpu.memory_space<vmem>>, vector<16x64xf32>
    %c0_i32_69 = arith.constant 0 : i32
    %c8_i32 = arith.constant 8 : i32
    %102 = arith.muli %c0_i32_69, %c8_i32 : i32
    %103 = tpu.assume_multiple %102, 8 : i32
    %104 = arith.index_cast %103 : i32 to index
    %c0_70 = arith.constant 0 : index
    %105 = vector.load %arg20[%104, %c0_70] : memref<8x16xf32, #tpu.memory_space<vmem>>, vector<8x16xf32>
    %106 = vector.shape_cast %105 : vector<8x16xf32> to vector<8x16x1xf32>
    %c0_i32_71 = arith.constant 0 : i32
    %107 = arith.addi %103, %c0_i32_71 : i32
    %108 = arith.index_cast %107 : i32 to index
    %c0_72 = arith.constant 0 : index
    %c0_73 = arith.constant 0 : index
    %109 = vector.load %arg22[%108, %c0_72, %c0_73] : memref<8x16x64xf32, #tpu.memory_space<vmem>>, vector<1x16x64xf32>
    %110 = vector.shape_cast %109 : vector<1x16x64xf32> to vector<16x64xf32>
    %111 = arith.mulf %110, %101 : vector<16x64xf32>
    %112 = arith.index_cast %107 : i32 to index
    %c0_74 = arith.constant 0 : index
    %c0_75 = arith.constant 0 : index
    %113 = vector.load %arg23[%112, %c0_74, %c0_75] : memref<8x16x64xf32, #tpu.memory_space<vmem>>, vector<1x16x64xf32>
    %114 = vector.shape_cast %113 : vector<1x16x64xf32> to vector<16x64xf32>
    %115 = arith.addf %111, %114 : vector<16x64xf32>
    %116 = vector.extract_strided_slice %106 {offsets = [0, 0, 0], sizes = [1, 16, 1], strides = [1, 1, 1]} : vector<8x16x1xf32> to vector<1x16x1xf32>
    %117 = vector.shape_cast %116 : vector<1x16x1xf32> to vector<16x1xf32>
    %118 = vector.broadcast %117 : vector<16x1xf32> to vector<16x64xf32>
    %119 = arith.mulf %118, %115 : vector<16x64xf32>
    %cst_76 = arith.constant dense<0.000000e+00> : vector<64xf32>
    %120 = vector.multi_reduction <add>, %119, %cst_76 [0] : vector<16x64xf32> to vector<64xf32>
    %121 = vector.shape_cast %120 : vector<64xf32> to vector<1x64xf32>
    %c1_i32 = arith.constant 1 : i32
    %122 = arith.addi %103, %c1_i32 : i32
    %123 = arith.index_cast %122 : i32 to index
    %c0_77 = arith.constant 0 : index
    %c0_78 = arith.constant 0 : index
    %124 = vector.load %arg22[%123, %c0_77, %c0_78] : memref<8x16x64xf32, #tpu.memory_space<vmem>>, vector<1x16x64xf32>
    %125 = vector.shape_cast %124 : vector<1x16x64xf32> to vector<16x64xf32>
    %126 = arith.mulf %125, %115 : vector<16x64xf32>
    %127 = arith.index_cast %122 : i32 to index
    %c0_79 = arith.constant 0 : index
    %c0_80 = arith.constant 0 : index
    %128 = vector.load %arg23[%127, %c0_79, %c0_80] : memref<8x16x64xf32, #tpu.memory_space<vmem>>, vector<1x16x64xf32>
    %129 = vector.shape_cast %128 : vector<1x16x64xf32> to vector<16x64xf32>
    %130 = arith.addf %126, %129 : vector<16x64xf32>
    %131 = vector.extract_strided_slice %106 {offsets = [1, 0, 0], sizes = [1, 16, 1], strides = [1, 1, 1]} : vector<8x16x1xf32> to vector<1x16x1xf32>
    %132 = vector.shape_cast %131 : vector<1x16x1xf32> to vector<16x1xf32>
    %133 = vector.broadcast %132 : vector<16x1xf32> to vector<16x64xf32>
    %134 = arith.mulf %133, %130 : vector<16x64xf32>
    %cst_81 = arith.constant dense<0.000000e+00> : vector<64xf32>
    %135 = vector.multi_reduction <add>, %134, %cst_81 [0] : vector<16x64xf32> to vector<64xf32>
    %136 = vector.shape_cast %135 : vector<64xf32> to vector<1x64xf32>
    %c2_i32 = arith.constant 2 : i32
    %137 = arith.addi %103, %c2_i32 : i32
    %138 = arith.index_cast %137 : i32 to index
    %c0_82 = arith.constant 0 : index
    %c0_83 = arith.constant 0 : index
    %139 = vector.load %arg22[%138, %c0_82, %c0_83] : memref<8x16x64xf32, #tpu.memory_space<vmem>>, vector<1x16x64xf32>
    %140 = vector.shape_cast %139 : vector<1x16x64xf32> to vector<16x64xf32>
    %141 = arith.mulf %140, %130 : vector<16x64xf32>
    %142 = arith.index_cast %137 : i32 to index
    %c0_84 = arith.constant 0 : index
    %c0_85 = arith.constant 0 : index
    %143 = vector.load %arg23[%142, %c0_84, %c0_85] : memref<8x16x64xf32, #tpu.memory_space<vmem>>, vector<1x16x64xf32>
    %144 = vector.shape_cast %143 : vector<1x16x64xf32> to vector<16x64xf32>
    %145 = arith.addf %141, %144 : vector<16x64xf32>
    %146 = vector.extract_strided_slice %106 {offsets = [2, 0, 0], sizes = [1, 16, 1], strides = [1, 1, 1]} : vector<8x16x1xf32> to vector<1x16x1xf32>
    %147 = vector.shape_cast %146 : vector<1x16x1xf32> to vector<16x1xf32>
    %148 = vector.broadcast %147 : vector<16x1xf32> to vector<16x64xf32>
    %149 = arith.mulf %148, %145 : vector<16x64xf32>
    %cst_86 = arith.constant dense<0.000000e+00> : vector<64xf32>
    %150 = vector.multi_reduction <add>, %149, %cst_86 [0] : vector<16x64xf32> to vector<64xf32>
    %151 = vector.shape_cast %150 : vector<64xf32> to vector<1x64xf32>
    %c3_i32 = arith.constant 3 : i32
    %152 = arith.addi %103, %c3_i32 : i32
    %153 = arith.index_cast %152 : i32 to index
    %c0_87 = arith.constant 0 : index
    %c0_88 = arith.constant 0 : index
    %154 = vector.load %arg22[%153, %c0_87, %c0_88] : memref<8x16x64xf32, #tpu.memory_space<vmem>>, vector<1x16x64xf32>
    %155 = vector.shape_cast %154 : vector<1x16x64xf32> to vector<16x64xf32>
    %156 = arith.mulf %155, %145 : vector<16x64xf32>
    %157 = arith.index_cast %152 : i32 to index
    %c0_89 = arith.constant 0 : index
    %c0_90 = arith.constant 0 : index
    %158 = vector.load %arg23[%157, %c0_89, %c0_90] : memref<8x16x64xf32, #tpu.memory_space<vmem>>, vector<1x16x64xf32>
    %159 = vector.shape_cast %158 : vector<1x16x64xf32> to vector<16x64xf32>
    %160 = arith.addf %156, %159 : vector<16x64xf32>
    %161 = vector.extract_strided_slice %106 {offsets = [3, 0, 0], sizes = [1, 16, 1], strides = [1, 1, 1]} : vector<8x16x1xf32> to vector<1x16x1xf32>
    %162 = vector.shape_cast %161 : vector<1x16x1xf32> to vector<16x1xf32>
    %163 = vector.broadcast %162 : vector<16x1xf32> to vector<16x64xf32>
    %164 = arith.mulf %163, %160 : vector<16x64xf32>
    %cst_91 = arith.constant dense<0.000000e+00> : vector<64xf32>
    %165 = vector.multi_reduction <add>, %164, %cst_91 [0] : vector<16x64xf32> to vector<64xf32>
    %166 = vector.shape_cast %165 : vector<64xf32> to vector<1x64xf32>
    %c4_i32 = arith.constant 4 : i32
    %167 = arith.addi %103, %c4_i32 : i32
    %168 = arith.index_cast %167 : i32 to index
    %c0_92 = arith.constant 0 : index
    %c0_93 = arith.constant 0 : index
    %169 = vector.load %arg22[%168, %c0_92, %c0_93] : memref<8x16x64xf32, #tpu.memory_space<vmem>>, vector<1x16x64xf32>
    %170 = vector.shape_cast %169 : vector<1x16x64xf32> to vector<16x64xf32>
    %171 = arith.mulf %170, %160 : vector<16x64xf32>
    %172 = arith.index_cast %167 : i32 to index
    %c0_94 = arith.constant 0 : index
    %c0_95 = arith.constant 0 : index
    %173 = vector.load %arg23[%172, %c0_94, %c0_95] : memref<8x16x64xf32, #tpu.memory_space<vmem>>, vector<1x16x64xf32>
    %174 = vector.shape_cast %173 : vector<1x16x64xf32> to vector<16x64xf32>
    %175 = arith.addf %171, %174 : vector<16x64xf32>
    %176 = vector.extract_strided_slice %106 {offsets = [4, 0, 0], sizes = [1, 16, 1], strides = [1, 1, 1]} : vector<8x16x1xf32> to vector<1x16x1xf32>
    %177 = vector.shape_cast %176 : vector<1x16x1xf32> to vector<16x1xf32>
    %178 = vector.broadcast %177 : vector<16x1xf32> to vector<16x64xf32>
    %179 = arith.mulf %178, %175 : vector<16x64xf32>
    %cst_96 = arith.constant dense<0.000000e+00> : vector<64xf32>
    %180 = vector.multi_reduction <add>, %179, %cst_96 [0] : vector<16x64xf32> to vector<64xf32>
    %181 = vector.shape_cast %180 : vector<64xf32> to vector<1x64xf32>
    %c5_i32 = arith.constant 5 : i32
    %182 = arith.addi %103, %c5_i32 : i32
    %183 = arith.index_cast %182 : i32 to index
    %c0_97 = arith.constant 0 : index
    %c0_98 = arith.constant 0 : index
    %184 = vector.load %arg22[%183, %c0_97, %c0_98] : memref<8x16x64xf32, #tpu.memory_space<vmem>>, vector<1x16x64xf32>
    %185 = vector.shape_cast %184 : vector<1x16x64xf32> to vector<16x64xf32>
    %186 = arith.mulf %185, %175 : vector<16x64xf32>
    %187 = arith.index_cast %182 : i32 to index
    %c0_99 = arith.constant 0 : index
    %c0_100 = arith.constant 0 : index
    %188 = vector.load %arg23[%187, %c0_99, %c0_100] : memref<8x16x64xf32, #tpu.memory_space<vmem>>, vector<1x16x64xf32>
    %189 = vector.shape_cast %188 : vector<1x16x64xf32> to vector<16x64xf32>
    %190 = arith.addf %186, %189 : vector<16x64xf32>
    %191 = vector.extract_strided_slice %106 {offsets = [5, 0, 0], sizes = [1, 16, 1], strides = [1, 1, 1]} : vector<8x16x1xf32> to vector<1x16x1xf32>
    %192 = vector.shape_cast %191 : vector<1x16x1xf32> to vector<16x1xf32>
    %193 = vector.broadcast %192 : vector<16x1xf32> to vector<16x64xf32>
    %194 = arith.mulf %193, %190 : vector<16x64xf32>
    %cst_101 = arith.constant dense<0.000000e+00> : vector<64xf32>
    %195 = vector.multi_reduction <add>, %194, %cst_101 [0] : vector<16x64xf32> to vector<64xf32>
    %196 = vector.shape_cast %195 : vector<64xf32> to vector<1x64xf32>
    %c6_i32 = arith.constant 6 : i32
    %197 = arith.addi %103, %c6_i32 : i32
    %198 = arith.index_cast %197 : i32 to index
    %c0_102 = arith.constant 0 : index
    %c0_103 = arith.constant 0 : index
    %199 = vector.load %arg22[%198, %c0_102, %c0_103] : memref<8x16x64xf32, #tpu.memory_space<vmem>>, vector<1x16x64xf32>
    %200 = vector.shape_cast %199 : vector<1x16x64xf32> to vector<16x64xf32>
    %201 = arith.mulf %200, %190 : vector<16x64xf32>
    %202 = arith.index_cast %197 : i32 to index
    %c0_104 = arith.constant 0 : index
    %c0_105 = arith.constant 0 : index
    %203 = vector.load %arg23[%202, %c0_104, %c0_105] : memref<8x16x64xf32, #tpu.memory_space<vmem>>, vector<1x16x64xf32>
    %204 = vector.shape_cast %203 : vector<1x16x64xf32> to vector<16x64xf32>
    %205 = arith.addf %201, %204 : vector<16x64xf32>
    %206 = vector.extract_strided_slice %106 {offsets = [6, 0, 0], sizes = [1, 16, 1], strides = [1, 1, 1]} : vector<8x16x1xf32> to vector<1x16x1xf32>
    %207 = vector.shape_cast %206 : vector<1x16x1xf32> to vector<16x1xf32>
    %208 = vector.broadcast %207 : vector<16x1xf32> to vector<16x64xf32>
    %209 = arith.mulf %208, %205 : vector<16x64xf32>
    %cst_106 = arith.constant dense<0.000000e+00> : vector<64xf32>
    %210 = vector.multi_reduction <add>, %209, %cst_106 [0] : vector<16x64xf32> to vector<64xf32>
    %211 = vector.shape_cast %210 : vector<64xf32> to vector<1x64xf32>
    %c7_i32 = arith.constant 7 : i32
    %212 = arith.addi %103, %c7_i32 : i32
    %213 = arith.index_cast %212 : i32 to index
    %c0_107 = arith.constant 0 : index
    %c0_108 = arith.constant 0 : index
    %214 = vector.load %arg22[%213, %c0_107, %c0_108] : memref<8x16x64xf32, #tpu.memory_space<vmem>>, vector<1x16x64xf32>
    %215 = vector.shape_cast %214 : vector<1x16x64xf32> to vector<16x64xf32>
    %216 = arith.mulf %215, %205 : vector<16x64xf32>
    %217 = arith.index_cast %212 : i32 to index
    %c0_109 = arith.constant 0 : index
    %c0_110 = arith.constant 0 : index
    %218 = vector.load %arg23[%217, %c0_109, %c0_110] : memref<8x16x64xf32, #tpu.memory_space<vmem>>, vector<1x16x64xf32>
    %219 = vector.shape_cast %218 : vector<1x16x64xf32> to vector<16x64xf32>
    %220 = arith.addf %216, %219 : vector<16x64xf32>
    %221 = vector.extract_strided_slice %106 {offsets = [7, 0, 0], sizes = [1, 16, 1], strides = [1, 1, 1]} : vector<8x16x1xf32> to vector<1x16x1xf32>
    %222 = vector.shape_cast %221 : vector<1x16x1xf32> to vector<16x1xf32>
    %223 = vector.broadcast %222 : vector<16x1xf32> to vector<16x64xf32>
    %224 = arith.mulf %223, %220 : vector<16x64xf32>
    %cst_111 = arith.constant dense<0.000000e+00> : vector<64xf32>
    %225 = vector.multi_reduction <add>, %224, %cst_111 [0] : vector<16x64xf32> to vector<64xf32>
    %226 = vector.shape_cast %225 : vector<64xf32> to vector<1x64xf32>
    %227 = tpu.concatenate %121, %136, %151, %166, %181, %196, %211, %226 in 0 : vector<1x64xf32>, vector<1x64xf32>, vector<1x64xf32>, vector<1x64xf32>, vector<1x64xf32>, vector<1x64xf32>, vector<1x64xf32>, vector<1x64xf32> -> vector<8x64xf32>
    %228 = arith.index_cast %103 : i32 to index
    %c0_112 = arith.constant 0 : index
    %229 = vector.load %arg21[%228, %c0_112] : memref<8x64xf32, #tpu.memory_space<vmem>>, vector<8x64xf32>
    tpu.vector_store %arg21[%228, %c0_112], %227 {strides = array<i32>} : memref<8x64xf32, #tpu.memory_space<vmem>>, vector<8x64xf32>,
    %c1_i32_113 = arith.constant 1 : i32
    %c0_114 = arith.constant 0 : index
    %c0_115 = arith.constant 0 : index
    %230 = vector.load %arg19[%c0_114, %c0_115] : memref<16x64xf32, #tpu.memory_space<vmem>>, vector<16x64xf32>
    tpu.vector_store %arg19[%c0_114, %c0_115], %220 {strides = array<i32>} : memref<16x64xf32, #tpu.memory_space<vmem>>, vector<16x64xf32>,
    %c0_116 = arith.constant 0 : index
    %c0_117 = arith.constant 0 : index
    %231 = vector.load %arg21[%c0_116, %c0_117] : memref<8x64xf32, #tpu.memory_space<vmem>>, vector<8x64xf32>
    %c0_118 = arith.constant 0 : index
    %c0_119 = arith.constant 0 : index
    %232 = vector.load %arg14[%c0_118, %c0_119] : memref<1x64xf32, #tpu.memory_space<vmem>>, vector<1x64xf32>
    %233 = vector.broadcast %232 : vector<1x64xf32> to vector<8x64xf32>
    %234 = arith.mulf %233, %58 : vector<8x64xf32>
    %235 = arith.addf %231, %234 : vector<8x64xf32>
    %236 = arith.negf %22 : vector<8x64xf32>
    %237 = math.exp %236 : vector<8x64xf32>
    %cst_120 = arith.constant 1.000000e+00 : f32
    %238 = vector.broadcast %cst_120 : f32 to vector<8x64xf32>
    %239 = arith.addf %238, %237 : vector<8x64xf32>
    %240 = arith.divf %238, %239 : vector<8x64xf32>
    %241 = arith.mulf %22, %240 : vector<8x64xf32>
    %242 = arith.mulf %235, %241 : vector<8x64xf32>
    %243 = arith.truncf %242 : vector<8x64xf32> to vector<8x64xbf16>
    %c0_121 = arith.constant 0 : index
    %c0_122 = arith.constant 0 : index
    %244 = vector.load %arg15[%c0_121, %c0_122] : memref<64x32xbf16, #tpu.memory_space<vmem>>, vector<64x32xbf16>
    %cst_123 = arith.constant dense<0.000000e+00> : vector<8x32xf32>
    %245 = tpu.matmul %243, %244, %cst_123 {dimension_numbers = #tpu.dot_dimension_numbers<[1], [0], [0], [1], [0, 0, 1, 1], [], []>} : vector<8x64xbf16>, vector<64x32xbf16>, vector<8x32xf32> -> vector<8x32xf32>
    %c0_124 = arith.constant 0 : index
    %c0_125 = arith.constant 0 : index
    %c0_126 = arith.constant 0 : index
    %246 = vector.load %arg16[%c0_124, %c0_125, %c0_126] : memref<1x8x32xf32, #tpu.memory_space<vmem>>, vector<1x8x32xf32>
    %247 = vector.shape_cast %246 : vector<1x8x32xf32> to vector<8x32xf32>
    %248 = vector.shape_cast %245 : vector<8x32xf32> to vector<1x8x32xf32>
    tpu.vector_store %arg16[%c0_124, %c0_125, %c0_126], %248 {strides = array<i32>} : memref<1x8x32xf32, #tpu.memory_space<vmem>>, vector<1x8x32xf32>,
    return
  }
  func.func @transform_0(%arg0: i32, %arg1: i32) -> (i32, i32, i32) {
    %c0_i32 = arith.constant 0 : i32
    %c0_i32_0 = arith.constant 0 : i32
    return %arg0, %arg1, %c0_i32 : i32, i32, i32
  }
  func.func @transform_1(%arg0: i32, %arg1: i32) -> (i32, i32) {
    %c0_i32 = arith.constant 0 : i32
    %c0_i32_0 = arith.constant 0 : i32
    %c0_i32_1 = arith.constant 0 : i32
    return %c0_i32, %c0_i32_0 : i32, i32
  }
  func.func @transform_2(%arg0: i32, %arg1: i32) -> (i32, i32) {
    %c0_i32 = arith.constant 0 : i32
    %c0_i32_0 = arith.constant 0 : i32
    %c0_i32_1 = arith.constant 0 : i32
    return %c0_i32, %c0_i32_0 : i32, i32
  }
  func.func @transform_3(%arg0: i32, %arg1: i32) -> (i32, i32) {
    %c0_i32 = arith.constant 0 : i32
    %c0_i32_0 = arith.constant 0 : i32
    %c0_i32_1 = arith.constant 0 : i32
    return %c0_i32, %c0_i32_0 : i32, i32
  }
  func.func @transform_4(%arg0: i32, %arg1: i32) -> (i32, i32) {
    %c0_i32 = arith.constant 0 : i32
    %c0_i32_0 = arith.constant 0 : i32
    %c0_i32_1 = arith.constant 0 : i32
    return %c0_i32, %c0_i32_0 : i32, i32
  }
  func.func @transform_5(%arg0: i32, %arg1: i32) -> (i32, i32) {
    %c0_i32 = arith.constant 0 : i32
    %c0_i32_0 = arith.constant 0 : i32
    %c0_i32_1 = arith.constant 0 : i32
    return %c0_i32, %c0_i32_0 : i32, i32
  }
  func.func @transform_6(%arg0: i32, %arg1: i32) -> (i32, i32) {
    %c0_i32 = arith.constant 0 : i32
    %c0_i32_0 = arith.constant 0 : i32
    %c0_i32_1 = arith.constant 0 : i32
    return %c0_i32, %c0_i32_0 : i32, i32
  }
  func.func @transform_7(%arg0: i32, %arg1: i32) -> (i32, i32) {
    %c0_i32 = arith.constant 0 : i32
    %c0_i32_0 = arith.constant 0 : i32
    %c0_i32_1 = arith.constant 0 : i32
    return %c0_i32, %c0_i32_0 : i32, i32
  }
  func.func @transform_8(%arg0: i32, %arg1: i32) -> (i32, i32) {
    %c0_i32 = arith.constant 0 : i32
    %c0_i32_0 = arith.constant 0 : i32
    %c0_i32_1 = arith.constant 0 : i32
    return %c0_i32, %c0_i32_0 : i32, i32
  }
  func.func @transform_9(%arg0: i32, %arg1: i32) -> (i32, i32) {
    %c0_i32 = arith.constant 0 : i32
    %c0_i32_0 = arith.constant 0 : i32
    %c0_i32_1 = arith.constant 0 : i32
    return %c0_i32, %c0_i32_0 : i32, i32
  }
  func.func @transform_10(%arg0: i32, %arg1: i32) -> (i32, i32) {
    %c0_i32 = arith.constant 0 : i32
    %c0_i32_0 = arith.constant 0 : i32
    %c0_i32_1 = arith.constant 0 : i32
    return %c0_i32, %c0_i32_0 : i32, i32
  }
  func.func @transform_11(%arg0: i32, %arg1: i32) -> (i32, i32) {
    %c0_i32 = arith.constant 0 : i32
    %c0_i32_0 = arith.constant 0 : i32
    %c0_i32_1 = arith.constant 0 : i32
    return %c0_i32, %c0_i32_0 : i32, i32
  }
  func.func @transform_12(%arg0: i32, %arg1: i32) -> (i32, i32) {
    %c0_i32 = arith.constant 0 : i32
    %c0_i32_0 = arith.constant 0 : i32
    %c0_i32_1 = arith.constant 0 : i32
    return %c0_i32, %c0_i32_0 : i32, i32
  }
  func.func @transform_13(%arg0: i32, %arg1: i32) -> (i32, i32) {
    %c0_i32 = arith.constant 0 : i32
    %c0_i32_0 = arith.constant 0 : i32
    %c0_i32_1 = arith.constant 0 : i32
    return %c0_i32, %c0_i32_0 : i32, i32
  }
  func.func @transform_14(%arg0: i32, %arg1: i32) -> (i32, i32, i32) {
    %c0_i32 = arith.constant 0 : i32
    %c0_i32_0 = arith.constant 0 : i32
    return %arg0, %arg1, %c0_i32 : i32, i32, i32
  }
  func.func @transform_15(%arg0: i32, %arg1: i32) -> (i32, i32, i32) {
    %c0_i32 = arith.constant 0 : i32
    %c0_i32_0 = arith.constant 0 : i32
    return %arg0, %arg1, %c0_i32 : i32, i32, i32
  }
}

</mosaic_0001>

<llo_original>
// kernel: tpu_custom_call.1
$region0: #{tpu_custom_call.1}
  #allocation0 [shape = 'u32[]', space=smem, size = 0x4, offset = 0x4, fixed_abs, tag = 'smem constant byte address 0x4 - core index']
  #allocation1 [shape = 'u32[144,128]{1,0:T(1,128)}', space=vmem, size = 0x12000, scoped, tag = 'internal scratch']
  #allocation2 [shape = 'f32[11,64]{1,0:T(8,128)}', space=vmem, size = 0x2000, scoped, tag = 'scratch operand']
  #allocation3 [shape = 'f32[16,64]{1,0:T(8,128)}', space=vmem, size = 0x2000, scoped, tag = 'scratch operand']
  #allocation4 [shape = 'f32[8,16]{1,0:T(8,128)}', space=vmem, size = 0x1000, scoped, tag = 'scratch operand']
  #allocation5 [shape = 'f32[8,64]{1,0:T(8,128)}', space=vmem, size = 0x1000, scoped, tag = 'scratch operand']
  #allocation6 [shape = 'f32[8,16,64]{2,1,0:T(8,128)}', space=vmem, size = 0x10000, scoped, tag = 'scratch operand']
  #allocation7 [shape = 'f32[8,16,64]{2,1,0:T(8,128)}', space=vmem, size = 0x10000, scoped, tag = 'scratch operand']
  %s0 = inlined_call_operand.hbm [shape: f32[2,16,32], index: 0, kind: input, shape index: {}]
  %s1 = inlined_call_operand.hbm [shape: f32[1,32], index: 1, kind: input, shape index: {}]
  %s2 = inlined_call_operand.hbm [shape: bf16[32,64], index: 2, kind: input, shape index: {}]
  %s3 = inlined_call_operand.hbm [shape: bf16[32,64], index: 3, kind: input, shape index: {}]
  %s4 = inlined_call_operand.hbm [shape: f32[4,64], index: 4, kind: input, shape index: {}]
  %s5 = inlined_call_operand.hbm [shape: f32[1,64], index: 5, kind: input, shape index: {}]
  %s6 = inlined_call_operand.hbm [shape: bf16[64,128], index: 6, kind: input, shape index: {}]
  %s7 = inlined_call_operand.hbm [shape: bf16[64,16], index: 7, kind: input, shape index: {}]
  %s8 = inlined_call_operand.hbm [shape: bf16[64,16], index: 8, kind: input, shape index: {}]
  %s9 = inlined_call_operand.hbm [shape: bf16[128,64], index: 9, kind: input, shape index: {}]
  %s10 = inlined_call_operand.hbm [shape: f32[1,64], index: 10, kind: input, shape index: {}]
  %s11 = inlined_call_operand.hbm [shape: f32[16,64], index: 11, kind: input, shape index: {}]
  %s12 = inlined_call_operand.hbm [shape: f32[1,64], index: 12, kind: input, shape index: {}]
  %s13 = inlined_call_operand.hbm [shape: bf16[64,32], index: 13, kind: input, shape index: {}]
  %s14 = inlined_call_operand.hbm [shape: f32[2,16,32], index: 14, kind: output, shape index: {0}]
  %s15 = inlined_call_operand.hbm [shape: f32[2,16,32], index: 15, kind: output, shape index: {1}]
  %16 = xla_tuple %s14, %s15
  %s17 = sld [smem:[#allocation0]]
  $region161: #{tpu_custom_call.1} parent=0
    _
  %s19 = ssub.s32 1, %s17
  %s20 = scalar_select 0, %s19, %s17
  $region1: #{tpu_custom_call.1} parent=0
    #allocation8 [shape = 'u8[8192]{0}', space=vmem, size = 0x2000, scoped, tag = 'input window, operand 0']
    #allocation9 [shape = 's32[2]{0}', space=sflag, size = 0x8, scoped, tag = 'scoped memory for tpu_custom_call.1']
    #allocation10 [shape = 's32[2]{0}', space=sflag, size = 0x8, scoped, tag = 'scoped memory for tpu_custom_call.1']
    #allocation11 [shape = 'u8[512]{0}', space=vmem, size = 0x400, scoped, tag = 'input window, operand 1, single buffered']
    #allocation12 [shape = 's32[1]{0}', space=sflag, size = 0x4, scoped, tag = 'scoped memory for tpu_custom_call.1']
    #allocation13 [shape = 'u8[8192]{0}', space=vmem, size = 0x2000, scoped, tag = 'input window, operand 2, single buffered']
    #allocation14 [shape = 'u8[8192]{0}', space=vmem, size = 0x2000, scoped, tag = 'input window, operand 3, single buffered']
    #allocation15 [shape = 's32[1]{0}', space=sflag, size = 0x4, scoped, tag = 'scoped memory for tpu_custom_call.1']
    #allocation16 [shape = 'u8[2048]{0}', space=vmem, size = 0x800, scoped, tag = 'input window, operand 4, single buffered']
    #allocation17 [shape = 'u8[512]{0}', space=vmem, size = 0x400, scoped, tag = 'input window, operand 5, single buffered']
    #allocation18 [shape = 's32[1]{0}', space=sflag, size = 0x4, scoped, tag = 'scoped memory for tpu_custom_call.1']
    #allocation19 [shape = 'u8[16384]{0}', space=vmem, size = 0x4000, scoped, tag = 'input window, operand 6, single buffered']
    #allocation20 [shape = 'u8[16384]{0}', space=vmem, size = 0x4000, scoped, tag = 'input window, operand 7, single buffered']
    #allocation21 [shape = 's32[1]{0}', space=sflag, size = 0x4, scoped, tag = 'scoped memory for tpu_custom_call.1']
    #allocation22 [shape = 'u8[16384]{0}', space=vmem, size = 0x4000, scoped, tag = 'input window, operand 8, single buffered']
    #allocation23 [shape = 'u8[32768]{0}', space=vmem, size = 0x8000, scoped, tag = 'input window, operand 9, single buffered']
    #allocation24 [shape = 's32[1]{0}', space=sflag, size = 0x4, scoped, tag = 'scoped memory for tpu_custom_call.1']
    #allocation25 [shape = 'u8[512]{0}', space=vmem, size = 0x400, scoped, tag = 'input window, operand 10, single buffered']
    #allocation26 [shape = 'u8[8192]{0}', space=vmem, size = 0x2000, scoped, tag = 'input window, operand 11, single buffered']
    #allocation27 [shape = 's32[1]{0}', space=sflag, size = 0x4, scoped, tag = 'scoped memory for tpu_custom_call.1']
    #allocation28 [shape = 'u8[512]{0}', space=vmem, size = 0x400, scoped, tag = 'input window, operand 12, single buffered']
    #allocation29 [shape = 'u8[16384]{0}', space=vmem, size = 0x4000, scoped, tag = 'input window, operand 13, single buffered']
    #allocation30 [shape = 's32[1]{0}', space=sflag, size = 0x4, scoped, tag = 'scoped memory for tpu_custom_call.1']
    #allocation31 [shape = 'u8[8192]{0}', space=vmem, size = 0x2000, scoped, tag = 'output window, operand 0']
    #allocation32 [shape = 'u8[8192]{0}', space=vmem, size = 0x2000, scoped, tag = 'output window, operand 1']
    #allocation33 [shape = 's32[2]{0}', space=sflag, size = 0x8, scoped, tag = 'scoped memory for tpu_custom_call.1']
    %21 = vsyncpa [#allocation9], 0
    %s22 = scalar_lea.sflag [#allocation9], 1
    %23 = vsyncpa %s22, 0
    %24 = vsyncpa [#allocation12], 0
    %25 = vsyncpa [#allocation15], 0
    %26 = vsyncpa [#allocation18], 0
    %27 = vsyncpa [#allocation21], 0
    %28 = vsyncpa [#allocation24], 0
    %29 = vsyncpa [#allocation27], 0
    %30 = vsyncpa [#allocation30], 0
    %31 = vsyncpa [#allocation10], 0
    %s32 = scalar_lea.sflag [#allocation10], 1
    %33 = vsyncpa %s32, 0
    %34 = vsyncpa [#allocation33], 0
    %s35 = scalar_lea.sflag [#allocation33], 1
    %36 = vsyncpa %s35, 0
    loop: start=0, step=1, limit=6
    $region2: #{tpu_custom_call.1} parent=1 // loop_pre_header
      _
    $region3: #{tpu_custom_call.1} parent=1 // loop_header
      %s38 = sphi 0, %s42
      %p39 = scmp.ge.s32.totalorder %s38, 6
      %s45 = sphi 0, %s57
      %s46 = sphi 0, %s53
      %s47 = sphi 0, %s45
      %s48 = sphi 0, %s46
      %s49 = sphi 0, %s47
      %s50 = sphi 0, %s48
      %s62 = sphi 0, %s64
      %s65 = sphi 0, %s62
      %s66 = sphi 0, %s65
      %s82 = sphi 0, %s66
      %s86 = sphi 0, %s86
      %s88 = sphi 0, %s86
      %s89 = sphi 0, %s88
      %s103 = sphi 0, %s89
      %s107 = sphi 0, %s107
      %s109 = sphi 0, %s107
      %s110 = sphi 0, %s109
      %s124 = sphi 0, %s110
      %s128 = sphi 0, %s128
      %s130 = sphi 0, %s128
      %s131 = sphi 0, %s130
      %s145 = sphi 0, %s131
      %s149 = sphi 0, %s149
      %s151 = sphi 0, %s149
      %s152 = sphi 0, %s151
      %s166 = sphi 0, %s152
      %s170 = sphi 0, %s170
      %s172 = sphi 0, %s170
      %s173 = sphi 0, %s172
      %s187 = sphi 0, %s173
      %s191 = sphi 0, %s191
      %s193 = sphi 0, %s191
      %s194 = sphi 0, %s193
      %s208 = sphi 0, %s194
      %s212 = sphi 0, %s212
      %s214 = sphi 0, %s212
      %s215 = sphi 0, %s214
      %s229 = sphi 0, %s215
      %s233 = sphi 0, %s233
      %s235 = sphi 0, %s233
      %s236 = sphi 0, %s235
      %s250 = sphi 0, %s236
      %s254 = sphi 0, %s254
      %s256 = sphi 0, %s254
      %s257 = sphi 0, %s256
      %s271 = sphi 0, %s257
      %s275 = sphi 0, %s275
      %s277 = sphi 0, %s275
      %s278 = sphi 0, %s277
      %s292 = sphi 0, %s278
      %s296 = sphi 0, %s296
      %s298 = sphi 0, %s296
      %s299 = sphi 0, %s298
      %s313 = sphi 0, %s299
      %s317 = sphi 0, %s317
      %s319 = sphi 0, %s317
      %s320 = sphi 0, %s319
      %s334 = sphi 0, %s320
      %s338 = sphi 0, %s338
      %s340 = sphi 0, %s338
      %s341 = sphi 0, %s340
      %s355 = sphi 0, %s341
      %s363 = sphi 0, %s365
      %s366 = sphi 0, %s363
      %s367 = sphi 0, %s366
      %s383 = sphi 0, %s367
      %s391 = sphi 0, %s393
      %s394 = sphi 0, %s391
      %s395 = sphi 0, %s394
      %s411 = sphi 0, %s395
    $region4: #{tpu_custom_call.1} parent=1 // loop_header_branch
      %41 = sbr.rel (%p39) target = $region8
    $region5: #{tpu_custom_call.1} parent=1 // loop_body
      %s43 = ssub.s32 %s38, 1
      %s44 = ssub.s32 %s38, 2
      %s51 = sadd.s32 1, %s46
      %p52 = scmp.ge.s32.totalorder %s51, 2
      %s53 = scalar_select %p52, 0, %s51
      %s54 = sadd.s32 1, %s45
      %s55 = scalar_select %p52, %s54, %s45
      %p56 = scmp.ge.s32.totalorder %s55, 2
      %s57 = scalar_select %p56, 0, %s55
      %s58 = ssub.s32 %s45, %s57
      %s59 = ssub.s32 %s46, %s53
      %s60 = sor.u32 %s58, %s59
      %p61 = scmp.eq.s32.totalorder %s60, 0
      %s63 = sadd.s32 %s62, 1
      %s64 = scalar_select %p61, %s62, %s63
      %p67 = pneg %p61
      %p68 = scmp.eq.s32.totalorder %s38, 3
      %p69 = por %p67, %p68
      %p70 = scmp.ne.s32.totalorder %s62, %s65
      %p71 = scmp.eq.s32.totalorder %s38, 0
      %p72 = por %p70, %p71
      %p73 = scmp.ne.s32.totalorder %s62, %s65
      %p74 = scmp.eq.s32.totalorder %s43, 3
      %p75 = por %p73, %p74
      %p76 = scmp.ne.s32.totalorder %s65, %s66
      %p77 = scmp.eq.s32.totalorder %s43, 0
      %p78 = por %p76, %p77
      %p79 = scmp.ne.s32.totalorder %s65, %s66
      %p80 = scmp.eq.s32.totalorder %s44, 3
      %p81 = por %p79, %p80
      %p83 = scmp.ne.s32.totalorder %s66, %s82
      %p84 = scmp.eq.s32.totalorder %s44, 0
      %p85 = por %p83, %p84
      %s87 = sadd.s32 %s86, 1
      %p90 = scmp.eq.s32.totalorder %s38, 3
      %p91 = scmp.ne.s32.totalorder %s86, %s88
      %p92 = scmp.eq.s32.totalorder %s38, 0
      %p93 = por %p91, %p92
      %p94 = scmp.ne.s32.totalorder %s86, %s88
      %p95 = scmp.eq.s32.totalorder %s43, 3
      %p96 = por %p94, %p95
      %p97 = scmp.ne.s32.totalorder %s88, %s89
      %p98 = scmp.eq.s32.totalorder %s43, 0
      %p99 = por %p97, %p98
      %p100 = scmp.ne.s32.totalorder %s88, %s89
      %p101 = scmp.eq.s32.totalorder %s44, 3
      %p102 = por %p100, %p101
      %p104 = scmp.ne.s32.totalorder %s89, %s103
      %p105 = scmp.eq.s32.totalorder %s44, 0
      %p106 = por %p104, %p105
      %s108 = sadd.s32 %s107, 1
      %p111 = scmp.eq.s32.totalorder %s38, 3
      %p112 = scmp.ne.s32.totalorder %s107, %s109
      %p113 = scmp.eq.s32.totalorder %s38, 0
      %p114 = por %p112, %p113
      %p115 = scmp.ne.s32.totalorder %s107, %s109
      %p116 = scmp.eq.s32.totalorder %s43, 3
      %p117 = por %p115, %p116
      %p118 = scmp.ne.s32.totalorder %s109, %s110
      %p119 = scmp.eq.s32.totalorder %s43, 0
      %p120 = por %p118, %p119
      %p121 = scmp.ne.s32.totalorder %s109, %s110
      %p122 = scmp.eq.s32.totalorder %s44, 3
      %p123 = por %p121, %p122
      %p125 = scmp.ne.s32.totalorder %s110, %s124
      %p126 = scmp.eq.s32.totalorder %s44, 0
      %p127 = por %p125, %p126
      %s129 = sadd.s32 %s128, 1
      %p132 = scmp.eq.s32.totalorder %s38, 3
      %p133 = scmp.ne.s32.totalorder %s128, %s130
      %p134 = scmp.eq.s32.totalorder %s38, 0
      %p135 = por %p133, %p134
      %p136 = scmp.ne.s32.totalorder %s128, %s130
      %p137 = scmp.eq.s32.totalorder %s43, 3
      %p138 = por %p136, %p137
      %p139 = scmp.ne.s32.totalorder %s130, %s131
      %p140 = scmp.eq.s32.totalorder %s43, 0
      %p141 = por %p139, %p140
      %p142 = scmp.ne.s32.totalorder %s130, %s131
      %p143 = scmp.eq.s32.totalorder %s44, 3
      %p144 = por %p142, %p143
      %p146 = scmp.ne.s32.totalorder %s131, %s145
      %p147 = scmp.eq.s32.totalorder %s44, 0
      %p148 = por %p146, %p147
      %s150 = sadd.s32 %s149, 1
      %p153 = scmp.eq.s32.totalorder %s38, 3
      %p154 = scmp.ne.s32.totalorder %s149, %s151
      %p155 = scmp.eq.s32.totalorder %s38, 0
      %p156 = por %p154, %p155
      %p157 = scmp.ne.s32.totalorder %s149, %s151
      %p158 = scmp.eq.s32.totalorder %s43, 3
      %p159 = por %p157, %p158
      %p160 = scmp.ne.s32.totalorder %s151, %s152
      %p161 = scmp.eq.s32.totalorder %s43, 0
      %p162 = por %p160, %p161
      %p163 = scmp.ne.s32.totalorder %s151, %s152
      %p164 = scmp.eq.s32.totalorder %s44, 3
      %p165 = por %p163, %p164
      %p167 = scmp.ne.s32.totalorder %s152, %s166
      %p168 = scmp.eq.s32.totalorder %s44, 0
      %p169 = por %p167, %p168
      %s171 = sadd.s32 %s170, 1
      %p174 = scmp.eq.s32.totalorder %s38, 3
      %p175 = scmp.ne.s32.totalorder %s170, %s172
      %p176 = scmp.eq.s32.totalorder %s38, 0
      %p177 = por %p175, %p176
      %p178 = scmp.ne.s32.totalorder %s170, %s172
      %p179 = scmp.eq.s32.totalorder %s43, 3
      %p180 = por %p178, %p179
      %p181 = scmp.ne.s32.totalorder %s172, %s173
      %p182 = scmp.eq.s32.totalorder %s43, 0
      %p183 = por %p181, %p182
      %p184 = scmp.ne.s32.totalorder %s172, %s173
      %p185 = scmp.eq.s32.totalorder %s44, 3
      %p186 = por %p184, %p185
      %p188 = scmp.ne.s32.totalorder %s173, %s187
      %p189 = scmp.eq.s32.totalorder %s44, 0
      %p190 = por %p188, %p189
      %s192 = sadd.s32 %s191, 1
      %p195 = scmp.eq.s32.totalorder %s38, 3
      %p196 = scmp.ne.s32.totalorder %s191, %s193
      %p197 = scmp.eq.s32.totalorder %s38, 0
      %p198 = por %p196, %p197
      %p199 = scmp.ne.s32.totalorder %s191, %s193
      %p200 = scmp.eq.s32.totalorder %s43, 3
      %p201 = por %p199, %p200
      %p202 = scmp.ne.s32.totalorder %s193, %s194
      %p203 = scmp.eq.s32.totalorder %s43, 0
      %p204 = por %p202, %p203
      %p205 = scmp.ne.s32.totalorder %s193, %s194
      %p206 = scmp.eq.s32.totalorder %s44, 3
      %p207 = por %p205, %p206
      %p209 = scmp.ne.s32.totalorder %s194, %s208
      %p210 = scmp.eq.s32.totalorder %s44, 0
      %p211 = por %p209, %p210
      %s213 = sadd.s32 %s212, 1
      %p216 = scmp.eq.s32.totalorder %s38, 3
      %p217 = scmp.ne.s32.totalorder %s212, %s214
      %p218 = scmp.eq.s32.totalorder %s38, 0
      %p219 = por %p217, %p218
      %p220 = scmp.ne.s32.totalorder %s212, %s214
      %p221 = scmp.eq.s32.totalorder %s43, 3
      %p222 = por %p220, %p221
      %p223 = scmp.ne.s32.totalorder %s214, %s215
      %p224 = scmp.eq.s32.totalorder %s43, 0
      %p225 = por %p223, %p224
      %p226 = scmp.ne.s32.totalorder %s214, %s215
      %p227 = scmp.eq.s32.totalorder %s44, 3
      %p228 = por %p226, %p227
      %p230 = scmp.ne.s32.totalorder %s215, %s229
      %p231 = scmp.eq.s32.totalorder %s44, 0
      %p232 = por %p230, %p231
      %s234 = sadd.s32 %s233, 1
      %p237 = scmp.eq.s32.totalorder %s38, 3
      %p238 = scmp.ne.s32.totalorder %s233, %s235
      %p239 = scmp.eq.s32.totalorder %s38, 0
      %p240 = por %p238, %p239
      %p241 = scmp.ne.s32.totalorder %s233, %s235
      %p242 = scmp.eq.s32.totalorder %s43, 3
      %p243 = por %p241, %p242
      %p244 = scmp.ne.s32.totalorder %s235, %s236
      %p245 = scmp.eq.s32.totalorder %s43, 0
      %p246 = por %p244, %p245
      %p247 = scmp.ne.s32.totalorder %s235, %s236
      %p248 = scmp.eq.s32.totalorder %s44, 3
      %p249 = por %p247, %p248
      %p251 = scmp.ne.s32.totalorder %s236, %s250
      %p252 = scmp.eq.s32.totalorder %s44, 0
      %p253 = por %p251, %p252
      %s255 = sadd.s32 %s254, 1
      %p258 = scmp.eq.s32.totalorder %s38, 3
      %p259 = scmp.ne.s32.totalorder %s254, %s256
      %p260 = scmp.eq.s32.totalorder %s38, 0
      %p261 = por %p259, %p260
      %p262 = scmp.ne.s32.totalorder %s254, %s256
      %p263 = scmp.eq.s32.totalorder %s43, 3
      %p264 = por %p262, %p263
      %p265 = scmp.ne.s32.totalorder %s256, %s257
      %p266 = scmp.eq.s32.totalorder %s43, 0
      %p267 = por %p265, %p266
      %p268 = scmp.ne.s32.totalorder %s256, %s257
      %p269 = scmp.eq.s32.totalorder %s44, 3
      %p270 = por %p268, %p269
      %p272 = scmp.ne.s32.totalorder %s257, %s271
      %p273 = scmp.eq.s32.totalorder %s44, 0
      %p274 = por %p272, %p273
      %s276 = sadd.s32 %s275, 1
      %p279 = scmp.eq.s32.totalorder %s38, 3
      %p280 = scmp.ne.s32.totalorder %s275, %s277
      %p281 = scmp.eq.s32.totalorder %s38, 0
      %p282 = por %p280, %p281
      %p283 = scmp.ne.s32.totalorder %s275, %s277
      %p284 = scmp.eq.s32.totalorder %s43, 3
      %p285 = por %p283, %p284
      %p286 = scmp.ne.s32.totalorder %s277, %s278
      %p287 = scmp.eq.s32.totalorder %s43, 0
      %p288 = por %p286, %p287
      %p289 = scmp.ne.s32.totalorder %s277, %s278
      %p290 = scmp.eq.s32.totalorder %s44, 3
      %p291 = por %p289, %p290
      %p293 = scmp.ne.s32.totalorder %s278, %s292
      %p294 = scmp.eq.s32.totalorder %s44, 0
      %p295 = por %p293, %p294
      %s297 = sadd.s32 %s296, 1
      %p300 = scmp.eq.s32.totalorder %s38, 3
      %p301 = scmp.ne.s32.totalorder %s296, %s298
      %p302 = scmp.eq.s32.totalorder %s38, 0
      %p303 = por %p301, %p302
      %p304 = scmp.ne.s32.totalorder %s296, %s298
      %p305 = scmp.eq.s32.totalorder %s43, 3
      %p306 = por %p304, %p305
      %p307 = scmp.ne.s32.totalorder %s298, %s299
      %p308 = scmp.eq.s32.totalorder %s43, 0
      %p309 = por %p307, %p308
      %p310 = scmp.ne.s32.totalorder %s298, %s299
      %p311 = scmp.eq.s32.totalorder %s44, 3
      %p312 = por %p310, %p311
      %p314 = scmp.ne.s32.totalorder %s299, %s313
      %p315 = scmp.eq.s32.totalorder %s44, 0
      %p316 = por %p314, %p315
      %s318 = sadd.s32 %s317, 1
      %p321 = scmp.eq.s32.totalorder %s38, 3
      %p322 = scmp.ne.s32.totalorder %s317, %s319
      %p323 = scmp.eq.s32.totalorder %s38, 0
      %p324 = por %p322, %p323
      %p325 = scmp.ne.s32.totalorder %s317, %s319
      %p326 = scmp.eq.s32.totalorder %s43, 3
      %p327 = por %p325, %p326
      %p328 = scmp.ne.s32.totalorder %s319, %s320
      %p329 = scmp.eq.s32.totalorder %s43, 0
      %p330 = por %p328, %p329
      %p331 = scmp.ne.s32.totalorder %s319, %s320
      %p332 = scmp.eq.s32.totalorder %s44, 3
      %p333 = por %p331, %p332
      %p335 = scmp.ne.s32.totalorder %s320, %s334
      %p336 = scmp.eq.s32.totalorder %s44, 0
      %p337 = por %p335, %p336
      %s339 = sadd.s32 %s338, 1
      %p342 = scmp.eq.s32.totalorder %s38, 3
      %p343 = scmp.ne.s32.totalorder %s338, %s340
      %p344 = scmp.eq.s32.totalorder %s38, 0
      %p345 = por %p343, %p344
      %p346 = scmp.ne.s32.totalorder %s338, %s340
      %p347 = scmp.eq.s32.totalorder %s43, 3
      %p348 = por %p346, %p347
      %p349 = scmp.ne.s32.totalorder %s340, %s341
      %p350 = scmp.eq.s32.totalorder %s43, 0
      %p351 = por %p349, %p350
      %p352 = scmp.ne.s32.totalorder %s340, %s341
      %p353 = scmp.eq.s32.totalorder %s44, 3
      %p354 = por %p352, %p353
      %p356 = scmp.ne.s32.totalorder %s341, %s355
      %p357 = scmp.eq.s32.totalorder %s44, 0
      %p358 = por %p356, %p357
      %s359 = ssub.s32 %s45, %s57
      %s360 = ssub.s32 %s46, %s53
      %s361 = sor.u32 %s359, %s360
      %p362 = scmp.eq.s32.totalorder %s361, 0
      %s364 = sadd.s32 %s363, 1
      %s365 = scalar_select %p362, %s363, %s364
      %p368 = pneg %p362
      %p369 = scmp.eq.s32.totalorder %s38, 3
      %p370 = por %p368, %p369
      %p371 = scmp.ne.s32.totalorder %s363, %s366
      %p372 = scmp.eq.s32.totalorder %s38, 0
      %p373 = por %p371, %p372
      %p374 = scmp.ne.s32.totalorder %s363, %s366
      %p375 = scmp.eq.s32.totalorder %s43, 3
      %p376 = por %p374, %p375
      %p377 = scmp.ne.s32.totalorder %s366, %s367
      %p378 = scmp.eq.s32.totalorder %s43, 0
      %p379 = por %p377, %p378
      %p380 = scmp.ne.s32.totalorder %s366, %s367
      %p381 = scmp.eq.s32.totalorder %s44, 3
      %p382 = por %p380, %p381
      %p384 = scmp.ne.s32.totalorder %s367, %s383
      %p385 = scmp.eq.s32.totalorder %s44, 0
      %p386 = por %p384, %p385
      %s387 = ssub.s32 %s45, %s57
      %s388 = ssub.s32 %s46, %s53
      %s389 = sor.u32 %s387, %s388
      %p390 = scmp.eq.s32.totalorder %s389, 0
      %s392 = sadd.s32 %s391, 1
      %s393 = scalar_select %p390, %s391, %s392
      %p396 = pneg %p390
      %p397 = scmp.eq.s32.totalorder %s38, 3
      %p398 = por %p396, %p397
      %p399 = scmp.ne.s32.totalorder %s391, %s394
      %p400 = scmp.eq.s32.totalorder %s38, 0
      %p401 = por %p399, %p400
      %p402 = scmp.ne.s32.totalorder %s391, %s394
      %p403 = scmp.eq.s32.totalorder %s43, 3
      %p404 = por %p402, %p403
      %p405 = scmp.ne.s32.totalorder %s394, %s395
      %p406 = scmp.eq.s32.totalorder %s43, 0
      %p407 = por %p405, %p406
      %p408 = scmp.ne.s32.totalorder %s394, %s395
      %p409 = scmp.eq.s32.totalorder %s44, 3
      %p410 = por %p408, %p409
      %p412 = scmp.ne.s32.totalorder %s395, %s411
      %p413 = scmp.eq.s32.totalorder %s44, 0
      %p414 = por %p412, %p413
      %p415 = scmp.le.s32.totalorder 1, %s38
      %p416 = scmp.lt.s32.totalorder %s38, 5
      %p417 = pnand %p415, %p416
      %p418 = pneg %p417
      // Predicated region
      $region9: #{tpu_custom_call.1} parent=5 // pred_check
        _
      $region10: #{tpu_custom_call.1} parent=5 // pred_check_branch
        %420 = sbr.rel (%p417) target = $region12
      $region11: #{tpu_custom_call.1} parent=5 // pred_region
        %s421 = ssub.s32 %s38, 1
        // Predicated region
        $region13: #{tpu_custom_call.1} parent=11 // pred_check
          %p422 = pneg %p99
        $region14: #{tpu_custom_call.1} parent=11 // pred_check_branch
          %424 = sbr.rel (%p422) target = $region16
        $region15: #{tpu_custom_call.1} parent=11 // pred_region
          %s426 = ssub.s32 16, 16
          %427 = vsyncadd [#allocation12], %s426
          %s429 = sshll.u32 [#allocation11], 4
          %s430 = int_to_ptr.vmem [resolvable:$true] %s429
          %432 = dma.hbm_to_vmem [thread:$0]  %s1, 16, %s430, [#allocation12]
        $region16: #{tpu_custom_call.1} parent=11 // pred_fallthru
          _
        // Predicated region
        $region17: #{tpu_custom_call.1} parent=11 // pred_check
          %p433 = pneg %p120
        $region18: #{tpu_custom_call.1} parent=11 // pred_check_branch
          %435 = sbr.rel (%p433) target = $region20
        $region19: #{tpu_custom_call.1} parent=11 // pred_region
          %s437 = ssub.s32 256, 256
          %438 = vsyncadd [#allocation12], %s437
          %s439 = sshll.u32 [#allocation13], 4
          %s440 = int_to_ptr.vmem [resolvable:$true] %s439
          %445 = dma.hbm_to_vmem [thread:$0]  %s2, 256, %s440, [#allocation12], 64, 64, 4
        $region20: #{tpu_custom_call.1} parent=11 // pred_fallthru
          _
        // Predicated region
        $region21: #{tpu_custom_call.1} parent=11 // pred_check
          %p446 = pneg %p141
        $region22: #{tpu_custom_call.1} parent=11 // pred_check_branch
          %448 = sbr.rel (%p446) target = $region24
        $region23: #{tpu_custom_call.1} parent=11 // pred_region
          %s450 = ssub.s32 256, 256
          %451 = vsyncadd [#allocation15], %s450
          %s452 = sshll.u32 [#allocation14], 4
          %s453 = int_to_ptr.vmem [resolvable:$true] %s452
          %458 = dma.hbm_to_vmem [thread:$0]  %s3, 256, %s453, [#allocation15], 64, 64, 4
        $region24: #{tpu_custom_call.1} parent=11 // pred_fallthru
          _
        // Predicated region
        $region25: #{tpu_custom_call.1} parent=11 // pred_check
          %p459 = pneg %p162
        $region26: #{tpu_custom_call.1} parent=11 // pred_check_branch
          %461 = sbr.rel (%p459) target = $region28
        $region27: #{tpu_custom_call.1} parent=11 // pred_region
          %s463 = ssub.s32 64, 64
          %464 = vsyncadd [#allocation15], %s463
          %s466 = sshll.u32 [#allocation16], 4
          %s467 = int_to_ptr.vmem [resolvable:$true] %s466
          %469 = dma.hbm_to_vmem [thread:$0]  %s4, 64, %s467, [#allocation15]
        $region28: #{tpu_custom_call.1} parent=11 // pred_fallthru
          _
        // Predicated region
        $region29: #{tpu_custom_call.1} parent=11 // pred_check
          %p470 = pneg %p183
        $region30: #{tpu_custom_call.1} parent=11 // pred_check_branch
          %472 = sbr.rel (%p470) target = $region32
        $region31: #{tpu_custom_call.1} parent=11 // pred_region
          %s474 = ssub.s32 16, 16
          %475 = vsyncadd [#allocation18], %s474
          %s477 = sshll.u32 [#allocation17], 4
          %s478 = int_to_ptr.vmem [resolvable:$true] %s477
          %480 = dma.hbm_to_vmem [thread:$0]  %s5, 16, %s478, [#allocation18]
        $region32: #{tpu_custom_call.1} parent=11 // pred_fallthru
          _
        // Predicated region
        $region33: #{tpu_custom_call.1} parent=11 // pred_check
          %p481 = pneg %p204
        $region34: #{tpu_custom_call.1} parent=11 // pred_check_branch
          %483 = sbr.rel (%p481) target = $region36
        $region35: #{tpu_custom_call.1} parent=11 // pred_region
          %s485 = ssub.s32 512, 512
          %486 = vsyncadd [#allocation18], %s485
          %s487 = sshll.u32 [#allocation19], 4
          %s488 = int_to_ptr.vmem [resolvable:$true] %s487
          %493 = dma.hbm_to_vmem [thread:$0]  %s6, 512, %s488, [#allocation18], 64, 64, 4
        $region36: #{tpu_custom_call.1} parent=11 // pred_fallthru
          _
        // Predicated region
        $region37: #{tpu_custom_call.1} parent=11 // pred_check
          %p494 = pneg %p225
        $region38: #{tpu_custom_call.1} parent=11 // pred_check_branch
          %496 = sbr.rel (%p494) target = $region40
        $region39: #{tpu_custom_call.1} parent=11 // pred_region
          %s498 = ssub.s32 512, 512
          %499 = vsyncadd [#allocation21], %s498
          %s500 = sshll.u32 [#allocation20], 4
          %s501 = int_to_ptr.vmem [resolvable:$true] %s500
          %506 = dma.hbm_to_vmem [thread:$0]  %s7, 512, %s501, [#allocation21], 64, 64, 4
        $region40: #{tpu_custom_call.1} parent=11 // pred_fallthru
          _
        // Predicated region
        $region41: #{tpu_custom_call.1} parent=11 // pred_check
          %p507 = pneg %p246
        $region42: #{tpu_custom_call.1} parent=11 // pred_check_branch
          %509 = sbr.rel (%p507) target = $region44
        $region43: #{tpu_custom_call.1} parent=11 // pred_region
          %s511 = ssub.s32 512, 512
          %512 = vsyncadd [#allocation21], %s511
          %s513 = sshll.u32 [#allocation22], 4
          %s514 = int_to_ptr.vmem [resolvable:$true] %s513
          %519 = dma.hbm_to_vmem [thread:$0]  %s8, 512, %s514, [#allocation21], 64, 64, 4
        $region44: #{tpu_custom_call.1} parent=11 // pred_fallthru
          _
        // Predicated region
        $region45: #{tpu_custom_call.1} parent=11 // pred_check
          %p520 = pneg %p267
        $region46: #{tpu_custom_call.1} parent=11 // pred_check_branch
          %522 = sbr.rel (%p520) target = $region48
        $region47: #{tpu_custom_call.1} parent=11 // pred_region
          %s524 = ssub.s32 1024, 1024
          %525 = vsyncadd [#allocation24], %s524
          %s526 = sshll.u32 [#allocation23], 4
          %s527 = int_to_ptr.vmem [resolvable:$true] %s526
          %532 = dma.hbm_to_vmem [thread:$0]  %s9, 1024, %s527, [#allocation24], 64, 64, 4
        $region48: #{tpu_custom_call.1} parent=11 // pred_fallthru
          _
        // Predicated region
        $region49: #{tpu_custom_call.1} parent=11 // pred_check
          %p533 = pneg %p288
        $region50: #{tpu_custom_call.1} parent=11 // pred_check_branch
          %535 = sbr.rel (%p533) target = $region52
        $region51: #{tpu_custom_call.1} parent=11 // pred_region
          %s537 = ssub.s32 16, 16
          %538 = vsyncadd [#allocation24], %s537
          %s540 = sshll.u32 [#allocation25], 4
          %s541 = int_to_ptr.vmem [resolvable:$true] %s540
          %543 = dma.hbm_to_vmem [thread:$0]  %s10, 16, %s541, [#allocation24]
        $region52: #{tpu_custom_call.1} parent=11 // pred_fallthru
          _
        // Predicated region
        $region53: #{tpu_custom_call.1} parent=11 // pred_check
          %p544 = pneg %p309
        $region54: #{tpu_custom_call.1} parent=11 // pred_check_branch
          %546 = sbr.rel (%p544) target = $region56
        $region55: #{tpu_custom_call.1} parent=11 // pred_region
          %s548 = ssub.s32 256, 256
          %549 = vsyncadd [#allocation27], %s548
          %s550 = sshll.u32 [#allocation26], 4
          %s551 = int_to_ptr.vmem [resolvable:$true] %s550
          %556 = dma.hbm_to_vmem [thread:$0]  %s11, 256, %s551, [#allocation27], 128, 128, 8
        $region56: #{tpu_custom_call.1} parent=11 // pred_fallthru
          _
        // Predicated region
        $region57: #{tpu_custom_call.1} parent=11 // pred_check
          %p557 = pneg %p330
        $region58: #{tpu_custom_call.1} parent=11 // pred_check_branch
          %559 = sbr.rel (%p557) target = $region60
        $region59: #{tpu_custom_call.1} parent=11 // pred_region
          %s561 = ssub.s32 16, 16
          %562 = vsyncadd [#allocation27], %s561
          %s564 = sshll.u32 [#allocation28], 4
          %s565 = int_to_ptr.vmem [resolvable:$true] %s564
          %567 = dma.hbm_to_vmem [thread:$0]  %s12, 16, %s565, [#allocation27]
        $region60: #{tpu_custom_call.1} parent=11 // pred_fallthru
          _
        // Predicated region
        $region61: #{tpu_custom_call.1} parent=11 // pred_check
          %p568 = pneg %p351
        $region62: #{tpu_custom_call.1} parent=11 // pred_check_branch
          %570 = sbr.rel (%p568) target = $region64
        $region63: #{tpu_custom_call.1} parent=11 // pred_region
          %s572 = ssub.s32 512, 512
          %573 = vsyncadd [#allocation30], %s572
          %s574 = sshll.u32 [#allocation29], 4
          %s575 = int_to_ptr.vmem [resolvable:$true] %s574
          %580 = dma.hbm_to_vmem [thread:$0]  %s13, 512, %s575, [#allocation30], 64, 64, 4
        $region64: #{tpu_custom_call.1} parent=11 // pred_fallthru
          _
      $region12: #{tpu_custom_call.1} parent=5 // pred_fallthru
        _
      %p581 = scmp.lt.s32.totalorder %s38, 4
      // Predicated region
      $region65: #{tpu_custom_call.1} parent=5 // pred_check
        %p582 = pneg %p581
      $region66: #{tpu_custom_call.1} parent=5 // pred_check_branch
        %584 = sbr.rel (%p582) target = $region68
      $region67: #{tpu_custom_call.1} parent=5 // pred_region
        // Predicated region
        $region69: #{tpu_custom_call.1} parent=67 // pred_check
          %p585 = pneg %p72
        $region70: #{tpu_custom_call.1} parent=67 // pred_check_branch
          %587 = sbr.rel (%p585) target = $region72
        $region71: #{tpu_custom_call.1} parent=67 // pred_region
          %s588 = sand.u32 %s62, 1
          %s589 = scalar_lea.sflag [#allocation9], %s588
          %s590 = sand.u32 %s62, 1
          %s591 = smul.addr %s590, 8
          %s592 = scalar_lea.vmem [#allocation8], %s591
          %s594 = ssub.s32 128, 128
          %595 = vsyncadd %s589, %s594
          %s596 = smul.addr %s45, 2
          %s597 = sadd.s32 %s46, %s596
          %s598 = smul.addr %s597, 128
          %s599 = scalar_lea.hbm %s0, %s598
          %s601 = sshll.u32 %s592, 4
          %s602 = int_to_ptr.vmem [resolvable:$true] %s601
          %604 = dma.hbm_to_vmem [thread:$0]  %s599, 128, %s602, %s589
        $region72: #{tpu_custom_call.1} parent=67 // pred_fallthru
          _
      $region68: #{tpu_custom_call.1} parent=5 // pred_fallthru
        _
      %p605 = scmp.le.s32.totalorder 1, %s38
      %p606 = scmp.lt.s32.totalorder %s38, 5
      %p607 = pnand %p605, %p606
      %p608 = pneg %p607
      // Predicated region
      $region73: #{tpu_custom_call.1} parent=5 // pred_check
        _
      $region74: #{tpu_custom_call.1} parent=5 // pred_check_branch
        %610 = sbr.rel (%p607) target = $region76
      $region75: #{tpu_custom_call.1} parent=5 // pred_region
        %s611 = ssub.s32 %s38, 1
        %s612 = sand.u32 %s65, 1
        %s613 = scalar_lea.sflag [#allocation9], %s612
        %s614 = sand.u32 %s65, 1
        %s615 = smul.addr %s614, 8
        %s616 = scalar_lea.vmem [#allocation8], %s615
        // Predicated region
        $region77: #{tpu_custom_call.1} parent=75 // pred_check
          %p617 = pneg %p78
        $region78: #{tpu_custom_call.1} parent=75 // pred_check_branch
          %619 = sbr.rel (%p617) target = $region80
        $region79: #{tpu_custom_call.1} parent=75 // pred_region
          %620 = dma.done %s613, 128
        $region80: #{tpu_custom_call.1} parent=75 // pred_fallthru
          _
        // Predicated region
        $region81: #{tpu_custom_call.1} parent=75 // pred_check
          %p621 = pneg %p99
        $region82: #{tpu_custom_call.1} parent=75 // pred_check_branch
          %623 = sbr.rel (%p621) target = $region84
        $region83: #{tpu_custom_call.1} parent=75 // pred_region
          %624 = dma.done [#allocation12], 16
        $region84: #{tpu_custom_call.1} parent=75 // pred_fallthru
          _
        // Predicated region
        $region85: #{tpu_custom_call.1} parent=75 // pred_check
          %p625 = pneg %p120
        $region86: #{tpu_custom_call.1} parent=75 // pred_check_branch
          %627 = sbr.rel (%p625) target = $region88
        $region87: #{tpu_custom_call.1} parent=75 // pred_region
          %628 = dma.done [#allocation12], 256
        $region88: #{tpu_custom_call.1} parent=75 // pred_fallthru
          _
        // Predicated region
        $region89: #{tpu_custom_call.1} parent=75 // pred_check
          %p629 = pneg %p141
        $region90: #{tpu_custom_call.1} parent=75 // pred_check_branch
          %631 = sbr.rel (%p629) target = $region92
        $region91: #{tpu_custom_call.1} parent=75 // pred_region
          %632 = dma.done [#allocation15], 256
        $region92: #{tpu_custom_call.1} parent=75 // pred_fallthru
          _
        // Predicated region
        $region93: #{tpu_custom_call.1} parent=75 // pred_check
          %p633 = pneg %p162
        $region94: #{tpu_custom_call.1} parent=75 // pred_check_branch
          %635 = sbr.rel (%p633) target = $region96
        $region95: #{tpu_custom_call.1} parent=75 // pred_region
          %636 = dma.done [#allocation15], 64
        $region96: #{tpu_custom_call.1} parent=75 // pred_fallthru
          _
        // Predicated region
        $region97: #{tpu_custom_call.1} parent=75 // pred_check
          %p637 = pneg %p183
        $region98: #{tpu_custom_call.1} parent=75 // pred_check_branch
          %639 = sbr.rel (%p637) target = $region100
        $region99: #{tpu_custom_call.1} parent=75 // pred_region
          %640 = dma.done [#allocation18], 16
        $region100: #{tpu_custom_call.1} parent=75 // pred_fallthru
          _
        // Predicated region
        $region101: #{tpu_custom_call.1} parent=75 // pred_check
          %p641 = pneg %p204
        $region102: #{tpu_custom_call.1} parent=75 // pred_check_branch
          %643 = sbr.rel (%p641) target = $region104
        $region103: #{tpu_custom_call.1} parent=75 // pred_region
          %644 = dma.done [#allocation18], 512
        $region104: #{tpu_custom_call.1} parent=75 // pred_fallthru
          _
        // Predicated region
        $region105: #{tpu_custom_call.1} parent=75 // pred_check
          %p645 = pneg %p225
        $region106: #{tpu_custom_call.1} parent=75 // pred_check_branch
          %647 = sbr.rel (%p645) target = $region108
        $region107: #{tpu_custom_call.1} parent=75 // pred_region
          %648 = dma.done [#allocation21], 512
        $region108: #{tpu_custom_call.1} parent=75 // pred_fallthru
          _
        // Predicated region
        $region109: #{tpu_custom_call.1} parent=75 // pred_check
          %p649 = pneg %p246
        $region110: #{tpu_custom_call.1} parent=75 // pred_check_branch
          %651 = sbr.rel (%p649) target = $region112
        $region111: #{tpu_custom_call.1} parent=75 // pred_region
          %652 = dma.done [#allocation21], 512
        $region112: #{tpu_custom_call.1} parent=75 // pred_fallthru
          _
        // Predicated region
        $region113: #{tpu_custom_call.1} parent=75 // pred_check
          %p653 = pneg %p267
        $region114: #{tpu_custom_call.1} parent=75 // pred_check_branch
          %655 = sbr.rel (%p653) target = $region116
        $region115: #{tpu_custom_call.1} parent=75 // pred_region
          %656 = dma.done [#allocation24], 1024
        $region116: #{tpu_custom_call.1} parent=75 // pred_fallthru
          _
        // Predicated region
        $region117: #{tpu_custom_call.1} parent=75 // pred_check
          %p657 = pneg %p288
        $region118: #{tpu_custom_call.1} parent=75 // pred_check_branch
          %659 = sbr.rel (%p657) target = $region120
        $region119: #{tpu_custom_call.1} parent=75 // pred_region
          %660 = dma.done [#allocation24], 16
        $region120: #{tpu_custom_call.1} parent=75 // pred_fallthru
          _
        // Predicated region
        $region121: #{tpu_custom_call.1} parent=75 // pred_check
          %p661 = pneg %p309
        $region122: #{tpu_custom_call.1} parent=75 // pred_check_branch
          %663 = sbr.rel (%p661) target = $region124
        $region123: #{tpu_custom_call.1} parent=75 // pred_region
          %664 = dma.done [#allocation27], 256
        $region124: #{tpu_custom_call.1} parent=75 // pred_fallthru
          _
        // Predicated region
        $region125: #{tpu_custom_call.1} parent=75 // pred_check
          %p665 = pneg %p330
        $region126: #{tpu_custom_call.1} parent=75 // pred_check_branch
          %667 = sbr.rel (%p665) target = $region128
        $region127: #{tpu_custom_call.1} parent=75 // pred_region
          %668 = dma.done [#allocation27], 16
        $region128: #{tpu_custom_call.1} parent=75 // pred_fallthru
          _
        // Predicated region
        $region129: #{tpu_custom_call.1} parent=75 // pred_check
          %p669 = pneg %p351
        $region130: #{tpu_custom_call.1} parent=75 // pred_check_branch
          %671 = sbr.rel (%p669) target = $region132
        $region131: #{tpu_custom_call.1} parent=75 // pred_region
          %672 = dma.done [#allocation30], 512
        $region132: #{tpu_custom_call.1} parent=75 // pred_fallthru
          _
        %s673 = sand.u32 %s65, 1
        %s674 = scalar_lea.sflag [#allocation9], %s673
        %s675 = sand.u32 %s65, 1
        %s676 = smul.addr %s675, 8
        %s677 = scalar_lea.vmem [#allocation8], %s676
        %p678 = pneg %p78
        %p679 = pneg %p75
        %p680 = pneg %p99
        %p681 = pneg %p96
        %p682 = pneg %p120
        %p683 = pneg %p117
        %p684 = pneg %p141
        %p685 = pneg %p138
        %p686 = pneg %p162
        %p687 = pneg %p159
        %p688 = pneg %p183
        %p689 = pneg %p180
        %p690 = pneg %p204
        %p691 = pneg %p201
        %p692 = pneg %p225
        %p693 = pneg %p222
        %p694 = pneg %p246
        %p695 = pneg %p243
        %p696 = pneg %p267
        %p697 = pneg %p264
        %p698 = pneg %p288
        %p699 = pneg %p285
        %p700 = pneg %p309
        %p701 = pneg %p306
        %p702 = pneg %p330
        %p703 = pneg %p327
        %p704 = pneg %p351
        %p705 = pneg %p348
        %p706 = pneg %p379
        %p707 = pneg %p376
        %s708 = sand.u32 %s366, 1
        %s709 = scalar_lea.sflag [#allocation10], %s708
        %s710 = sand.u32 %s366, 1
        %s711 = smul.addr %s710, 8
        %s712 = scalar_lea.vmem [#allocation31], %s711
        %p713 = pneg %p407
        %p714 = pneg %p404
        %s715 = sand.u32 %s394, 1
        %s716 = scalar_lea.sflag [#allocation33], %s715
        %s717 = sand.u32 %s394, 1
        %s718 = smul.addr %s717, 8
        %s719 = scalar_lea.vmem [#allocation32], %s718
        %v721 = vld [vmem:[%s616] sm:$0xff]
        %vm722 = vcmask 261120
        %723 = vst.msk [vmem:[%s719] sm:$0xff] %vm722, %v721
        %v724 = vmul.f32 %v721, %v721
        %v725 = vsel %vm722, %v724, 0.0
        %726 = vadd.xlane.f32.xlu0 %v725
        %v727 = vpop.xlane.xlu0 %726
        %v728 = vrcp.pop 32.0
        %v729 = vmul.f32 %v727, %v728
        %v730 = vadd.f32 %v729, 1e-05
        %v731 = vrsqrt.pop %v730
        %v732 = vmul.f32 %v721, %v731
        %v733 = vld [vmem:[#allocation11] sm:$0x1]
        %v735 = vlaneseq
        %v736 = vshrl.u32 %v735, 7
        %v737 = vsub.s32 0, %v736
        %v738 = vrot.slane %v733, %v737
        %v740 = vmul.f32 %v732, %v738
        %v741 = vpack.c.bf16 %v740, %v740
        %v742 = vld [vmem:[#allocation13] sm:$0xf]
        %v743 = vld [vmem:[#allocation13 + $0x4] sm:$0xf]
        %v744 = vld [vmem:[#allocation13 + $0x8] sm:$0xf]
        %v745 = vld [vmem:[#allocation13 + $0xc] sm:$0xf]
        %v750 = vunpack.c.l.b16 %v742
        %v751 = vunpack.c.l.b16 %v743
        %v752 = vunpack.c.l.b16 %v744
        %v753 = vunpack.c.l.b16 %v745
        %v754 = vpack.c.b16 %v751, %v750
        %v755 = vpack.c.b16 %v753, %v752
        %v759 = vsel %vm722, %v741, 0
        %761 = vmatprep.subr.bf16.mxu0 0
        %762 = vmatpush1.bf16.msra.mxu0 %v754
        %763 = vmatprep.subr.bf16.mxu0 0
        %764 = vmatpush1.bf16.msra.mxu0 %v755
        %765 = vmatprep.subr.bf16.mxu0 0
        %766 = vmatpush1.bf16.msra.mxu0 0
        %767 = vmatprep.subr.bf16.mxu0 0
        %768 = vmatpush1.bf16.msra.mxu0 0
        %769 = vmatprep.subr.bf16.mxu0 0
        %770 = vmatpush1.bf16.msra.mxu0 0
        %771 = vmatprep.subr.bf16.mxu0 0
        %772 = vmatpush1.bf16.msra.mxu0 0
        %773 = vmatprep.subr.bf16.mxu0 0
        %774 = vmatpush1.bf16.msra.mxu0 0
        %775 = vmatprep.subr.bf16.mxu0 0
        %776 = vmatpush1.bf16.msra.mxu0 0
        %777 = vmatprep.subr.bf16.mxu0 0
        %778 = vmatpush1.bf16.msra.mxu0 0
        %779 = vmatprep.subr.bf16.mxu0 0
        %780 = vmatpush1.bf16.msra.mxu0 0
        %781 = vmatprep.subr.bf16.mxu0 0
        %782 = vmatpush1.bf16.msra.mxu0 0
        %783 = vmatprep.subr.bf16.mxu0 0
        %784 = vmatpush1.bf16.msra.mxu0 0
        %785 = vmatprep.subr.bf16.mxu0 0
        %786 = vmatpush1.bf16.msra.mxu0 0
        %787 = vmatprep.subr.bf16.mxu0 0
        %788 = vmatpush1.bf16.msra.mxu0 0
        %789 = vmatprep.subr.bf16.mxu0 0
        %790 = vmatpush1.bf16.msra.mxu0 0
        %791 = vmatprep.subr.bf16.mxu0 0
        %792 = vmatpush1.bf16.msra.mxu0 0
        %793 = vmatprep.mubr.bf16.mxu0 0
        %794 = vmatmul.mubr.bf16.gmra.mrb[0].mxu0 %v759
        %v795 = vpop.f32.mrb[0].mxu0
        %v796 = vadd.f32 0.0, %v795
        %v797 = vpop.f32.mrb[0].mxu0
        %v798 = vpop.f32.mrb[0].mxu0
        %v799 = vpop.f32.mrb[0].mxu0
        %800 = vdwg.mxu0
        %v801 = vld [vmem:[#allocation14] sm:$0xf]
        %v802 = vld [vmem:[#allocation14 + $0x4] sm:$0xf]
        %v803 = vld [vmem:[#allocation14 + $0x8] sm:$0xf]
        %v804 = vld [vmem:[#allocation14 + $0xc] sm:$0xf]
        %v809 = vunpack.c.l.b16 %v801
        %v810 = vunpack.c.l.b16 %v802
        %v811 = vunpack.c.l.b16 %v803
        %v812 = vunpack.c.l.b16 %v804
        %v813 = vpack.c.b16 %v810, %v809
        %v814 = vpack.c.b16 %v812, %v811
        %817 = vmatprep.subr.bf16.mxu0 0
        %818 = vmatpush1.bf16.msra.mxu0 %v813
        %819 = vmatprep.subr.bf16.mxu0 0
        %820 = vmatpush1.bf16.msra.mxu0 %v814
        %821 = vmatprep.subr.bf16.mxu0 0
        %822 = vmatpush1.bf16.msra.mxu0 0
        %823 = vmatprep.subr.bf16.mxu0 0
        %824 = vmatpush1.bf16.msra.mxu0 0
        %825 = vmatprep.subr.bf16.mxu0 0
        %826 = vmatpush1.bf16.msra.mxu0 0
        %827 = vmatprep.subr.bf16.mxu0 0
        %828 = vmatpush1.bf16.msra.mxu0 0
        %829 = vmatprep.subr.bf16.mxu0 0
        %830 = vmatpush1.bf16.msra.mxu0 0
        %831 = vmatprep.subr.bf16.mxu0 0
        %832 = vmatpush1.bf16.msra.mxu0 0
        %833 = vmatprep.subr.bf16.mxu0 0
        %834 = vmatpush1.bf16.msra.mxu0 0
        %835 = vmatprep.subr.bf16.mxu0 0
        %836 = vmatpush1.bf16.msra.mxu0 0
        %837 = vmatprep.subr.bf16.mxu0 0
        %838 = vmatpush1.bf16.msra.mxu0 0
        %839 = vmatprep.subr.bf16.mxu0 0
        %840 = vmatpush1.bf16.msra.mxu0 0
        %841 = vmatprep.subr.bf16.mxu0 0
        %842 = vmatpush1.bf16.msra.mxu0 0
        %843 = vmatprep.subr.bf16.mxu0 0
        %844 = vmatpush1.bf16.msra.mxu0 0
        %845 = vmatprep.subr.bf16.mxu0 0
        %846 = vmatpush1.bf16.msra.mxu0 0
        %847 = vmatprep.subr.bf16.mxu0 0
        %848 = vmatpush1.bf16.msra.mxu0 0
        %849 = vmatprep.mubr.bf16.mxu0 0
        %850 = vmatmul.mubr.bf16.gmra.mrb[0].mxu0 %v759
        %v851 = vpop.f32.mrb[0].mxu0
        %v852 = vadd.f32 0.0, %v851
        %v853 = vpop.f32.mrb[0].mxu0
        %v854 = vpop.f32.mrb[0].mxu0
        %v855 = vpop.f32.mrb[0].mxu0
        %856 = vdwg.mxu0
        %p857 = scmp.eq.s32.totalorder %s48, 0
        // Predicated region
        $region133: #{tpu_custom_call.1} parent=75 // pred_check
          %p858 = pneg %p857
        $region134: #{tpu_custom_call.1} parent=75 // pred_check_branch
          %860 = sbr.rel (%p858) target = $region136
        $region135: #{tpu_custom_call.1} parent=75 // pred_region
          %vm861 = vcmask 518144
          %862 = vst.msk [vmem:[#allocation2] sm:$0x7] %vm861, 0.0
        $region136: #{tpu_custom_call.1} parent=75 // pred_fallthru
          _
        %vm863 = vcmask 523264
        %864 = vst.msk [vmem:[#allocation2 + $0x3] sm:$0xff] %vm863, %v796
        %v865 = vld [vmem:[#allocation17] sm:$0x1]
        %v867 = vlaneseq
        %v868 = vshrl.u32 %v867, 7
        %v869 = vsub.s32 0, %v868
        %v870 = vrot.slane %v865, %v869
        %v872 = vadd.f32 %v870, 0.0
        %v873 = vld [vmem:[#allocation2] sm:$0xff]
        %v874 = vld [vmem:[#allocation16] sm:$0x1]
        %v875 = vlaneseq
        %v876 = vshrl.u32 %v875, 7
        %v877 = vsub.s32 0, %v876
        %v878 = vrot.slane %v874, %v877
        %v879 = vmul.f32 %v873, %v878
        %v880 = vadd.f32 %v872, %v879
        %v881 = vld [vmem:[#allocation2 + $0x1] sm:$0xff]
        %v882 = vld [vmem:[#allocation16 + $0x1] sm:$0x1]
        %v883 = vlaneseq
        %v884 = vshrl.u32 %v883, 7
        %v885 = vsub.s32 0, %v884
        %v886 = vrot.slane %v882, %v885
        %v887 = vmul.f32 %v881, %v886
        %v888 = vadd.f32 %v880, %v887
        %v889 = vld [vmem:[#allocation2 + $0x2] sm:$0xff]
        %v890 = vld [vmem:[#allocation16 + $0x2] sm:$0x1]
        %v891 = vlaneseq
        %v892 = vshrl.u32 %v891, 7
        %v893 = vsub.s32 0, %v892
        %v894 = vrot.slane %v890, %v893
        %v895 = vmul.f32 %v889, %v894
        %v896 = vadd.f32 %v888, %v895
        %v897 = vld [vmem:[#allocation2 + $0x3] sm:$0xff]
        %v898 = vld [vmem:[#allocation16 + $0x3] sm:$0x1]
        %v899 = vlaneseq
        %v900 = vshrl.u32 %v899, 7
        %v901 = vsub.s32 0, %v900
        %v902 = vrot.slane %v898, %v901
        %v903 = vmul.f32 %v897, %v902
        %v904 = vadd.f32 %v896, %v903
        %v905 = vld [vmem:[#allocation2 + $0x8] sm:$0x7]
        %vm906 = vcmask 518144
        %907 = vst.msk [vmem:[#allocation2] sm:$0x7] %vm906, %v905
        %v908 = vxor.u32 %v904, 2147483648
        %v909 = vmul.f32 %v908, 1.442695
        %v910 = vpow.pop %v909
        %v911 = vadd.f32 %v910, 1.0
        %v912 = vrcp.pop %v911
        %v913 = vmul.f32 1.0, %v912
        %v914 = vmul.f32 %v904, %v913
        %v915 = vpack.c.bf16 %v914, %v914
        %v916 = vld [vmem:[#allocation19] sm:$0xf]
        %v917 = vld [vmem:[#allocation19 + $0x4] sm:$0xf]
        %v918 = vld [vmem:[#allocation19 + $0x8] sm:$0xf]
        %v919 = vld [vmem:[#allocation19 + $0xc] sm:$0xf]
        %v920 = vld [vmem:[#allocation19 + $0x10] sm:$0xf]
        %v921 = vld [vmem:[#allocation19 + $0x14] sm:$0xf]
        %v922 = vld [vmem:[#allocation19 + $0x18] sm:$0xf]
        %v923 = vld [vmem:[#allocation19 + $0x1c] sm:$0xf]
        %v932 = vunpack.c.l.b16 %v916
        %v933 = vunpack.c.l.b16 %v917
        %v934 = vunpack.c.l.b16 %v918
        %v935 = vunpack.c.l.b16 %v919
        %v936 = vunpack.c.l.b16 %v920
        %v937 = vunpack.c.l.b16 %v921
        %v938 = vunpack.c.l.b16 %v922
        %v939 = vunpack.c.l.b16 %v923
        %v940 = vpack.c.b16 %v933, %v932
        %v941 = vpack.c.b16 %v935, %v934
        %v942 = vpack.c.b16 %v937, %v936
        %v943 = vpack.c.b16 %v939, %v938
        %v949 = vsel %vm863, %v915, 0
        %951 = vmatprep.subr.bf16.mxu0 0
        %952 = vmatpush1.bf16.msra.mxu0 %v940
        %953 = vmatprep.subr.bf16.mxu0 0
        %954 = vmatpush1.bf16.msra.mxu0 %v941
        %955 = vmatprep.subr.bf16.mxu0 0
        %956 = vmatpush1.bf16.msra.mxu0 %v942
        %957 = vmatprep.subr.bf16.mxu0 0
        %958 = vmatpush1.bf16.msra.mxu0 %v943
        %959 = vmatprep.subr.bf16.mxu0 0
        %960 = vmatpush1.bf16.msra.mxu0 0
        %961 = vmatprep.subr.bf16.mxu0 0
        %962 = vmatpush1.bf16.msra.mxu0 0
        %963 = vmatprep.subr.bf16.mxu0 0
        %964 = vmatpush1.bf16.msra.mxu0 0
        %965 = vmatprep.subr.bf16.mxu0 0
        %966 = vmatpush1.bf16.msra.mxu0 0
        %967 = vmatprep.subr.bf16.mxu0 0
        %968 = vmatpush1.bf16.msra.mxu0 0
        %969 = vmatprep.subr.bf16.mxu0 0
        %970 = vmatpush1.bf16.msra.mxu0 0
        %971 = vmatprep.subr.bf16.mxu0 0
        %972 = vmatpush1.bf16.msra.mxu0 0
        %973 = vmatprep.subr.bf16.mxu0 0
        %974 = vmatpush1.bf16.msra.mxu0 0
        %975 = vmatprep.subr.bf16.mxu0 0
        %976 = vmatpush1.bf16.msra.mxu0 0
        %977 = vmatprep.subr.bf16.mxu0 0
        %978 = vmatpush1.bf16.msra.mxu0 0
        %979 = vmatprep.subr.bf16.mxu0 0
        %980 = vmatpush1.bf16.msra.mxu0 0
        %981 = vmatprep.subr.bf16.mxu0 0
        %982 = vmatpush1.bf16.msra.mxu0 0
        %983 = vmatprep.mubr.bf16.mxu0 0
        %984 = vmatmul.mubr.bf16.gmra.mrb[0].mxu0 %v949
        %v985 = vpop.f32.mrb[0].mxu0
        %v986 = vadd.f32 0.0, %v985
        %v987 = vpop.f32.mrb[0].mxu0
        %v988 = vpop.f32.mrb[0].mxu0
        %v989 = vpop.f32.mrb[0].mxu0
        %990 = vdwg.mxu0
        %v991 = vld [vmem:[#allocation20] sm:$0xf]
        %v992 = vld [vmem:[#allocation20 + $0x4] sm:$0xf]
        %v993 = vld [vmem:[#allocation20 + $0x8] sm:$0xf]
        %v994 = vld [vmem:[#allocation20 + $0xc] sm:$0xf]
        %v995 = vld [vmem:[#allocation20 + $0x10] sm:$0xf]
        %v996 = vld [vmem:[#allocation20 + $0x14] sm:$0xf]
        %v997 = vld [vmem:[#allocation20 + $0x18] sm:$0xf]
        %v998 = vld [vmem:[#allocation20 + $0x1c] sm:$0xf]
        %v1007 = vunpack.c.l.b16 %v991
        %v1008 = vunpack.c.l.b16 %v992
        %v1009 = vunpack.c.l.b16 %v993
        %v1010 = vunpack.c.l.b16 %v994
        %v1011 = vunpack.c.l.b16 %v995
        %v1012 = vunpack.c.l.b16 %v996
        %v1013 = vunpack.c.l.b16 %v997
        %v1014 = vunpack.c.l.b16 %v998
        %v1015 = vpack.c.b16 %v1008, %v1007
        %v1016 = vpack.c.b16 %v1010, %v1009
        %v1017 = vpack.c.b16 %v1012, %v1011
        %v1018 = vpack.c.b16 %v1014, %v1013
        %1023 = vmatprep.subr.bf16.mxu0 0
        %1024 = vmatpush1.bf16.msra.mxu0 %v1015
        %1025 = vmatprep.subr.bf16.mxu0 0
        %1026 = vmatpush1.bf16.msra.mxu0 %v1016
        %1027 = vmatprep.subr.bf16.mxu0 0
        %1028 = vmatpush1.bf16.msra.mxu0 %v1017
        %1029 = vmatprep.subr.bf16.mxu0 0
        %1030 = vmatpush1.bf16.msra.mxu0 %v1018
        %1031 = vmatprep.subr.bf16.mxu0 0
        %1032 = vmatpush1.bf16.msra.mxu0 0
        %1033 = vmatprep.subr.bf16.mxu0 0
        %1034 = vmatpush1.bf16.msra.mxu0 0
        %1035 = vmatprep.subr.bf16.mxu0 0
        %1036 = vmatpush1.bf16.msra.mxu0 0
        %1037 = vmatprep.subr.bf16.mxu0 0
        %1038 = vmatpush1.bf16.msra.mxu0 0
        %1039 = vmatprep.subr.bf16.mxu0 0
        %1040 = vmatpush1.bf16.msra.mxu0 0
        %1041 = vmatprep.subr.bf16.mxu0 0
        %1042 = vmatpush1.bf16.msra.mxu0 0
        %1043 = vmatprep.subr.bf16.mxu0 0
        %1044 = vmatpush1.bf16.msra.mxu0 0
        %1045 = vmatprep.subr.bf16.mxu0 0
        %1046 = vmatpush1.bf16.msra.mxu0 0
        %1047 = vmatprep.subr.bf16.mxu0 0
        %1048 = vmatpush1.bf16.msra.mxu0 0
        %1049 = vmatprep.subr.bf16.mxu0 0
        %1050 = vmatpush1.bf16.msra.mxu0 0
        %1051 = vmatprep.subr.bf16.mxu0 0
        %1052 = vmatpush1.bf16.msra.mxu0 0
        %1053 = vmatprep.subr.bf16.mxu0 0
        %1054 = vmatpush1.bf16.msra.mxu0 0
        %1055 = vmatprep.mubr.bf16.mxu0 0
        %1056 = vmatmul.mubr.bf16.gmra.mrb[0].mxu0 %v949
        %v1057 = vpop.f32.mrb[0].mxu0
        %v1058 = vadd.f32 0.0, %v1057
        %v1059 = vpop.f32.mrb[0].mxu0
        %v1060 = vpop.f32.mrb[0].mxu0
        %v1061 = vpop.f32.mrb[0].mxu0
        %1062 = vdwg.mxu0
        %v1063 = vld [vmem:[#allocation22] sm:$0xf]
        %v1064 = vld [vmem:[#allocation22 + $0x4] sm:$0xf]
        %v1065 = vld [vmem:[#allocation22 + $0x8] sm:$0xf]
        %v1066 = vld [vmem:[#allocation22 + $0xc] sm:$0xf]
        %v1067 = vld [vmem:[#allocation22 + $0x10] sm:$0xf]
        %v1068 = vld [vmem:[#allocation22 + $0x14] sm:$0xf]
        %v1069 = vld [vmem:[#allocation22 + $0x18] sm:$0xf]
        %v1070 = vld [vmem:[#allocation22 + $0x1c] sm:$0xf]
        %v1079 = vunpack.c.l.b16 %v1063
        %v1080 = vunpack.c.l.b16 %v1064
        %v1081 = vunpack.c.l.b16 %v1065
        %v1082 = vunpack.c.l.b16 %v1066
        %v1083 = vunpack.c.l.b16 %v1067
        %v1084 = vunpack.c.l.b16 %v1068
        %v1085 = vunpack.c.l.b16 %v1069
        %v1086 = vunpack.c.l.b16 %v1070
        %v1087 = vpack.c.b16 %v1080, %v1079
        %v1088 = vpack.c.b16 %v1082, %v1081
        %v1089 = vpack.c.b16 %v1084, %v1083
        %v1090 = vpack.c.b16 %v1086, %v1085
        %1095 = vmatprep.subr.bf16.mxu0 0
        %1096 = vmatpush1.bf16.msra.mxu0 %v1087
        %1097 = vmatprep.subr.bf16.mxu0 0
        %1098 = vmatpush1.bf16.msra.mxu0 %v1088
        %1099 = vmatprep.subr.bf16.mxu0 0
        %1100 = vmatpush1.bf16.msra.mxu0 %v1089
        %1101 = vmatprep.subr.bf16.mxu0 0
        %1102 = vmatpush1.bf16.msra.mxu0 %v1090
        %1103 = vmatprep.subr.bf16.mxu0 0
        %1104 = vmatpush1.bf16.msra.mxu0 0
        %1105 = vmatprep.subr.bf16.mxu0 0
        %1106 = vmatpush1.bf16.msra.mxu0 0
        %1107 = vmatprep.subr.bf16.mxu0 0
        %1108 = vmatpush1.bf16.msra.mxu0 0
        %1109 = vmatprep.subr.bf16.mxu0 0
        %1110 = vmatpush1.bf16.msra.mxu0 0
        %1111 = vmatprep.subr.bf16.mxu0 0
        %1112 = vmatpush1.bf16.msra.mxu0 0
        %1113 = vmatprep.subr.bf16.mxu0 0
        %1114 = vmatpush1.bf16.msra.mxu0 0
        %1115 = vmatprep.subr.bf16.mxu0 0
        %1116 = vmatpush1.bf16.msra.mxu0 0
        %1117 = vmatprep.subr.bf16.mxu0 0
        %1118 = vmatpush1.bf16.msra.mxu0 0
        %1119 = vmatprep.subr.bf16.mxu0 0
        %1120 = vmatpush1.bf16.msra.mxu0 0
        %1121 = vmatprep.subr.bf16.mxu0 0
        %1122 = vmatpush1.bf16.msra.mxu0 0
        %1123 = vmatprep.subr.bf16.mxu0 0
        %1124 = vmatpush1.bf16.msra.mxu0 0
        %1125 = vmatprep.subr.bf16.mxu0 0
        %1126 = vmatpush1.bf16.msra.mxu0 0
        %1127 = vmatprep.mubr.bf16.mxu0 0
        %1128 = vmatmul.mubr.bf16.gmra.mrb[0].mxu0 %v949
        %v1129 = vpop.f32.mrb[0].mxu0
        %v1130 = vadd.f32 0.0, %v1129
        %v1131 = vpop.f32.mrb[0].mxu0
        %v1132 = vpop.f32.mrb[0].mxu0
        %v1133 = vpop.f32.mrb[0].mxu0
        %1134 = vdwg.mxu0
        %v1135 = vpack.c.bf16 %v986, %v986
        %v1136 = vld [vmem:[#allocation23] sm:$0xf]
        %v1137 = vld [vmem:[#allocation23 + $0x4] sm:$0xf]
        %v1138 = vld [vmem:[#allocation23 + $0x8] sm:$0xf]
        %v1139 = vld [vmem:[#allocation23 + $0xc] sm:$0xf]
        %v1140 = vld [vmem:[#allocation23 + $0x10] sm:$0xf]
        %v1141 = vld [vmem:[#allocation23 + $0x14] sm:$0xf]
        %v1142 = vld [vmem:[#allocation23 + $0x18] sm:$0xf]
        %v1143 = vld [vmem:[#allocation23 + $0x1c] sm:$0xf]
        %v1144 = vld [vmem:[#allocation23 + $0x20] sm:$0xf]
        %v1145 = vld [vmem:[#allocation23 + $0x24] sm:$0xf]
        %v1146 = vld [vmem:[#allocation23 + $0x28] sm:$0xf]
        %v1147 = vld [vmem:[#allocation23 + $0x2c] sm:$0xf]
        %v1148 = vld [vmem:[#allocation23 + $0x30] sm:$0xf]
        %v1149 = vld [vmem:[#allocation23 + $0x34] sm:$0xf]
        %v1150 = vld [vmem:[#allocation23 + $0x38] sm:$0xf]
        %v1151 = vld [vmem:[#allocation23 + $0x3c] sm:$0xf]
        %v1152 = vld [vmem:[#allocation25] sm:$0x1]
        %v1154 = vlaneseq
        %v1155 = vshrl.u32 %v1154, 7
        %v1156 = vsub.s32 0, %v1155
        %v1157 = vrot.slane %v1152, %v1156
        %v1175 = vunpack.c.l.b16 %v1136
        %v1176 = vunpack.c.l.b16 %v1137
        %v1177 = vunpack.c.l.b16 %v1138
        %v1178 = vunpack.c.l.b16 %v1139
        %v1179 = vunpack.c.l.b16 %v1140
        %v1180 = vunpack.c.l.b16 %v1141
        %v1181 = vunpack.c.l.b16 %v1142
        %v1182 = vunpack.c.l.b16 %v1143
        %v1183 = vunpack.c.l.b16 %v1144
        %v1184 = vunpack.c.l.b16 %v1145
        %v1185 = vunpack.c.l.b16 %v1146
        %v1186 = vunpack.c.l.b16 %v1147
        %v1187 = vunpack.c.l.b16 %v1148
        %v1188 = vunpack.c.l.b16 %v1149
        %v1189 = vunpack.c.l.b16 %v1150
        %v1190 = vunpack.c.l.b16 %v1151
        %v1191 = vpack.c.b16 %v1176, %v1175
        %v1192 = vpack.c.b16 %v1178, %v1177
        %v1193 = vpack.c.b16 %v1180, %v1179
        %v1194 = vpack.c.b16 %v1182, %v1181
        %v1195 = vpack.c.b16 %v1184, %v1183
        %v1196 = vpack.c.b16 %v1186, %v1185
        %v1197 = vpack.c.b16 %v1188, %v1187
        %v1198 = vpack.c.b16 %v1190, %v1189
        %1207 = vmatprep.subr.bf16.mxu0 0
        %1208 = vmatpush1.bf16.msra.mxu0 %v1191
        %1209 = vmatprep.subr.bf16.mxu0 0
        %1210 = vmatpush1.bf16.msra.mxu0 %v1192
        %1211 = vmatprep.subr.bf16.mxu0 0
        %1212 = vmatpush1.bf16.msra.mxu0 %v1193
        %1213 = vmatprep.subr.bf16.mxu0 0
        %1214 = vmatpush1.bf16.msra.mxu0 %v1194
        %1215 = vmatprep.subr.bf16.mxu0 0
        %1216 = vmatpush1.bf16.msra.mxu0 %v1195
        %1217 = vmatprep.subr.bf16.mxu0 0
        %1218 = vmatpush1.bf16.msra.mxu0 %v1196
        %1219 = vmatprep.subr.bf16.mxu0 0
        %1220 = vmatpush1.bf16.msra.mxu0 %v1197
        %1221 = vmatprep.subr.bf16.mxu0 0
        %1222 = vmatpush1.bf16.msra.mxu0 %v1198
        %1223 = vmatprep.subr.bf16.mxu0 0
        %1224 = vmatpush1.bf16.msra.mxu0 0
        %1225 = vmatprep.subr.bf16.mxu0 0
        %1226 = vmatpush1.bf16.msra.mxu0 0
        %1227 = vmatprep.subr.bf16.mxu0 0
        %1228 = vmatpush1.bf16.msra.mxu0 0
        %1229 = vmatprep.subr.bf16.mxu0 0
        %1230 = vmatpush1.bf16.msra.mxu0 0
        %1231 = vmatprep.subr.bf16.mxu0 0
        %1232 = vmatpush1.bf16.msra.mxu0 0
        %1233 = vmatprep.subr.bf16.mxu0 0
        %1234 = vmatpush1.bf16.msra.mxu0 0
        %1235 = vmatprep.subr.bf16.mxu0 0
        %1236 = vmatpush1.bf16.msra.mxu0 0
        %1237 = vmatprep.subr.bf16.mxu0 0
        %1238 = vmatpush1.bf16.msra.mxu0 0
        %1239 = vmatprep.mubr.bf16.mxu0 0
        %1240 = vmatmul.mubr.bf16.gmra.mrb[0].mxu0 %v1135
        %v1241 = vpop.f32.mrb[0].mxu0
        %v1242 = vadd.f32 %v1157, %v1241
        %v1243 = vpop.f32.mrb[0].mxu0
        %v1244 = vpop.f32.mrb[0].mxu0
        %v1245 = vpop.f32.mrb[0].mxu0
        %1246 = vdwg.mxu0
        %v1247 = vmax.f32 %v1242, 0.0
        %v1248 = vand.u32 2147483647, %v1242
        %v1249 = vsub.f32 0.0, %v1248
        %v1250 = vmul.f32 %v1249, 1.442695
        %v1251 = vpow.pop %v1250
        %v1252 = vadd.f32 %v1251, 1.0
        %v1253 = vlog2.pop %v1252
        %v1254 = vmul.f32 %v1253, 0.6931472
        %v1255 = vadd.f32 %v1247, %v1254
        %v1256 = vmul.f32 %v1255, %v914
        %vm1257 = vcmask 130048
        %1258 = vst.msk [vmem:[#allocation4] sm:$0xff] %vm1257, %v1130
        // Predicated region
        $region137: #{tpu_custom_call.1} parent=75 // pred_check
          %p1259 = pneg %p857
        $region138: #{tpu_custom_call.1} parent=75 // pred_check_branch
          %1261 = sbr.rel (%p1259) target = $region140
        $region139: #{tpu_custom_call.1} parent=75 // pred_region
          %1262 = vst.msk [vmem:[#allocation3] sm:$0xff] %vm863, 0.0
          %1263 = vst.msk [vmem:[#allocation3 + $0x8] sm:$0xff] %vm863, 0.0
        $region140: #{tpu_custom_call.1} parent=75 // pred_fallthru
          _
        %v1264 = vld [vmem:[#allocation26] sm:$0xff]
        %v1265 = vld [vmem:[#allocation26 + $0x8] sm:$0xff]
        %v1267 = vcombine.high %v1255, %v1255
        %v1269 = vunpack.c.l.s4 1966171168
        %v1270 = vunpack.c.0.s8 %v1269
        %v1271 = vlaneseq
        %v1272 = vshrl.u32 %v1271, 7
        %v1273 = vsub.s32 %v1270, %v1272
        %v1274 = vrot.slane %v1255, %v1273
        %v1276 = vunpack.c.l.s4 1966171168
        %v1277 = vunpack.c.0.s8 %v1276
        %v1278 = vlaneseq
        %v1279 = vshrl.u32 %v1278, 7
        %v1280 = vsub.s32 %v1277, %v1279
        %v1281 = vrot.slane %v1267, %v1280
        %v1282 = vcombine.high %v1274, %v1274
        %v1283 = vcombine.high %v1281, %v1281
        %v1285 = vunpack.c.l.s4 1966171168
        %v1286 = vunpack.c.0.s8 %v1285
        %v1287 = vlaneseq
        %v1288 = vshrl.u32 %v1287, 7
        %v1289 = vsub.s32 %v1286, %v1288
        %v1290 = vrot.slane %v1274, %v1289
        %v1292 = vunpack.c.l.s4 1966171168
        %v1293 = vunpack.c.0.s8 %v1292
        %v1294 = vlaneseq
        %v1295 = vshrl.u32 %v1294, 7
        %v1296 = vsub.s32 %v1293, %v1295
        %v1297 = vrot.slane %v1281, %v1296
        %v1299 = vunpack.c.l.s4 1966171168
        %v1300 = vunpack.c.0.s8 %v1299
        %v1301 = vlaneseq
        %v1302 = vshrl.u32 %v1301, 7
        %v1303 = vsub.s32 %v1300, %v1302
        %v1304 = vrot.slane %v1282, %v1303
        %v1306 = vunpack.c.l.s4 1966171168
        %v1307 = vunpack.c.0.s8 %v1306
        %v1308 = vlaneseq
        %v1309 = vshrl.u32 %v1308, 7
        %v1310 = vsub.s32 %v1307, %v1309
        %v1311 = vrot.slane %v1283, %v1310
        %v1312 = vcombine.high %v1290, %v1290
        %v1313 = vcombine.high %v1297, %v1297
        %v1314 = vcombine.high %v1304, %v1304
        %v1315 = vcombine.high %v1311, %v1311
        %v1316 = vlaneseq
        %v1317 = vshrl.u32 %v1316, 7
        %v1318 = vsub.s32 0, %v1317
        %v1319 = vrot.slane %v1290, %v1318
        %v1320 = vlaneseq
        %v1321 = vshrl.u32 %v1320, 7
        %v1322 = vsub.s32 0, %v1321
        %v1323 = vrot.slane %v1304, %v1322
        %v1324 = vlaneseq
        %v1325 = vshrl.u32 %v1324, 7
        %v1326 = vsub.s32 0, %v1325
        %v1327 = vrot.slane %v1312, %v1326
        %v1328 = vlaneseq
        %v1329 = vshrl.u32 %v1328, 7
        %v1330 = vsub.s32 0, %v1329
        %v1331 = vrot.slane %v1314, %v1330
        %v1332 = vlaneseq
        %v1333 = vshrl.u32 %v1332, 7
        %v1334 = vsub.s32 0, %v1333
        %v1335 = vrot.slane %v1297, %v1334
        %v1336 = vlaneseq
        %v1337 = vshrl.u32 %v1336, 7
        %v1338 = vsub.s32 0, %v1337
        %v1339 = vrot.slane %v1311, %v1338
        %v1340 = vlaneseq
        %v1341 = vshrl.u32 %v1340, 7
        %v1342 = vsub.s32 0, %v1341
        %v1343 = vrot.slane %v1313, %v1342
        %v1344 = vlaneseq
        %v1345 = vshrl.u32 %v1344, 7
        %v1346 = vsub.s32 0, %v1345
        %v1347 = vrot.slane %v1315, %v1346
        %v1356 = vmul.f32 %v1319, %v1264
        %v1357 = vmul.f32 %v1319, %v1265
        %v1358 = vmul.f32 %v1323, %v1264
        %v1359 = vmul.f32 %v1323, %v1265
        %v1360 = vmul.f32 %v1327, %v1264
        %v1361 = vmul.f32 %v1327, %v1265
        %v1362 = vmul.f32 %v1331, %v1264
        %v1363 = vmul.f32 %v1331, %v1265
        %v1364 = vmul.f32 %v1335, %v1264
        %v1365 = vmul.f32 %v1335, %v1265
        %v1366 = vmul.f32 %v1339, %v1264
        %v1367 = vmul.f32 %v1339, %v1265
        %v1368 = vmul.f32 %v1343, %v1264
        %v1369 = vmul.f32 %v1343, %v1265
        %v1370 = vmul.f32 %v1347, %v1264
        %v1371 = vmul.f32 %v1347, %v1265
        %v1372 = vmul.f32 %v1356, 1.442695
        %v1373 = vpow.pop %v1372
        %v1374 = vmul.f32 %v1357, 1.442695
        %v1375 = vpow.pop %v1374
        %v1376 = vmul.f32 %v1358, 1.442695
        %v1377 = vpow.pop %v1376
        %v1378 = vmul.f32 %v1359, 1.442695
        %v1379 = vpow.pop %v1378
        %v1380 = vmul.f32 %v1360, 1.442695
        %v1381 = vpow.pop %v1380
        %v1382 = vmul.f32 %v1361, 1.442695
        %v1383 = vpow.pop %v1382
        %v1384 = vmul.f32 %v1362, 1.442695
        %v1385 = vpow.pop %v1384
        %v1386 = vmul.f32 %v1363, 1.442695
        %v1387 = vpow.pop %v1386
        %v1388 = vmul.f32 %v1364, 1.442695
        %v1389 = vpow.pop %v1388
        %v1390 = vmul.f32 %v1365, 1.442695
        %v1391 = vpow.pop %v1390
        %v1392 = vmul.f32 %v1366, 1.442695
        %v1393 = vpow.pop %v1392
        %v1394 = vmul.f32 %v1367, 1.442695
        %v1395 = vpow.pop %v1394
        %v1396 = vmul.f32 %v1368, 1.442695
        %v1397 = vpow.pop %v1396
        %v1398 = vmul.f32 %v1369, 1.442695
        %v1399 = vpow.pop %v1398
        %v1400 = vmul.f32 %v1370, 1.442695
        %v1401 = vpow.pop %v1400
        %v1402 = vmul.f32 %v1371, 1.442695
        %v1403 = vpow.pop %v1402
        %1404 = vst.msk [vmem:[#allocation6] sm:$0xff] %vm863, %v1373
        %1405 = vst.msk [vmem:[#allocation6 + $0x8] sm:$0xff] %vm863, %v1375
        %1406 = vst.msk [vmem:[#allocation6 + $0x10] sm:$0xff] %vm863, %v1377
        %1407 = vst.msk [vmem:[#allocation6 + $0x18] sm:$0xff] %vm863, %v1379
        %1408 = vst.msk [vmem:[#allocation6 + $0x20] sm:$0xff] %vm863, %v1381
        %1409 = vst.msk [vmem:[#allocation6 + $0x28] sm:$0xff] %vm863, %v1383
        %1410 = vst.msk [vmem:[#allocation6 + $0x30] sm:$0xff] %vm863, %v1385
        %1411 = vst.msk [vmem:[#allocation6 + $0x38] sm:$0xff] %vm863, %v1387
        %1412 = vst.msk [vmem:[#allocation6 + $0x40] sm:$0xff] %vm863, %v1389
        %1413 = vst.msk [vmem:[#allocation6 + $0x48] sm:$0xff] %vm863, %v1391
        %1414 = vst.msk [vmem:[#allocation6 + $0x50] sm:$0xff] %vm863, %v1393
        %1415 = vst.msk [vmem:[#allocation6 + $0x58] sm:$0xff] %vm863, %v1395
        %1416 = vst.msk [vmem:[#allocation6 + $0x60] sm:$0xff] %vm863, %v1397
        %1417 = vst.msk [vmem:[#allocation6 + $0x68] sm:$0xff] %vm863, %v1399
        %1418 = vst.msk [vmem:[#allocation6 + $0x70] sm:$0xff] %vm863, %v1401
        %1419 = vst.msk [vmem:[#allocation6 + $0x78] sm:$0xff] %vm863, %v1403
        %v1420 = vlaneseq
        %v1421 = vshrl.u32 %v1420, 7
        %v1422 = vsub.s32 0, %v1421
        %v1423 = vrot.slane %v1058, %v1422
        %1425 = vbcast.lane.b32.xlu0 %v1423, 256
        %v1426 = vpop.permute.xlu0 %1425
        %s1428 = sor.u32 256, 8
        %1429 = vbcast.lane.b32.xlu0 %v1423, %s1428
        %v1430 = vpop.permute.xlu0 %1429
        %v1431 = vlaneseq
        %v1432 = vshrl.u32 %v1431, 7
        %v1433 = vsub.s32 1, %v1432
        %v1434 = vrot.slane %v1058, %v1433
        %1436 = vbcast.lane.b32.xlu0 %v1434, 256
        %v1437 = vpop.permute.xlu0 %1436
        %s1439 = sor.u32 256, 8
        %1440 = vbcast.lane.b32.xlu0 %v1434, %s1439
        %v1441 = vpop.permute.xlu0 %1440
        %v1442 = vlaneseq
        %v1443 = vshrl.u32 %v1442, 7
        %v1444 = vsub.s32 2, %v1443
        %v1445 = vrot.slane %v1058, %v1444
        %1447 = vbcast.lane.b32.xlu0 %v1445, 256
        %v1448 = vpop.permute.xlu0 %1447
        %s1450 = sor.u32 256, 8
        %1451 = vbcast.lane.b32.xlu0 %v1445, %s1450
        %v1452 = vpop.permute.xlu0 %1451
        %v1453 = vlaneseq
        %v1454 = vshrl.u32 %v1453, 7
        %v1455 = vsub.s32 3, %v1454
        %v1456 = vrot.slane %v1058, %v1455
        %1458 = vbcast.lane.b32.xlu0 %v1456, 256
        %v1459 = vpop.permute.xlu0 %1458
        %s1461 = sor.u32 256, 8
        %1462 = vbcast.lane.b32.xlu0 %v1456, %s1461
        %v1463 = vpop.permute.xlu0 %1462
        %v1464 = vlaneseq
        %v1465 = vshrl.u32 %v1464, 7
        %v1466 = vsub.s32 4, %v1465
        %v1467 = vrot.slane %v1058, %v1466
        %1469 = vbcast.lane.b32.xlu0 %v1467, 256
        %v1470 = vpop.permute.xlu0 %1469
        %s1472 = sor.u32 256, 8
        %1473 = vbcast.lane.b32.xlu0 %v1467, %s1472
        %v1474 = vpop.permute.xlu0 %1473
        %v1475 = vlaneseq
        %v1476 = vshrl.u32 %v1475, 7
        %v1477 = vsub.s32 5, %v1476
        %v1478 = vrot.slane %v1058, %v1477
        %1480 = vbcast.lane.b32.xlu0 %v1478, 256
        %v1481 = vpop.permute.xlu0 %1480
        %s1483 = sor.u32 256, 8
        %1484 = vbcast.lane.b32.xlu0 %v1478, %s1483
        %v1485 = vpop.permute.xlu0 %1484
        %v1486 = vlaneseq
        %v1487 = vshrl.u32 %v1486, 7
        %v1488 = vsub.s32 6, %v1487
        %v1489 = vrot.slane %v1058, %v1488
        %1491 = vbcast.lane.b32.xlu0 %v1489, 256
        %v1492 = vpop.permute.xlu0 %1491
        %s1494 = sor.u32 256, 8
        %1495 = vbcast.lane.b32.xlu0 %v1489, %s1494
        %v1496 = vpop.permute.xlu0 %1495
        %v1497 = vlaneseq
        %v1498 = vshrl.u32 %v1497, 7
        %v1499 = vsub.s32 7, %v1498
        %v1500 = vrot.slane %v1058, %v1499
        %1502 = vbcast.lane.b32.xlu0 %v1500, 256
        %v1503 = vpop.permute.xlu0 %1502
        %s1505 = sor.u32 256, 8
        %1506 = vbcast.lane.b32.xlu0 %v1500, %s1505
        %v1507 = vpop.permute.xlu0 %1506
        %v1509 = vcombine.high %v1256, %v1256
        %v1511 = vunpack.c.l.s4 1966171168
        %v1512 = vunpack.c.0.s8 %v1511
        %v1513 = vlaneseq
        %v1514 = vshrl.u32 %v1513, 7
        %v1515 = vsub.s32 %v1512, %v1514
        %v1516 = vrot.slane %v1256, %v1515
        %v1518 = vunpack.c.l.s4 1966171168
        %v1519 = vunpack.c.0.s8 %v1518
        %v1520 = vlaneseq
        %v1521 = vshrl.u32 %v1520, 7
        %v1522 = vsub.s32 %v1519, %v1521
        %v1523 = vrot.slane %v1509, %v1522
        %v1524 = vcombine.high %v1516, %v1516
        %v1525 = vcombine.high %v1523, %v1523
        %v1527 = vunpack.c.l.s4 1966171168
        %v1528 = vunpack.c.0.s8 %v1527
        %v1529 = vlaneseq
        %v1530 = vshrl.u32 %v1529, 7
        %v1531 = vsub.s32 %v1528, %v1530
        %v1532 = vrot.slane %v1516, %v1531
        %v1534 = vunpack.c.l.s4 1966171168
        %v1535 = vunpack.c.0.s8 %v1534
        %v1536 = vlaneseq
        %v1537 = vshrl.u32 %v1536, 7
        %v1538 = vsub.s32 %v1535, %v1537
        %v1539 = vrot.slane %v1523, %v1538
        %v1541 = vunpack.c.l.s4 1966171168
        %v1542 = vunpack.c.0.s8 %v1541
        %v1543 = vlaneseq
        %v1544 = vshrl.u32 %v1543, 7
        %v1545 = vsub.s32 %v1542, %v1544
        %v1546 = vrot.slane %v1524, %v1545
        %v1548 = vunpack.c.l.s4 1966171168
        %v1549 = vunpack.c.0.s8 %v1548
        %v1550 = vlaneseq
        %v1551 = vshrl.u32 %v1550, 7
        %v1552 = vsub.s32 %v1549, %v1551
        %v1553 = vrot.slane %v1525, %v1552
        %v1554 = vcombine.high %v1532, %v1532
        %v1555 = vcombine.high %v1539, %v1539
        %v1556 = vcombine.high %v1546, %v1546
        %v1557 = vcombine.high %v1553, %v1553
        %v1558 = vlaneseq
        %v1559 = vshrl.u32 %v1558, 7
        %v1560 = vsub.s32 0, %v1559
        %v1561 = vrot.slane %v1532, %v1560
        %v1562 = vlaneseq
        %v1563 = vshrl.u32 %v1562, 7
        %v1564 = vsub.s32 0, %v1563
        %v1565 = vrot.slane %v1546, %v1564
        %v1566 = vlaneseq
        %v1567 = vshrl.u32 %v1566, 7
        %v1568 = vsub.s32 0, %v1567
        %v1569 = vrot.slane %v1554, %v1568
        %v1570 = vlaneseq
        %v1571 = vshrl.u32 %v1570, 7
        %v1572 = vsub.s32 0, %v1571
        %v1573 = vrot.slane %v1556, %v1572
        %v1574 = vlaneseq
        %v1575 = vshrl.u32 %v1574, 7
        %v1576 = vsub.s32 0, %v1575
        %v1577 = vrot.slane %v1539, %v1576
        %v1578 = vlaneseq
        %v1579 = vshrl.u32 %v1578, 7
        %v1580 = vsub.s32 0, %v1579
        %v1581 = vrot.slane %v1553, %v1580
        %v1582 = vlaneseq
        %v1583 = vshrl.u32 %v1582, 7
        %v1584 = vsub.s32 0, %v1583
        %v1585 = vrot.slane %v1555, %v1584
        %v1586 = vlaneseq
        %v1587 = vshrl.u32 %v1586, 7
        %v1588 = vsub.s32 0, %v1587
        %v1589 = vrot.slane %v1557, %v1588
        %v1598 = vmul.f32 %v1426, %v1561
        %v1599 = vmul.f32 %v1430, %v1561
        %v1600 = vmul.f32 %v1437, %v1565
        %v1601 = vmul.f32 %v1441, %v1565
        %v1602 = vmul.f32 %v1448, %v1569
        %v1603 = vmul.f32 %v1452, %v1569
        %v1604 = vmul.f32 %v1459, %v1573
        %v1605 = vmul.f32 %v1463, %v1573
        %v1606 = vmul.f32 %v1470, %v1577
        %v1607 = vmul.f32 %v1474, %v1577
        %v1608 = vmul.f32 %v1481, %v1581
        %v1609 = vmul.f32 %v1485, %v1581
        %v1610 = vmul.f32 %v1492, %v1585
        %v1611 = vmul.f32 %v1496, %v1585
        %v1612 = vmul.f32 %v1503, %v1589
        %v1613 = vmul.f32 %v1507, %v1589
        %1614 = vst.msk [vmem:[#allocation7] sm:$0xff] %vm863, %v1598
        %1615 = vst.msk [vmem:[#allocation7 + $0x8] sm:$0xff] %vm863, %v1599
        %1616 = vst.msk [vmem:[#allocation7 + $0x10] sm:$0xff] %vm863, %v1600
        %1617 = vst.msk [vmem:[#allocation7 + $0x18] sm:$0xff] %vm863, %v1601
        %1618 = vst.msk [vmem:[#allocation7 + $0x20] sm:$0xff] %vm863, %v1602
        %1619 = vst.msk [vmem:[#allocation7 + $0x28] sm:$0xff] %vm863, %v1603
        %1620 = vst.msk [vmem:[#allocation7 + $0x30] sm:$0xff] %vm863, %v1604
        %1621 = vst.msk [vmem:[#allocation7 + $0x38] sm:$0xff] %vm863, %v1605
        %1622 = vst.msk [vmem:[#allocation7 + $0x40] sm:$0xff] %vm863, %v1606
        %1623 = vst.msk [vmem:[#allocation7 + $0x48] sm:$0xff] %vm863, %v1607
        %1624 = vst.msk [vmem:[#allocation7 + $0x50] sm:$0xff] %vm863, %v1608
        %1625 = vst.msk [vmem:[#allocation7 + $0x58] sm:$0xff] %vm863, %v1609
        %1626 = vst.msk [vmem:[#allocation7 + $0x60] sm:$0xff] %vm863, %v1610
        %1627 = vst.msk [vmem:[#allocation7 + $0x68] sm:$0xff] %vm863, %v1611
        %1628 = vst.msk [vmem:[#allocation7 + $0x70] sm:$0xff] %vm863, %v1612
        %1629 = vst.msk [vmem:[#allocation7 + $0x78] sm:$0xff] %vm863, %v1613
        %v1630 = vld [vmem:[#allocation3] sm:$0xff]
        %v1631 = vld [vmem:[#allocation3 + $0x8] sm:$0xff]
        %v1632 = vld [vmem:[#allocation4] sm:$0xff]
        %v1633 = vlaneseq
        %v1634 = vshrl.u32 %v1633, 7
        %v1635 = vsub.s32 0, %v1634
        %v1636 = vrot.slane %v1632, %v1635
        %1638 = vbcast.lane.b32.xlu0 %v1636, 256
        %v1639 = vpop.permute.xlu0 %1638
        %s1641 = sor.u32 256, 8
        %1642 = vbcast.lane.b32.xlu0 %v1636, %s1641
        %v1643 = vpop.permute.xlu0 %1642
        %v1644 = vlaneseq
        %v1645 = vshrl.u32 %v1644, 7
        %v1646 = vsub.s32 1, %v1645
        %v1647 = vrot.slane %v1632, %v1646
        %1649 = vbcast.lane.b32.xlu0 %v1647, 256
        %v1650 = vpop.permute.xlu0 %1649
        %s1652 = sor.u32 256, 8
        %1653 = vbcast.lane.b32.xlu0 %v1647, %s1652
        %v1654 = vpop.permute.xlu0 %1653
        %v1655 = vlaneseq
        %v1656 = vshrl.u32 %v1655, 7
        %v1657 = vsub.s32 2, %v1656
        %v1658 = vrot.slane %v1632, %v1657
        %1660 = vbcast.lane.b32.xlu0 %v1658, 256
        %v1661 = vpop.permute.xlu0 %1660
        %s1663 = sor.u32 256, 8
        %1664 = vbcast.lane.b32.xlu0 %v1658, %s1663
        %v1665 = vpop.permute.xlu0 %1664
        %v1666 = vlaneseq
        %v1667 = vshrl.u32 %v1666, 7
        %v1668 = vsub.s32 3, %v1667
        %v1669 = vrot.slane %v1632, %v1668
        %1671 = vbcast.lane.b32.xlu0 %v1669, 256
        %v1672 = vpop.permute.xlu0 %1671
        %s1674 = sor.u32 256, 8
        %1675 = vbcast.lane.b32.xlu0 %v1669, %s1674
        %v1676 = vpop.permute.xlu0 %1675
        %v1677 = vlaneseq
        %v1678 = vshrl.u32 %v1677, 7
        %v1679 = vsub.s32 4, %v1678
        %v1680 = vrot.slane %v1632, %v1679
        %1682 = vbcast.lane.b32.xlu0 %v1680, 256
        %v1683 = vpop.permute.xlu0 %1682
        %s1685 = sor.u32 256, 8
        %1686 = vbcast.lane.b32.xlu0 %v1680, %s1685
        %v1687 = vpop.permute.xlu0 %1686
        %v1688 = vlaneseq
        %v1689 = vshrl.u32 %v1688, 7
        %v1690 = vsub.s32 5, %v1689
        %v1691 = vrot.slane %v1632, %v1690
        %1693 = vbcast.lane.b32.xlu0 %v1691, 256
        %v1694 = vpop.permute.xlu0 %1693
        %s1696 = sor.u32 256, 8
        %1697 = vbcast.lane.b32.xlu0 %v1691, %s1696
        %v1698 = vpop.permute.xlu0 %1697
        %v1699 = vlaneseq
        %v1700 = vshrl.u32 %v1699, 7
        %v1701 = vsub.s32 6, %v1700
        %v1702 = vrot.slane %v1632, %v1701
        %1704 = vbcast.lane.b32.xlu0 %v1702, 256
        %v1705 = vpop.permute.xlu0 %1704
        %s1707 = sor.u32 256, 8
        %1708 = vbcast.lane.b32.xlu0 %v1702, %s1707
        %v1709 = vpop.permute.xlu0 %1708
        %v1710 = vlaneseq
        %v1711 = vshrl.u32 %v1710, 7
        %v1712 = vsub.s32 7, %v1711
        %v1713 = vrot.slane %v1632, %v1712
        %1715 = vbcast.lane.b32.xlu0 %v1713, 256
        %v1716 = vpop.permute.xlu0 %1715
        %s1718 = sor.u32 256, 8
        %1719 = vbcast.lane.b32.xlu0 %v1713, %s1718
        %v1720 = vpop.permute.xlu0 %1719
        %s1721 = smul.u32 0, 16
        %s1722 = scalar_lea.vmem [#allocation6], %s1721
        %v1723 = vld [vmem:[%s1722] sm:$0xff]
        %v1724 = vld [vmem:[%s1722 + $0x8] sm:$0xff]
        %v1725 = vmul.f32 %v1723, %v1630
        %v1726 = vmul.f32 %v1724, %v1631
        %s1727 = scalar_lea.vmem [#allocation7], %s1721
        %v1728 = vld [vmem:[%s1727] sm:$0xff]
        %v1729 = vld [vmem:[%s1727 + $0x8] sm:$0xff]
        %v1730 = vadd.f32 %v1725, %v1728
        %v1731 = vadd.f32 %v1726, %v1729
        %v1732 = vmul.f32 %v1639, %v1730
        %v1733 = vmul.f32 %v1643, %v1731
        %v1734 = vsel %vm863, %v1732, 0.0
        %v1735 = vsel %vm863, %v1733, 0.0
        %v1736 = vadd.f32 %v1734, %v1735
        %v1737 = vrot.slane %v1736, 4
        %v1738 = vadd.f32 %v1736, %v1737
        %v1739 = vrot.slane %v1738, 2
        %v1740 = vadd.f32 %v1738, %v1739
        %v1741 = vrot.slane %v1740, 1
        %v1742 = vadd.f32 %v1740, %v1741
        %s1743 = sadd.s32 0, 1
        %s1744 = smul.u32 %s1743, 16
        %s1745 = scalar_lea.vmem [#allocation6], %s1744
        %v1746 = vld [vmem:[%s1745] sm:$0xff]
        %v1747 = vld [vmem:[%s1745 + $0x8] sm:$0xff]
        %v1748 = vmul.f32 %v1746, %v1730
        %v1749 = vmul.f32 %v1747, %v1731
        %s1750 = scalar_lea.vmem [#allocation7], %s1744
        %v1751 = vld [vmem:[%s1750] sm:$0xff]
        %v1752 = vld [vmem:[%s1750 + $0x8] sm:$0xff]
        %v1753 = vadd.f32 %v1748, %v1751
        %v1754 = vadd.f32 %v1749, %v1752
        %v1755 = vmul.f32 %v1650, %v1753
        %v1756 = vmul.f32 %v1654, %v1754
        %v1757 = vsel %vm863, %v1755, 0.0
        %v1758 = vsel %vm863, %v1756, 0.0
        %v1759 = vadd.f32 %v1757, %v1758
        %v1760 = vrot.slane %v1759, 4
        %v1761 = vadd.f32 %v1759, %v1760
        %v1762 = vrot.slane %v1761, 2
        %v1763 = vadd.f32 %v1761, %v1762
        %v1764 = vrot.slane %v1763, 1
        %v1765 = vadd.f32 %v1763, %v1764
        %s1766 = sadd.s32 0, 2
        %s1767 = smul.u32 %s1766, 16
        %s1768 = scalar_lea.vmem [#allocation6], %s1767
        %v1769 = vld [vmem:[%s1768] sm:$0xff]
        %v1770 = vld [vmem:[%s1768 + $0x8] sm:$0xff]
        %v1771 = vmul.f32 %v1769, %v1753
        %v1772 = vmul.f32 %v1770, %v1754
        %s1773 = scalar_lea.vmem [#allocation7], %s1767
        %v1774 = vld [vmem:[%s1773] sm:$0xff]
        %v1775 = vld [vmem:[%s1773 + $0x8] sm:$0xff]
        %v1776 = vadd.f32 %v1771, %v1774
        %v1777 = vadd.f32 %v1772, %v1775
        %v1778 = vmul.f32 %v1661, %v1776
        %v1779 = vmul.f32 %v1665, %v1777
        %v1780 = vsel %vm863, %v1778, 0.0
        %v1781 = vsel %vm863, %v1779, 0.0
        %v1782 = vadd.f32 %v1780, %v1781
        %v1783 = vrot.slane %v1782, 4
        %v1784 = vadd.f32 %v1782, %v1783
        %v1785 = vrot.slane %v1784, 2
        %v1786 = vadd.f32 %v1784, %v1785
        %v1787 = vrot.slane %v1786, 1
        %v1788 = vadd.f32 %v1786, %v1787
        %s1789 = sadd.s32 0, 3
        %s1790 = smul.u32 %s1789, 16
        %s1791 = scalar_lea.vmem [#allocation6], %s1790
        %v1792 = vld [vmem:[%s1791] sm:$0xff]
        %v1793 = vld [vmem:[%s1791 + $0x8] sm:$0xff]
        %v1794 = vmul.f32 %v1792, %v1776
        %v1795 = vmul.f32 %v1793, %v1777
        %s1796 = scalar_lea.vmem [#allocation7], %s1790
        %v1797 = vld [vmem:[%s1796] sm:$0xff]
        %v1798 = vld [vmem:[%s1796 + $0x8] sm:$0xff]
        %v1799 = vadd.f32 %v1794, %v1797
        %v1800 = vadd.f32 %v1795, %v1798
        %v1801 = vmul.f32 %v1672, %v1799
        %v1802 = vmul.f32 %v1676, %v1800
        %v1803 = vsel %vm863, %v1801, 0.0
        %v1804 = vsel %vm863, %v1802, 0.0
        %v1805 = vadd.f32 %v1803, %v1804
        %v1806 = vrot.slane %v1805, 4
        %v1807 = vadd.f32 %v1805, %v1806
        %v1808 = vrot.slane %v1807, 2
        %v1809 = vadd.f32 %v1807, %v1808
        %v1810 = vrot.slane %v1809, 1
        %v1811 = vadd.f32 %v1809, %v1810
        %s1812 = sadd.s32 0, 4
        %s1813 = smul.u32 %s1812, 16
        %s1814 = scalar_lea.vmem [#allocation6], %s1813
        %v1815 = vld [vmem:[%s1814] sm:$0xff]
        %v1816 = vld [vmem:[%s1814 + $0x8] sm:$0xff]
        %v1817 = vmul.f32 %v1815, %v1799
        %v1818 = vmul.f32 %v1816, %v1800
        %s1819 = scalar_lea.vmem [#allocation7], %s1813
        %v1820 = vld [vmem:[%s1819] sm:$0xff]
        %v1821 = vld [vmem:[%s1819 + $0x8] sm:$0xff]
        %v1822 = vadd.f32 %v1817, %v1820
        %v1823 = vadd.f32 %v1818, %v1821
        %v1824 = vmul.f32 %v1683, %v1822
        %v1825 = vmul.f32 %v1687, %v1823
        %v1826 = vsel %vm863, %v1824, 0.0
        %v1827 = vsel %vm863, %v1825, 0.0
        %v1828 = vadd.f32 %v1826, %v1827
        %v1829 = vrot.slane %v1828, 4
        %v1830 = vadd.f32 %v1828, %v1829
        %v1831 = vrot.slane %v1830, 2
        %v1832 = vadd.f32 %v1830, %v1831
        %v1833 = vrot.slane %v1832, 1
        %v1834 = vadd.f32 %v1832, %v1833
        %s1835 = sadd.s32 0, 5
        %s1836 = smul.u32 %s1835, 16
        %s1837 = scalar_lea.vmem [#allocation6], %s1836
        %v1838 = vld [vmem:[%s1837] sm:$0xff]
        %v1839 = vld [vmem:[%s1837 + $0x8] sm:$0xff]
        %v1840 = vmul.f32 %v1838, %v1822
        %v1841 = vmul.f32 %v1839, %v1823
        %s1842 = scalar_lea.vmem [#allocation7], %s1836
        %v1843 = vld [vmem:[%s1842] sm:$0xff]
        %v1844 = vld [vmem:[%s1842 + $0x8] sm:$0xff]
        %v1845 = vadd.f32 %v1840, %v1843
        %v1846 = vadd.f32 %v1841, %v1844
        %v1847 = vmul.f32 %v1694, %v1845
        %v1848 = vmul.f32 %v1698, %v1846
        %v1849 = vsel %vm863, %v1847, 0.0
        %v1850 = vsel %vm863, %v1848, 0.0
        %v1851 = vadd.f32 %v1849, %v1850
        %v1852 = vrot.slane %v1851, 4
        %v1853 = vadd.f32 %v1851, %v1852
        %v1854 = vrot.slane %v1853, 2
        %v1855 = vadd.f32 %v1853, %v1854
        %v1856 = vrot.slane %v1855, 1
        %v1857 = vadd.f32 %v1855, %v1856
        %s1858 = sadd.s32 0, 6
        %s1859 = smul.u32 %s1858, 16
        %s1860 = scalar_lea.vmem [#allocation6], %s1859
        %v1861 = vld [vmem:[%s1860] sm:$0xff]
        %v1862 = vld [vmem:[%s1860 + $0x8] sm:$0xff]
        %v1863 = vmul.f32 %v1861, %v1845
        %v1864 = vmul.f32 %v1862, %v1846
        %s1865 = scalar_lea.vmem [#allocation7], %s1859
        %v1866 = vld [vmem:[%s1865] sm:$0xff]
        %v1867 = vld [vmem:[%s1865 + $0x8] sm:$0xff]
        %v1868 = vadd.f32 %v1863, %v1866
        %v1869 = vadd.f32 %v1864, %v1867
        %v1870 = vmul.f32 %v1705, %v1868
        %v1871 = vmul.f32 %v1709, %v1869
        %v1872 = vsel %vm863, %v1870, 0.0
        %v1873 = vsel %vm863, %v1871, 0.0
        %v1874 = vadd.f32 %v1872, %v1873
        %v1875 = vrot.slane %v1874, 4
        %v1876 = vadd.f32 %v1874, %v1875
        %v1877 = vrot.slane %v1876, 2
        %v1878 = vadd.f32 %v1876, %v1877
        %v1879 = vrot.slane %v1878, 1
        %v1880 = vadd.f32 %v1878, %v1879
        %s1881 = sadd.s32 0, 7
        %s1882 = smul.u32 %s1881, 16
        %s1883 = scalar_lea.vmem [#allocation6], %s1882
        %v1884 = vld [vmem:[%s1883] sm:$0xff]
        %v1885 = vld [vmem:[%s1883 + $0x8] sm:$0xff]
        %v1886 = vmul.f32 %v1884, %v1868
        %v1887 = vmul.f32 %v1885, %v1869
        %s1888 = scalar_lea.vmem [#allocation7], %s1882
        %v1889 = vld [vmem:[%s1888] sm:$0xff]
        %v1890 = vld [vmem:[%s1888 + $0x8] sm:$0xff]
        %v1891 = vadd.f32 %v1886, %v1889
        %v1892 = vadd.f32 %v1887, %v1890
        %v1893 = vmul.f32 %v1716, %v1891
        %v1894 = vmul.f32 %v1720, %v1892
        %v1895 = vsel %vm863, %v1893, 0.0
        %v1896 = vsel %vm863, %v1894, 0.0
        %v1897 = vadd.f32 %v1895, %v1896
        %v1898 = vrot.slane %v1897, 4
        %v1899 = vadd.f32 %v1897, %v1898
        %v1900 = vrot.slane %v1899, 2
        %v1901 = vadd.f32 %v1899, %v1900
        %v1902 = vrot.slane %v1901, 1
        %v1903 = vadd.f32 %v1901, %v1902
        %vm1904 = vcmask 1040384
        %v1905 = vsel %vm1904, %v1742, %v1765
        %vm1906 = vcmask 1041408
        %v1907 = vsel %vm1906, %v1905, %v1788
        %vm1908 = vcmask 1042432
        %v1909 = vsel %vm1908, %v1907, %v1811
        %vm1910 = vcmask 1043456
        %v1911 = vsel %vm1910, %v1909, %v1834
        %vm1912 = vcmask 1044480
        %v1913 = vsel %vm1912, %v1911, %v1857
        %vm1914 = vcmask 1045504
        %v1915 = vsel %vm1914, %v1913, %v1880
        %vm1916 = vcmask 1046528
        %v1917 = vsel %vm1916, %v1915, %v1903
        %1918 = vst.msk [vmem:[#allocation5] sm:$0xff] %vm863, %v1917
        %1919 = vst.msk [vmem:[#allocation3] sm:$0xff] %vm863, %v1891
        %1920 = vst.msk [vmem:[#allocation3 + $0x8] sm:$0xff] %vm863, %v1892
        %v1921 = vld [vmem:[#allocation5] sm:$0xff]
        %v1922 = vld [vmem:[#allocation28] sm:$0x1]
        %v1924 = vlaneseq
        %v1925 = vshrl.u32 %v1924, 7
        %v1926 = vsub.s32 0, %v1925
        %v1927 = vrot.slane %v1922, %v1926
        %v1929 = vmul.f32 %v1927, %v914
        %v1930 = vadd.f32 %v1921, %v1929
        %v1931 = vxor.u32 %v852, 2147483648
        %v1932 = vmul.f32 %v1931, 1.442695
        %v1933 = vpow.pop %v1932
        %v1934 = vadd.f32 %v1933, 1.0
        %v1935 = vrcp.pop %v1934
        %v1936 = vmul.f32 1.0, %v1935
        %v1937 = vmul.f32 %v852, %v1936
        %v1938 = vmul.f32 %v1930, %v1937
        %v1939 = vpack.c.bf16 %v1938, %v1938
        %v1940 = vld [vmem:[#allocation29] sm:$0xf]
        %v1941 = vld [vmem:[#allocation29 + $0x4] sm:$0xf]
        %v1942 = vld [vmem:[#allocation29 + $0x8] sm:$0xf]
        %v1943 = vld [vmem:[#allocation29 + $0xc] sm:$0xf]
        %v1944 = vld [vmem:[#allocation29 + $0x10] sm:$0xf]
        %v1945 = vld [vmem:[#allocation29 + $0x14] sm:$0xf]
        %v1946 = vld [vmem:[#allocation29 + $0x18] sm:$0xf]
        %v1947 = vld [vmem:[#allocation29 + $0x1c] sm:$0xf]
        %v1956 = vunpack.c.l.b16 %v1940
        %v1957 = vunpack.c.l.b16 %v1941
        %v1958 = vunpack.c.l.b16 %v1942
        %v1959 = vunpack.c.l.b16 %v1943
        %v1960 = vunpack.c.l.b16 %v1944
        %v1961 = vunpack.c.l.b16 %v1945
        %v1962 = vunpack.c.l.b16 %v1946
        %v1963 = vunpack.c.l.b16 %v1947
        %v1964 = vpack.c.b16 %v1957, %v1956
        %v1965 = vpack.c.b16 %v1959, %v1958
        %v1966 = vpack.c.b16 %v1961, %v1960
        %v1967 = vpack.c.b16 %v1963, %v1962
        %v1973 = vsel %vm863, %v1939, 0
        %1975 = vmatprep.subr.bf16.mxu0 0
        %1976 = vmatpush1.bf16.msra.mxu0 %v1964
        %1977 = vmatprep.subr.bf16.mxu0 0
        %1978 = vmatpush1.bf16.msra.mxu0 %v1965
        %1979 = vmatprep.subr.bf16.mxu0 0
        %1980 = vmatpush1.bf16.msra.mxu0 %v1966
        %1981 = vmatprep.subr.bf16.mxu0 0
        %1982 = vmatpush1.bf16.msra.mxu0 %v1967
        %1983 = vmatprep.subr.bf16.mxu0 0
        %1984 = vmatpush1.bf16.msra.mxu0 0
        %1985 = vmatprep.subr.bf16.mxu0 0
        %1986 = vmatpush1.bf16.msra.mxu0 0
        %1987 = vmatprep.subr.bf16.mxu0 0
        %1988 = vmatpush1.bf16.msra.mxu0 0
        %1989 = vmatprep.subr.bf16.mxu0 0
        %1990 = vmatpush1.bf16.msra.mxu0 0
        %1991 = vmatprep.subr.bf16.mxu0 0
        %1992 = vmatpush1.bf16.msra.mxu0 0
        %1993 = vmatprep.subr.bf16.mxu0 0
        %1994 = vmatpush1.bf16.msra.mxu0 0
        %1995 = vmatprep.subr.bf16.mxu0 0
        %1996 = vmatpush1.bf16.msra.mxu0 0
        %1997 = vmatprep.subr.bf16.mxu0 0
        %1998 = vmatpush1.bf16.msra.mxu0 0
        %1999 = vmatprep.subr.bf16.mxu0 0
        %2000 = vmatpush1.bf16.msra.mxu0 0
        %2001 = vmatprep.subr.bf16.mxu0 0
        %2002 = vmatpush1.bf16.msra.mxu0 0
        %2003 = vmatprep.subr.bf16.mxu0 0
        %2004 = vmatpush1.bf16.msra.mxu0 0
        %2005 = vmatprep.subr.bf16.mxu0 0
        %2006 = vmatpush1.bf16.msra.mxu0 0
        %2007 = vmatprep.mubr.bf16.mxu0 0
        %2008 = vmatmul.mubr.bf16.gmra.mrb[0].mxu0 %v1973
        %v2009 = vpop.f32.mrb[0].mxu0
        %v2010 = vadd.f32 0.0, %v2009
        %v2011 = vpop.f32.mrb[0].mxu0
        %v2012 = vpop.f32.mrb[0].mxu0
        %v2013 = vpop.f32.mrb[0].mxu0
        %2014 = vdwg.mxu0
        %2015 = vst.msk [vmem:[%s712] sm:$0xff] %vm722, %v2010
        %s2016 = sand.u32 %s366, 1
        %s2017 = scalar_lea.sflag [#allocation10], %s2016
        %s2018 = sand.u32 %s366, 1
        %s2019 = smul.addr %s2018, 8
        %s2020 = scalar_lea.vmem [#allocation31], %s2019
        %s2021 = sand.u32 %s394, 1
        %s2022 = scalar_lea.sflag [#allocation33], %s2021
        %s2023 = sand.u32 %s394, 1
        %s2024 = smul.addr %s2023, 8
        %s2025 = scalar_lea.vmem [#allocation32], %s2024
        // Predicated region
        $region141: #{tpu_custom_call.1} parent=75 // pred_check
          %p2026 = pneg %p376
        $region142: #{tpu_custom_call.1} parent=75 // pred_check_branch
          %2028 = sbr.rel (%p2026) target = $region144
        $region143: #{tpu_custom_call.1} parent=75 // pred_region
          %s2030 = ssub.s32 128, 128
          %2031 = vsyncadd %s2017, %s2030
          %s2032 = smul.addr %s47, 2
          %s2033 = sadd.s32 %s48, %s2032
          %s2034 = smul.addr %s2033, 128
          %s2035 = scalar_lea.hbm %s14, %s2034
          %s2037 = sshll.u32 %s2020, 4
          %s2038 = int_to_ptr.vmem [resolvable:$true] %s2037
          %2040 = dma.vmem_to_hbm [thread:$0]  %s2038, 128, %s2035, %s2017
        $region144: #{tpu_custom_call.1} parent=75 // pred_fallthru
          _
        // Predicated region
        $region145: #{tpu_custom_call.1} parent=75 // pred_check
          %p2041 = pneg %p404
        $region146: #{tpu_custom_call.1} parent=75 // pred_check_branch
          %2043 = sbr.rel (%p2041) target = $region148
        $region147: #{tpu_custom_call.1} parent=75 // pred_region
          %s2045 = ssub.s32 128, 128
          %2046 = vsyncadd %s2022, %s2045
          %s2047 = smul.addr %s47, 2
          %s2048 = sadd.s32 %s48, %s2047
          %s2049 = smul.addr %s2048, 128
          %s2050 = scalar_lea.hbm %s15, %s2049
          %s2052 = sshll.u32 %s2025, 4
          %s2053 = int_to_ptr.vmem [resolvable:$true] %s2052
          %2055 = dma.vmem_to_hbm [thread:$0]  %s2053, 128, %s2050, %s2022
        $region148: #{tpu_custom_call.1} parent=75 // pred_fallthru
          _
      $region76: #{tpu_custom_call.1} parent=5 // pred_fallthru
        _
      %p2056 = scmp.le.s32.totalorder 2, %s38
      // Predicated region
      $region149: #{tpu_custom_call.1} parent=5 // pred_check
        %p2057 = pneg %p2056
      $region150: #{tpu_custom_call.1} parent=5 // pred_check_branch
        %2059 = sbr.rel (%p2057) target = $region152
      $region151: #{tpu_custom_call.1} parent=5 // pred_region
        %s2060 = ssub.s32 %s38, 2
        // Predicated region
        $region153: #{tpu_custom_call.1} parent=151 // pred_check
          %p2061 = pneg %p382
        $region154: #{tpu_custom_call.1} parent=151 // pred_check_branch
          %2063 = sbr.rel (%p2061) target = $region156
        $region155: #{tpu_custom_call.1} parent=151 // pred_region
          %s2064 = sand.u32 %s367, 1
          %s2065 = scalar_lea.sflag [#allocation10], %s2064
          %s2066 = sand.u32 %s367, 1
          %s2067 = smul.addr %s2066, 8
          %s2068 = scalar_lea.vmem [#allocation31], %s2067
          %2069 = dma.done %s2065, 128
        $region156: #{tpu_custom_call.1} parent=151 // pred_fallthru
          _
        // Predicated region
        $region157: #{tpu_custom_call.1} parent=151 // pred_check
          %p2070 = pneg %p410
        $region158: #{tpu_custom_call.1} parent=151 // pred_check_branch
          %2072 = sbr.rel (%p2070) target = $region160
        $region159: #{tpu_custom_call.1} parent=151 // pred_region
          %s2073 = sand.u32 %s395, 1
          %s2074 = scalar_lea.sflag [#allocation33], %s2073
          %s2075 = sand.u32 %s395, 1
          %s2076 = smul.addr %s2075, 8
          %s2077 = scalar_lea.vmem [#allocation32], %s2076
          %2078 = dma.done %s2074, 128
        $region160: #{tpu_custom_call.1} parent=151 // pred_fallthru
          _
      $region152: #{tpu_custom_call.1} parent=5 // pred_fallthru
        _
    $region6: #{tpu_custom_call.1} parent=1 // loop_footer
      %s42 = sadd.s32 1, %s38
    $region7: #{tpu_custom_call.1} parent=1 // loop_footer_branch
      %37 = sbr.rel target = $region3
    $region8: #{tpu_custom_call.1} parent=1 // loop_exit
      _
    %2079 = vsyncpa [#allocation9], 1
    %s2080 = scalar_lea.sflag [#allocation9], 1
    %2081 = vsyncpa %s2080, 1
    %2082 = vsyncpa [#allocation12], 1
    %2083 = vsyncpa [#allocation15], 1
    %2084 = vsyncpa [#allocation18], 1
    %2085 = vsyncpa [#allocation21], 1
    %2086 = vsyncpa [#allocation24], 1
    %2087 = vsyncpa [#allocation27], 1
    %2088 = vsyncpa [#allocation30], 1
    %2089 = vsyncpa [#allocation10], 1
    %s2090 = scalar_lea.sflag [#allocation10], 1
    %2091 = vsyncpa %s2090, 1
    %2092 = vsyncpa [#allocation33], 1
    %s2093 = scalar_lea.sflag [#allocation33], 1
    %2094 = vsyncpa %s2093, 1

// kernel: tpu_custom_call.1
$region0: #{tpu_custom_call.1}
  #allocation0 [shape = 'u32[]', space=smem, size = 0x4, offset = 0x4, fixed_abs, tag = 'smem constant byte address 0x4 - core index']
  #allocation1 [shape = 'u32[144,128]{1,0:T(1,128)}', space=vmem, size = 0x12000, scoped, tag = 'internal scratch']
  #allocation2 [shape = 'f32[11,64]{1,0:T(8,128)}', space=vmem, size = 0x2000, scoped, tag = 'scratch operand']
  #allocation3 [shape = 'f32[16,64]{1,0:T(8,128)}', space=vmem, size = 0x2000, scoped, tag = 'scratch operand']
  #allocation4 [shape = 'f32[8,16]{1,0:T(8,128)}', space=vmem, size = 0x1000, scoped, tag = 'scratch operand']
  #allocation5 [shape = 'f32[8,64]{1,0:T(8,128)}', space=vmem, size = 0x1000, scoped, tag = 'scratch operand']
  #allocation6 [shape = 'f32[8,16,64]{2,1,0:T(8,128)}', space=vmem, size = 0x10000, scoped, tag = 'scratch operand']
  #allocation7 [shape = 'f32[8,16,64]{2,1,0:T(8,128)}', space=vmem, size = 0x10000, scoped, tag = 'scratch operand']
  %s0 = inlined_call_operand.hbm [shape: f32[2,16,32], index: 0, kind: input, shape index: {}]
  %s1 = inlined_call_operand.hbm [shape: f32[1,32], index: 1, kind: input, shape index: {}]
  %s2 = inlined_call_operand.hbm [shape: bf16[32,64], index: 2, kind: input, shape index: {}]
  %s3 = inlined_call_operand.hbm [shape: bf16[32,64], index: 3, kind: input, shape index: {}]
  %s4 = inlined_call_operand.hbm [shape: f32[4,64], index: 4, kind: input, shape index: {}]
  %s5 = inlined_call_operand.hbm [shape: f32[1,64], index: 5, kind: input, shape index: {}]
  %s6 = inlined_call_operand.hbm [shape: bf16[64,128], index: 6, kind: input, shape index: {}]
  %s7 = inlined_call_operand.hbm [shape: bf16[64,16], index: 7, kind: input, shape index: {}]
  %s8 = inlined_call_operand.hbm [shape: bf16[64,16], index: 8, kind: input, shape index: {}]
  %s9 = inlined_call_operand.hbm [shape: bf16[128,64], index: 9, kind: input, shape index: {}]
  %s10 = inlined_call_operand.hbm [shape: f32[1,64], index: 10, kind: input, shape index: {}]
  %s11 = inlined_call_operand.hbm [shape: f32[16,64], index: 11, kind: input, shape index: {}]
  %s12 = inlined_call_operand.hbm [shape: f32[1,64], index: 12, kind: input, shape index: {}]
  %s13 = inlined_call_operand.hbm [shape: bf16[64,32], index: 13, kind: input, shape index: {}]
  %s14 = inlined_call_operand.hbm [shape: f32[2,16,32], index: 14, kind: output, shape index: {0}]
  %s15 = inlined_call_operand.hbm [shape: f32[2,16,32], index: 15, kind: output, shape index: {1}]
  %16 = xla_tuple %s14, %s15
  %s17 = sld [smem:[#allocation0]]
  $region161: #{tpu_custom_call.1} parent=0
    _
  %s19 = ssub.s32 1, %s17
  %s20 = scalar_select 0, %s19, %s17
  $region1: #{tpu_custom_call.1} parent=0
    #allocation8 [shape = 'u8[8192]{0}', space=vmem, size = 0x2000, scoped, tag = 'input window, operand 0']
    #allocation9 [shape = 's32[2]{0}', space=sflag, size = 0x8, scoped, tag = 'scoped memory for tpu_custom_call.1']
    #allocation10 [shape = 's32[2]{0}', space=sflag, size = 0x8, scoped, tag = 'scoped memory for tpu_custom_call.1']
    #allocation11 [shape = 'u8[512]{0}', space=vmem, size = 0x400, scoped, tag = 'input window, operand 1, single buffered']
    #allocation12 [shape = 's32[1]{0}', space=sflag, size = 0x4, scoped, tag = 'scoped memory for tpu_custom_call.1']
    #allocation13 [shape = 'u8[8192]{0}', space=vmem, size = 0x2000, scoped, tag = 'input window, operand 2, single buffered']
    #allocation14 [shape = 'u8[8192]{0}', space=vmem, size = 0x2000, scoped, tag = 'input window, operand 3, single buffered']
    #allocation15 [shape = 's32[1]{0}', space=sflag, size = 0x4, scoped, tag = 'scoped memory for tpu_custom_call.1']
    #allocation16 [shape = 'u8[2048]{0}', space=vmem, size = 0x800, scoped, tag = 'input window, operand 4, single buffered']
    #allocation17 [shape = 'u8[512]{0}', space=vmem, size = 0x400, scoped, tag = 'input window, operand 5, single buffered']
    #allocation18 [shape = 's32[1]{0}', space=sflag, size = 0x4, scoped, tag = 'scoped memory for tpu_custom_call.1']
    #allocation19 [shape = 'u8[16384]{0}', space=vmem, size = 0x4000, scoped, tag = 'input window, operand 6, single buffered']
    #allocation20 [shape = 'u8[16384]{0}', space=vmem, size = 0x4000, scoped, tag = 'input window, operand 7, single buffered']
    #allocation21 [shape = 's32[1]{0}', space=sflag, size = 0x4, scoped, tag = 'scoped memory for tpu_custom_call.1']
    #allocation22 [shape = 'u8[16384]{0}', space=vmem, size = 0x4000, scoped, tag = 'input window, operand 8, single buffered']
    #allocation23 [shape = 'u8[32768]{0}', space=vmem, size = 0x8000, scoped, tag = 'input window, operand 9, single buffered']
    #allocation24 [shape = 's32[1]{0}', space=sflag, size = 0x4, scoped, tag = 'scoped memory for tpu_custom_call.1']
    #allocation25 [shape = 'u8[512]{0}', space=vmem, size = 0x400, scoped, tag = 'input window, operand 10, single buffered']
    #allocation26 [shape = 'u8[8192]{0}', space=vmem, size = 0x2000, scoped, tag = 'input window, operand 11, single buffered']
    #allocation27 [shape = 's32[1]{0}', space=sflag, size = 0x4, scoped, tag = 'scoped memory for tpu_custom_call.1']
    #allocation28 [shape = 'u8[512]{0}', space=vmem, size = 0x400, scoped, tag = 'input window, operand 12, single buffered']
    #allocation29 [shape = 'u8[16384]{0}', space=vmem, size = 0x4000, scoped, tag = 'input window, operand 13, single buffered']
    #allocation30 [shape = 's32[1]{0}', space=sflag, size = 0x4, scoped, tag = 'scoped memory for tpu_custom_call.1']
    #allocation31 [shape = 'u8[8192]{0}', space=vmem, size = 0x2000, scoped, tag = 'output window, operand 0']
    #allocation32 [shape = 'u8[8192]{0}', space=vmem, size = 0x2000, scoped, tag = 'output window, operand 1']
    #allocation33 [shape = 's32[2]{0}', space=sflag, size = 0x8, scoped, tag = 'scoped memory for tpu_custom_call.1']
    %21 = vsyncpa [#allocation9], 0
    %s22 = scalar_lea.sflag [#allocation9], 1
    %23 = vsyncpa %s22, 0
    %24 = vsyncpa [#allocation12], 0
    %25 = vsyncpa [#allocation15], 0
    %26 = vsyncpa [#allocation18], 0
    %27 = vsyncpa [#allocation21], 0
    %28 = vsyncpa [#allocation24], 0
    %29 = vsyncpa [#allocation27], 0
    %30 = vsyncpa [#allocation30], 0
    %31 = vsyncpa [#allocation10], 0
    %s32 = scalar_lea.sflag [#allocation10], 1
    %33 = vsyncpa %s32, 0
    %34 = vsyncpa [#allocation33], 0
    %s35 = scalar_lea.sflag [#allocation33], 1
    %36 = vsyncpa %s35, 0
    loop: start=0, step=1, limit=6
    $region2: #{tpu_custom_call.1} parent=1 // loop_pre_header
      _
    $region3: #{tpu_custom_call.1} parent=1 // loop_header
      %s38 = sphi 0, %s42
      %p39 = scmp.ge.s32.totalorder %s38, 6
      %s45 = sphi 0, %s57
      %s46 = sphi 0, %s53
      %s47 = sphi 0, %s45
      %s48 = sphi 0, %s46
      %s49 = sphi 0, %s47
      %s50 = sphi 0, %s48
      %s62 = sphi 0, %s64
      %s65 = sphi 0, %s62
      %s66 = sphi 0, %s65
      %s82 = sphi 0, %s66
      %s86 = sphi 0, %s86
      %s88 = sphi 0, %s86
      %s89 = sphi 0, %s88
      %s103 = sphi 0, %s89
      %s107 = sphi 0, %s107
      %s109 = sphi 0, %s107
      %s110 = sphi 0, %s109
      %s124 = sphi 0, %s110
      %s128 = sphi 0, %s128
      %s130 = sphi 0, %s128
      %s131 = sphi 0, %s130
      %s145 = sphi 0, %s131
      %s149 = sphi 0, %s149
      %s151 = sphi 0, %s149
      %s152 = sphi 0, %s151
      %s166 = sphi 0, %s152
      %s170 = sphi 0, %s170
      %s172 = sphi 0, %s170
      %s173 = sphi 0, %s172
      %s187 = sphi 0, %s173
      %s191 = sphi 0, %s191
      %s193 = sphi 0, %s191
      %s194 = sphi 0, %s193
      %s208 = sphi 0, %s194
      %s212 = sphi 0, %s212
      %s214 = sphi 0, %s212
      %s215 = sphi 0, %s214
      %s229 = sphi 0, %s215
      %s233 = sphi 0, %s233
      %s235 = sphi 0, %s233
      %s236 = sphi 0, %s235
      %s250 = sphi 0, %s236
      %s254 = sphi 0, %s254
      %s256 = sphi 0, %s254
      %s257 = sphi 0, %s256
      %s271 = sphi 0, %s257
      %s275 = sphi 0, %s275
      %s277 = sphi 0, %s275
      %s278 = sphi 0, %s277
      %s292 = sphi 0, %s278
      %s296 = sphi 0, %s296
      %s298 = sphi 0, %s296
      %s299 = sphi 0, %s298
      %s313 = sphi 0, %s299
      %s317 = sphi 0, %s317
      %s319 = sphi 0, %s317
      %s320 = sphi 0, %s319
      %s334 = sphi 0, %s320
      %s338 = sphi 0, %s338
      %s340 = sphi 0, %s338
      %s341 = sphi 0, %s340
      %s355 = sphi 0, %s341
      %s363 = sphi 0, %s365
      %s366 = sphi 0, %s363
      %s367 = sphi 0, %s366
      %s383 = sphi 0, %s367
      %s391 = sphi 0, %s393
      %s394 = sphi 0, %s391
      %s395 = sphi 0, %s394
      %s411 = sphi 0, %s395
    $region4: #{tpu_custom_call.1} parent=1 // loop_header_branch
      %41 = sbr.rel (%p39) target = $region8
    $region5: #{tpu_custom_call.1} parent=1 // loop_body
      %s43 = ssub.s32 %s38, 1
      %s44 = ssub.s32 %s38, 2
      %s51 = sadd.s32 1, %s46
      %p52 = scmp.ge.s32.totalorder %s51, 2
      %s53 = scalar_select %p52, 0, %s51
      %s54 = sadd.s32 1, %s45
      %s55 = scalar_select %p52, %s54, %s45
      %p56 = scmp.ge.s32.totalorder %s55, 2
      %s57 = scalar_select %p56, 0, %s55
      %s58 = ssub.s32 %s45, %s57
      %s59 = ssub.s32 %s46, %s53
      %s60 = sor.u32 %s58, %s59
      %p61 = scmp.eq.s32.totalorder %s60, 0
      %s63 = sadd.s32 %s62, 1
      %s64 = scalar_select %p61, %s62, %s63
      %p67 = pneg %p61
      %p68 = scmp.eq.s32.totalorder %s38, 3
      %p69 = por %p67, %p68
      %p70 = scmp.ne.s32.totalorder %s62, %s65
      %p71 = scmp.eq.s32.totalorder %s38, 0
      %p72 = por %p70, %p71
      %p73 = scmp.ne.s32.totalorder %s62, %s65
      %p74 = scmp.eq.s32.totalorder %s43, 3
      %p75 = por %p73, %p74
      %p76 = scmp.ne.s32.totalorder %s65, %s66
      %p77 = scmp.eq.s32.totalorder %s43, 0
      %p78 = por %p76, %p77
      %p79 = scmp.ne.s32.totalorder %s65, %s66
      %p80 = scmp.eq.s32.totalorder %s44, 3
      %p81 = por %p79, %p80
      %p83 = scmp.ne.s32.totalorder %s66, %s82
      %p84 = scmp.eq.s32.totalorder %s44, 0
      %p85 = por %p83, %p84
      %s87 = sadd.s32 %s86, 1
      %p90 = scmp.eq.s32.totalorder %s38, 3
      %p91 = scmp.ne.s32.totalorder %s86, %s88
      %p92 = scmp.eq.s32.totalorder %s38, 0
      %p93 = por %p91, %p92
      %p94 = scmp.ne.s32.totalorder %s86, %s88
      %p95 = scmp.eq.s32.totalorder %s43, 3
      %p96 = por %p94, %p95
      %p97 = scmp.ne.s32.totalorder %s88, %s89
      %p98 = scmp.eq.s32.totalorder %s43, 0
      %p99 = por %p97, %p98
      %p100 = scmp.ne.s32.totalorder %s88, %s89
      %p101 = scmp.eq.s32.totalorder %s44, 3
      %p102 = por %p100, %p101
      %p104 = scmp.ne.s32.totalorder %s89, %s103
      %p105 = scmp.eq.s32.totalorder %s44, 0
      %p106 = por %p104, %p105
      %s108 = sadd.s32 %s107, 1
      %p111 = scmp.eq.s32.totalorder %s38, 3
      %p112 = scmp.ne.s32.totalorder %s107, %s109
      %p113 = scmp.eq.s32.totalorder %s38, 0
      %p114 = por %p112, %p113
      %p115 = scmp.ne.s32.totalorder %s107, %s109
      %p116 = scmp.eq.s32.totalorder %s43, 3
      %p117 = por %p115, %p116
      %p118 = scmp.ne.s32.totalorder %s109, %s110
      %p119 = scmp.eq.s32.totalorder %s43, 0
      %p120 = por %p118, %p119
      %p121 = scmp.ne.s32.totalorder %s109, %s110
      %p122 = scmp.eq.s32.totalorder %s44, 3
      %p123 = por %p121, %p122
      %p125 = scmp.ne.s32.totalorder %s110, %s124
      %p126 = scmp.eq.s32.totalorder %s44, 0
      %p127 = por %p125, %p126
      %s129 = sadd.s32 %s128, 1
      %p132 = scmp.eq.s32.totalorder %s38, 3
      %p133 = scmp.ne.s32.totalorder %s128, %s130
      %p134 = scmp.eq.s32.totalorder %s38, 0
      %p135 = por %p133, %p134
      %p136 = scmp.ne.s32.totalorder %s128, %s130
      %p137 = scmp.eq.s32.totalorder %s43, 3
      %p138 = por %p136, %p137
      %p139 = scmp.ne.s32.totalorder %s130, %s131
      %p140 = scmp.eq.s32.totalorder %s43, 0
      %p141 = por %p139, %p140
      %p142 = scmp.ne.s32.totalorder %s130, %s131
      %p143 = scmp.eq.s32.totalorder %s44, 3
      %p144 = por %p142, %p143
      %p146 = scmp.ne.s32.totalorder %s131, %s145
      %p147 = scmp.eq.s32.totalorder %s44, 0
      %p148 = por %p146, %p147
      %s150 = sadd.s32 %s149, 1
      %p153 = scmp.eq.s32.totalorder %s38, 3
      %p154 = scmp.ne.s32.totalorder %s149, %s151
      %p155 = scmp.eq.s32.totalorder %s38, 0
      %p156 = por %p154, %p155
      %p157 = scmp.ne.s32.totalorder %s149, %s151
      %p158 = scmp.eq.s32.totalorder %s43, 3
      %p159 = por %p157, %p158
      %p160 = scmp.ne.s32.totalorder %s151, %s152
      %p161 = scmp.eq.s32.totalorder %s43, 0
      %p162 = por %p160, %p161
      %p163 = scmp.ne.s32.totalorder %s151, %s152
      %p164 = scmp.eq.s32.totalorder %s44, 3
      %p165 = por %p163, %p164
      %p167 = scmp.ne.s32.totalorder %s152, %s166
      %p168 = scmp.eq.s32.totalorder %s44, 0
      %p169 = por %p167, %p168
      %s171 = sadd.s32 %s170, 1
      %p174 = scmp.eq.s32.totalorder %s38, 3
      %p175 = scmp.ne.s32.totalorder %s170, %s172
      %p176 = scmp.eq.s32.totalorder %s38, 0
      %p177 = por %p175, %p176
      %p178 = scmp.ne.s32.totalorder %s170, %s172
      %p179 = scmp.eq.s32.totalorder %s43, 3
      %p180 = por %p178, %p179
      %p181 = scmp.ne.s32.totalorder %s172, %s173
      %p182 = scmp.eq.s32.totalorder %s43, 0
      %p183 = por %p181, %p182
      %p184 = scmp.ne.s32.totalorder %s172, %s173
      %p185 = scmp.eq.s32.totalorder %s44, 3
      %p186 = por %p184, %p185
      %p188 = scmp.ne.s32.totalorder %s173, %s187
      %p189 = scmp.eq.s32.totalorder %s44, 0
      %p190 = por %p188, %p189
      %s192 = sadd.s32 %s191, 1
      %p195 = scmp.eq.s32.totalorder %s38, 3
      %p196 = scmp.ne.s32.totalorder %s191, %s193
      %p197 = scmp.eq.s32.totalorder %s38, 0
      %p198 = por %p196, %p197
      %p199 = scmp.ne.s32.totalorder %s191, %s193
      %p200 = scmp.eq.s32.totalorder %s43, 3
      %p201 = por %p199, %p200
      %p202 = scmp.ne.s32.totalorder %s193, %s194
      %p203 = scmp.eq.s32.totalorder %s43, 0
      %p204 = por %p202, %p203
      %p205 = scmp.ne.s32.totalorder %s193, %s194
      %p206 = scmp.eq.s32.totalorder %s44, 3
      %p207 = por %p205, %p206
      %p209 = scmp.ne.s32.totalorder %s194, %s208
      %p210 = scmp.eq.s32.totalorder %s44, 0
      %p211 = por %p209, %p210
      %s213 = sadd.s32 %s212, 1
      %p216 = scmp.eq.s32.totalorder %s38, 3
      %p217 = scmp.ne.s32.totalorder %s212, %s214
      %p218 = scmp.eq.s32.totalorder %s38, 0
      %p219 = por %p217, %p218
      %p220 = scmp.ne.s32.totalorder %s212, %s214
      %p221 = scmp.eq.s32.totalorder %s43, 3
      %p222 = por %p220, %p221
      %p223 = scmp.ne.s32.totalorder %s214, %s215
      %p224 = scmp.eq.s32.totalorder %s43, 0
      %p225 = por %p223, %p224
      %p226 = scmp.ne.s32.totalorder %s214, %s215
      %p227 = scmp.eq.s32.totalorder %s44, 3
      %p228 = por %p226, %p227
      %p230 = scmp.ne.s32.totalorder %s215, %s229
      %p231 = scmp.eq.s32.totalorder %s44, 0
      %p232 = por %p230, %p231
      %s234 = sadd.s32 %s233, 1
      %p237 = scmp.eq.s32.totalorder %s38, 3
      %p238 = scmp.ne.s32.totalorder %s233, %s235
      %p239 = scmp.eq.s32.totalorder %s38, 0
      %p240 = por %p238, %p239
      %p241 = scmp.ne.s32.totalorder %s233, %s235
      %p242 = scmp.eq.s32.totalorder %s43, 3
      %p243 = por %p241, %p242
      %p244 = scmp.ne.s32.totalorder %s235, %s236
      %p245 = scmp.eq.s32.totalorder %s43, 0
      %p246 = por %p244, %p245
      %p247 = scmp.ne.s32.totalorder %s235, %s236
      %p248 = scmp.eq.s32.totalorder %s44, 3
      %p249 = por %p247, %p248
      %p251 = scmp.ne.s32.totalorder %s236, %s250
      %p252 = scmp.eq.s32.totalorder %s44, 0
      %p253 = por %p251, %p252
      %s255 = sadd.s32 %s254, 1
      %p258 = scmp.eq.s32.totalorder %s38, 3
      %p259 = scmp.ne.s32.totalorder %s254, %s256
      %p260 = scmp.eq.s32.totalorder %s38, 0
      %p261 = por %p259, %p260
      %p262 = scmp.ne.s32.totalorder %s254, %s256
      %p263 = scmp.eq.s32.totalorder %s43, 3
      %p264 = por %p262, %p263
      %p265 = scmp.ne.s32.totalorder %s256, %s257
      %p266 = scmp.eq.s32.totalorder %s43, 0
      %p267 = por %p265, %p266
      %p268 = scmp.ne.s32.totalorder %s256, %s257
      %p269 = scmp.eq.s32.totalorder %s44, 3
      %p270 = por %p268, %p269
      %p272 = scmp.ne.s32.totalorder %s257, %s271
      %p273 = scmp.eq.s32.totalorder %s44, 0
      %p274 = por %p272, %p273
      %s276 = sadd.s32 %s275, 1
      %p279 = scmp.eq.s32.totalorder %s38, 3
      %p280 = scmp.ne.s32.totalorder %s275, %s277
      %p281 = scmp.eq.s32.totalorder %s38, 0
      %p282 = por %p280, %p281
      %p283 = scmp.ne.s32.totalorder %s275, %s277
      %p284 = scmp.eq.s32.totalorder %s43, 3
      %p285 = por %p283, %p284
      %p286 = scmp.ne.s32.totalorder %s277, %s278
      %p287 = scmp.eq.s32.totalorder %s43, 0
      %p288 = por %p286, %p287
      %p289 = scmp.ne.s32.totalorder %s277, %s278
      %p290 = scmp.eq.s32.totalorder %s44, 3
      %p291 = por %p289, %p290
      %p293 = scmp.ne.s32.totalorder %s278, %s292
      %p294 = scmp.eq.s32.totalorder %s44, 0
      %p295 = por %p293, %p294
      %s297 = sadd.s32 %s296, 1
      %p300 = scmp.eq.s32.totalorder %s38, 3
      %p301 = scmp.ne.s32.totalorder %s296, %s298
      %p302 = scmp.eq.s32.totalorder %s38, 0
      %p303 = por %p301, %p302
      %p304 = scmp.ne.s32.totalorder %s296, %s298
      %p305 = scmp.eq.s32.totalorder %s43, 3
      %p306 = por %p304, %p305
      %p307 = scmp.ne.s32.totalorder %s298, %s299
      %p308 = scmp.eq.s32.totalorder %s43, 0
      %p309 = por %p307, %p308
      %p310 = scmp.ne.s32.totalorder %s298, %s299
      %p311 = scmp.eq.s32.totalorder %s44, 3
      %p312 = por %p310, %p311
      %p314 = scmp.ne.s32.totalorder %s299, %s313
      %p315 = scmp.eq.s32.totalorder %s44, 0
      %p316 = por %p314, %p315
      %s318 = sadd.s32 %s317, 1
      %p321 = scmp.eq.s32.totalorder %s38, 3
      %p322 = scmp.ne.s32.totalorder %s317, %s319
      %p323 = scmp.eq.s32.totalorder %s38, 0
      %p324 = por %p322, %p323
      %p325 = scmp.ne.s32.totalorder %s317, %s319
      %p326 = scmp.eq.s32.totalorder %s43, 3
      %p327 = por %p325, %p326
      %p328 = scmp.ne.s32.totalorder %s319, %s320
      %p329 = scmp.eq.s32.totalorder %s43, 0
      %p330 = por %p328, %p329
      %p331 = scmp.ne.s32.totalorder %s319, %s320
      %p332 = scmp.eq.s32.totalorder %s44, 3
      %p333 = por %p331, %p332
      %p335 = scmp.ne.s32.totalorder %s320, %s334
      %p336 = scmp.eq.s32.totalorder %s44, 0
      %p337 = por %p335, %p336
      %s339 = sadd.s32 %s338, 1
      %p342 = scmp.eq.s32.totalorder %s38, 3
      %p343 = scmp.ne.s32.totalorder %s338, %s340
      %p344 = scmp.eq.s32.totalorder %s38, 0
      %p345 = por %p343, %p344
      %p346 = scmp.ne.s32.totalorder %s338, %s340
      %p347 = scmp.eq.s32.totalorder %s43, 3
      %p348 = por %p346, %p347
      %p349 = scmp.ne.s32.totalorder %s340, %s341
      %p350 = scmp.eq.s32.totalorder %s43, 0
      %p351 = por %p349, %p350
      %p352 = scmp.ne.s32.totalorder %s340, %s341
      %p353 = scmp.eq.s32.totalorder %s44, 3
      %p354 = por %p352, %p353
      %p356 = scmp.ne.s32.totalorder %s341, %s355
      %p357 = scmp.eq.s32.totalorder %s44, 0
      %p358 = por %p356, %p357
      %s359 = ssub.s32 %s45, %s57
      %s360 = ssub.s32 %s46, %s53
      %s361 = sor.u32 %s359, %s360
      %p362 = scmp.eq.s32.totalorder %s361, 0
      %s364 = sadd.s32 %s363, 1
      %s365 = scalar_select %p362, %s363, %s364
      %p368 = pneg %p362
      %p369 = scmp.eq.s32.totalorder %s38, 3
      %p370 = por %p368, %p369
      %p371 = scmp.ne.s32.totalorder %s363, %s366
      %p372 = scmp.eq.s32.totalorder %s38, 0
      %p373 = por %p371, %p372
      %p374 = scmp.ne.s32.totalorder %s363, %s366
      %p375 = scmp.eq.s32.totalorder %s43, 3
      %p376 = por %p374, %p375
      %p377 = scmp.ne.s32.totalorder %s366, %s367
      %p378 = scmp.eq.s32.totalorder %s43, 0
      %p379 = por %p377, %p378
      %p380 = scmp.ne.s32.totalorder %s366, %s367
      %p381 = scmp.eq.s32.totalorder %s44, 3
      %p382 = por %p380, %p381
      %p384 = scmp.ne.s32.totalorder %s367, %s383
      %p385 = scmp.eq.s32.totalorder %s44, 0
      %p386 = por %p384, %p385
      %s387 = ssub.s32 %s45, %s57
      %s388 = ssub.s32 %s46, %s53
      %s389 = sor.u32 %s387, %s388
      %p390 = scmp.eq.s32.totalorder %s389, 0
      %s392 = sadd.s32 %s391, 1
      %s393 = scalar_select %p390, %s391, %s392
      %p396 = pneg %p390
      %p397 = scmp.eq.s32.totalorder %s38, 3
      %p398 = por %p396, %p397
      %p399 = scmp.ne.s32.totalorder %s391, %s394
      %p400 = scmp.eq.s32.totalorder %s38, 0
      %p401 = por %p399, %p400
      %p402 = scmp.ne.s32.totalorder %s391, %s394
      %p403 = scmp.eq.s32.totalorder %s43, 3
      %p404 = por %p402, %p403
      %p405 = scmp.ne.s32.totalorder %s394, %s395
      %p406 = scmp.eq.s32.totalorder %s43, 0
      %p407 = por %p405, %p406
      %p408 = scmp.ne.s32.totalorder %s394, %s395
      %p409 = scmp.eq.s32.totalorder %s44, 3
      %p410 = por %p408, %p409
      %p412 = scmp.ne.s32.totalorder %s395, %s411
      %p413 = scmp.eq.s32.totalorder %s44, 0
      %p414 = por %p412, %p413
      %p415 = scmp.le.s32.totalorder 1, %s38
      %p416 = scmp.lt.s32.totalorder %s38, 5
      %p417 = pnand %p415, %p416
      %p418 = pneg %p417
      // Predicated region
      $region9: #{tpu_custom_call.1} parent=5 // pred_check
        _
      $region10: #{tpu_custom_call.1} parent=5 // pred_check_branch
        %420 = sbr.rel (%p417) target = $region12
      $region11: #{tpu_custom_call.1} parent=5 // pred_region
        %s421 = ssub.s32 %s38, 1
        // Predicated region
        $region13: #{tpu_custom_call.1} parent=11 // pred_check
          %p422 = pneg %p99
        $region14: #{tpu_custom_call.1} parent=11 // pred_check_branch
          %424 = sbr.rel (%p422) target = $region16
        $region15: #{tpu_custom_call.1} parent=11 // pred_region
          %s426 = ssub.s32 16, 16
          %427 = vsyncadd [#allocation12], %s426
          %s429 = sshll.u32 [#allocation11], 4
          %s430 = int_to_ptr.vmem [resolvable:$true] %s429
          %432 = dma.hbm_to_vmem [thread:$0]  %s1, 16, %s430, [#allocation12]
        $region16: #{tpu_custom_call.1} parent=11 // pred_fallthru
          _
        // Predicated region
        $region17: #{tpu_custom_call.1} parent=11 // pred_check
          %p433 = pneg %p120
        $region18: #{tpu_custom_call.1} parent=11 // pred_check_branch
          %435 = sbr.rel (%p433) target = $region20
        $region19: #{tpu_custom_call.1} parent=11 // pred_region
          %s437 = ssub.s32 256, 256
          %438 = vsyncadd [#allocation12], %s437
          %s439 = sshll.u32 [#allocation13], 4
          %s440 = int_to_ptr.vmem [resolvable:$true] %s439
          %445 = dma.hbm_to_vmem [thread:$0]  %s2, 256, %s440, [#allocation12], 64, 64, 4
        $region20: #{tpu_custom_call.1} parent=11 // pred_fallthru
          _
        // Predicated region
        $region21: #{tpu_custom_call.1} parent=11 // pred_check
          %p446 = pneg %p141
        $region22: #{tpu_custom_call.1} parent=11 // pred_check_branch
          %448 = sbr.rel (%p446) target = $region24
        $region23: #{tpu_custom_call.1} parent=11 // pred_region
          %s450 = ssub.s32 256, 256
          %451 = vsyncadd [#allocation15], %s450
          %s452 = sshll.u32 [#allocation14], 4
          %s453 = int_to_ptr.vmem [resolvable:$true] %s452
          %458 = dma.hbm_to_vmem [thread:$0]  %s3, 256, %s453, [#allocation15], 64, 64, 4
        $region24: #{tpu_custom_call.1} parent=11 // pred_fallthru
          _
        // Predicated region
        $region25: #{tpu_custom_call.1} parent=11 // pred_check
          %p459 = pneg %p162
        $region26: #{tpu_custom_call.1} parent=11 // pred_check_branch
          %461 = sbr.rel (%p459) target = $region28
        $region27: #{tpu_custom_call.1} parent=11 // pred_region
          %s463 = ssub.s32 64, 64
          %464 = vsyncadd [#allocation15], %s463
          %s466 = sshll.u32 [#allocation16], 4
          %s467 = int_to_ptr.vmem [resolvable:$true] %s466
          %469 = dma.hbm_to_vmem [thread:$0]  %s4, 64, %s467, [#allocation15]
        $region28: #{tpu_custom_call.1} parent=11 // pred_fallthru
          _
        // Predicated region
        $region29: #{tpu_custom_call.1} parent=11 // pred_check
          %p470 = pneg %p183
        $region30: #{tpu_custom_call.1} parent=11 // pred_check_branch
          %472 = sbr.rel (%p470) target = $region32
        $region31: #{tpu_custom_call.1} parent=11 // pred_region
          %s474 = ssub.s32 16, 16
          %475 = vsyncadd [#allocation18], %s474
          %s477 = sshll.u32 [#allocation17], 4
          %s478 = int_to_ptr.vmem [resolvable:$true] %s477
          %480 = dma.hbm_to_vmem [thread:$0]  %s5, 16, %s478, [#allocation18]
        $region32: #{tpu_custom_call.1} parent=11 // pred_fallthru
          _
        // Predicated region
        $region33: #{tpu_custom_call.1} parent=11 // pred_check
          %p481 = pneg %p204
        $region34: #{tpu_custom_call.1} parent=11 // pred_check_branch
          %483 = sbr.rel (%p481) target = $region36
        $region35: #{tpu_custom_call.1} parent=11 // pred_region
          %s485 = ssub.s32 512, 512
          %486 = vsyncadd [#allocation18], %s485
          %s487 = sshll.u32 [#allocation19], 4
          %s488 = int_to_ptr.vmem [resolvable:$true] %s487
          %493 = dma.hbm_to_vmem [thread:$0]  %s6, 512, %s488, [#allocation18], 64, 64, 4
        $region36: #{tpu_custom_call.1} parent=11 // pred_fallthru
          _
        // Predicated region
        $region37: #{tpu_custom_call.1} parent=11 // pred_check
          %p494 = pneg %p225
        $region38: #{tpu_custom_call.1} parent=11 // pred_check_branch
          %496 = sbr.rel (%p494) target = $region40
        $region39: #{tpu_custom_call.1} parent=11 // pred_region
          %s498 = ssub.s32 512, 512
          %499 = vsyncadd [#allocation21], %s498
          %s500 = sshll.u32 [#allocation20], 4
          %s501 = int_to_ptr.vmem [resolvable:$true] %s500
          %506 = dma.hbm_to_vmem [thread:$0]  %s7, 512, %s501, [#allocation21], 64, 64, 4
        $region40: #{tpu_custom_call.1} parent=11 // pred_fallthru
          _
        // Predicated region
        $region41: #{tpu_custom_call.1} parent=11 // pred_check
          %p507 = pneg %p246
        $region42: #{tpu_custom_call.1} parent=11 // pred_check_branch
          %509 = sbr.rel (%p507) target = $region44
        $region43: #{tpu_custom_call.1} parent=11 // pred_region
          %s511 = ssub.s32 512, 512
          %512 = vsyncadd [#allocation21], %s511
          %s513 = sshll.u32 [#allocation22], 4
          %s514 = int_to_ptr.vmem [resolvable:$true] %s513
          %519 = dma.hbm_to_vmem [thread:$0]  %s8, 512, %s514, [#allocation21], 64, 64, 4
        $region44: #{tpu_custom_call.1} parent=11 // pred_fallthru
          _
        // Predicated region
        $region45: #{tpu_custom_call.1} parent=11 // pred_check
          %p520 = pneg %p267
        $region46: #{tpu_custom_call.1} parent=11 // pred_check_branch
          %522 = sbr.rel (%p520) target = $region48
        $region47: #{tpu_custom_call.1} parent=11 // pred_region
          %s524 = ssub.s32 1024, 1024
          %525 = vsyncadd [#allocation24], %s524
          %s526 = sshll.u32 [#allocation23], 4
          %s527 = int_to_ptr.vmem [resolvable:$true] %s526
          %532 = dma.hbm_to_vmem [thread:$0]  %s9, 1024, %s527, [#allocation24], 64, 64, 4
        $region48: #{tpu_custom_call.1} parent=11 // pred_fallthru
          _
        // Predicated region
        $region49: #{tpu_custom_call.1} parent=11 // pred_check
          %p533 = pneg %p288
        $region50: #{tpu_custom_call.1} parent=11 // pred_check_branch
          %535 = sbr.rel (%p533) target = $region52
        $region51: #{tpu_custom_call.1} parent=11 // pred_region
          %s537 = ssub.s32 16, 16
          %538 = vsyncadd [#allocation24], %s537
          %s540 = sshll.u32 [#allocation25], 4
          %s541 = int_to_ptr.vmem [resolvable:$true] %s540
          %543 = dma.hbm_to_vmem [thread:$0]  %s10, 16, %s541, [#allocation24]
        $region52: #{tpu_custom_call.1} parent=11 // pred_fallthru
          _
        // Predicated region
        $region53: #{tpu_custom_call.1} parent=11 // pred_check
          %p544 = pneg %p309
        $region54: #{tpu_custom_call.1} parent=11 // pred_check_branch
          %546 = sbr.rel (%p544) target = $region56
        $region55: #{tpu_custom_call.1} parent=11 // pred_region
          %s548 = ssub.s32 256, 256
          %549 = vsyncadd [#allocation27], %s548
          %s550 = sshll.u32 [#allocation26], 4
          %s551 = int_to_ptr.vmem [resolvable:$true] %s550
          %556 = dma.hbm_to_vmem [thread:$0]  %s11, 256, %s551, [#allocation27], 128, 128, 8
        $region56: #{tpu_custom_call.1} parent=11 // pred_fallthru
          _
        // Predicated region
        $region57: #{tpu_custom_call.1} parent=11 // pred_check
          %p557 = pneg %p330
        $region58: #{tpu_custom_call.1} parent=11 // pred_check_branch
          %559 = sbr.rel (%p557) target = $region60
        $region59: #{tpu_custom_call.1} parent=11 // pred_region
          %s561 = ssub.s32 16, 16
          %562 = vsyncadd [#allocation27], %s561
          %s564 = sshll.u32 [#allocation28], 4
          %s565 = int_to_ptr.vmem [resolvable:$true] %s564
          %567 = dma.hbm_to_vmem [thread:$0]  %s12, 16, %s565, [#allocation27]
        $region60: #{tpu_custom_call.1} parent=11 // pred_fallthru
          _
        // Predicated region
        $region61: #{tpu_custom_call.1} parent=11 // pred_check
          %p568 = pneg %p351
        $region62: #{tpu_custom_call.1} parent=11 // pred_check_branch
          %570 = sbr.rel (%p568) target = $region64
        $region63: #{tpu_custom_call.1} parent=11 // pred_region
          %s572 = ssub.s32 512, 512
          %573 = vsyncadd [#allocation30], %s572
          %s574 = sshll.u32 [#allocation29], 4
          %s575 = int_to_ptr.vmem [resolvable:$true] %s574
          %580 = dma.hbm_to_vmem [thread:$0]  %s13, 512, %s575, [#allocation30], 64, 64, 4
        $region64: #{tpu_custom_call.1} parent=11 // pred_fallthru
          _
      $region12: #{tpu_custom_call.1} parent=5 // pred_fallthru
        _
      %p581 = scmp.lt.s32.totalorder %s38, 4
      // Predicated region
      $region65: #{tpu_custom_call.1} parent=5 // pred_check
        %p582 = pneg %p581
      $region66: #{tpu_custom_call.1} parent=5 // pred_check_branch
        %584 = sbr.rel (%p582) target = $region68
      $region67: #{tpu_custom_call.1} parent=5 // pred_region
        // Predicated region
        $region69: #{tpu_custom_call.1} parent=67 // pred_check
          %p585 = pneg %p72
        $region70: #{tpu_custom_call.1} parent=67 // pred_check_branch
          %587 = sbr.rel (%p585) target = $region72
        $region71: #{tpu_custom_call.1} parent=67 // pred_region
          %s588 = sand.u32 %s62, 1
          %s589 = scalar_lea.sflag [#allocation9], %s588
          %s590 = sand.u32 %s62, 1
          %s591 = smul.addr %s590, 8
          %s592 = scalar_lea.vmem [#allocation8], %s591
          %s594 = ssub.s32 128, 128
          %595 = vsyncadd %s589, %s594
          %s596 = smul.addr %s45, 2
          %s597 = sadd.s32 %s46, %s596
          %s598 = smul.addr %s597, 128
          %s599 = scalar_lea.hbm %s0, %s598
          %s601 = sshll.u32 %s592, 4
          %s602 = int_to_ptr.vmem [resolvable:$true] %s601
          %604 = dma.hbm_to_vmem [thread:$0]  %s599, 128, %s602, %s589
        $region72: #{tpu_custom_call.1} parent=67 // pred_fallthru
          _
      $region68: #{tpu_custom_call.1} parent=5 // pred_fallthru
        _
      %p605 = scmp.le.s32.totalorder 1, %s38
      %p606 = scmp.lt.s32.totalorder %s38, 5
      %p607 = pnand %p605, %p606
      %p608 = pneg %p607
      // Predicated region
      $region73: #{tpu_custom_call.1} parent=5 // pred_check
        _
      $region74: #{tpu_custom_call.1} parent=5 // pred_check_branch
        %610 = sbr.rel (%p607) target = $region76
      $region75: #{tpu_custom_call.1} parent=5 // pred_region
        %s611 = ssub.s32 %s38, 1
        %s612 = sand.u32 %s65, 1
        %s613 = scalar_lea.sflag [#allocation9], %s612
        %s614 = sand.u32 %s65, 1
        %s615 = smul.addr %s614, 8
        %s616 = scalar_lea.vmem [#allocation8], %s615
        // Predicated region
        $region77: #{tpu_custom_call.1} parent=75 // pred_check
          %p617 = pneg %p78
        $region78: #{tpu_custom_call.1} parent=75 // pred_check_branch
          %619 = sbr.rel (%p617) target = $region80
        $region79: #{tpu_custom_call.1} parent=75 // pred_region
          %620 = dma.done %s613, 128
        $region80: #{tpu_custom_call.1} parent=75 // pred_fallthru
          _
        // Predicated region
        $region81: #{tpu_custom_call.1} parent=75 // pred_check
          %p621 = pneg %p99
        $region82: #{tpu_custom_call.1} parent=75 // pred_check_branch
          %623 = sbr.rel (%p621) target = $region84
        $region83: #{tpu_custom_call.1} parent=75 // pred_region
          %624 = dma.done [#allocation12], 16
        $region84: #{tpu_custom_call.1} parent=75 // pred_fallthru
          _
        // Predicated region
        $region85: #{tpu_custom_call.1} parent=75 // pred_check
          %p625 = pneg %p120
        $region86: #{tpu_custom_call.1} parent=75 // pred_check_branch
          %627 = sbr.rel (%p625) target = $region88
        $region87: #{tpu_custom_call.1} parent=75 // pred_region
          %628 = dma.done [#allocation12], 256
        $region88: #{tpu_custom_call.1} parent=75 // pred_fallthru
          _
        // Predicated region
        $region89: #{tpu_custom_call.1} parent=75 // pred_check
          %p629 = pneg %p141
        $region90: #{tpu_custom_call.1} parent=75 // pred_check_branch
          %631 = sbr.rel (%p629) target = $region92
        $region91: #{tpu_custom_call.1} parent=75 // pred_region
          %632 = dma.done [#allocation15], 256
        $region92: #{tpu_custom_call.1} parent=75 // pred_fallthru
          _
        // Predicated region
        $region93: #{tpu_custom_call.1} parent=75 // pred_check
          %p633 = pneg %p162
        $region94: #{tpu_custom_call.1} parent=75 // pred_check_branch
          %635 = sbr.rel (%p633) target = $region96
        $region95: #{tpu_custom_call.1} parent=75 // pred_region
          %636 = dma.done [#allocation15], 64
        $region96: #{tpu_custom_call.1} parent=75 // pred_fallthru
          _
        // Predicated region
        $region97: #{tpu_custom_call.1} parent=75 // pred_check
          %p637 = pneg %p183
        $region98: #{tpu_custom_call.1} parent=75 // pred_check_branch
          %639 = sbr.rel (%p637) target = $region100
        $region99: #{tpu_custom_call.1} parent=75 // pred_region
          %640 = dma.done [#allocation18], 16
        $region100: #{tpu_custom_call.1} parent=75 // pred_fallthru
          _
        // Predicated region
        $region101: #{tpu_custom_call.1} parent=75 // pred_check
          %p641 = pneg %p204
        $region102: #{tpu_custom_call.1} parent=75 // pred_check_branch
          %643 = sbr.rel (%p641) target = $region104
        $region103: #{tpu_custom_call.1} parent=75 // pred_region
          %644 = dma.done [#allocation18], 512
        $region104: #{tpu_custom_call.1} parent=75 // pred_fallthru
          _
        // Predicated region
        $region105: #{tpu_custom_call.1} parent=75 // pred_check
          %p645 = pneg %p225
        $region106: #{tpu_custom_call.1} parent=75 // pred_check_branch
          %647 = sbr.rel (%p645) target = $region108
        $region107: #{tpu_custom_call.1} parent=75 // pred_region
          %648 = dma.done [#allocation21], 512
        $region108: #{tpu_custom_call.1} parent=75 // pred_fallthru
          _
        // Predicated region
        $region109: #{tpu_custom_call.1} parent=75 // pred_check
          %p649 = pneg %p246
        $region110: #{tpu_custom_call.1} parent=75 // pred_check_branch
          %651 = sbr.rel (%p649) target = $region112
        $region111: #{tpu_custom_call.1} parent=75 // pred_region
          %652 = dma.done [#allocation21], 512
        $region112: #{tpu_custom_call.1} parent=75 // pred_fallthru
          _
        // Predicated region
        $region113: #{tpu_custom_call.1} parent=75 // pred_check
          %p653 = pneg %p267
        $region114: #{tpu_custom_call.1} parent=75 // pred_check_branch
          %655 = sbr.rel (%p653) target = $region116
        $region115: #{tpu_custom_call.1} parent=75 // pred_region
          %656 = dma.done [#allocation24], 1024
        $region116: #{tpu_custom_call.1} parent=75 // pred_fallthru
          _
        // Predicated region
        $region117: #{tpu_custom_call.1} parent=75 // pred_check
          %p657 = pneg %p288
        $region118: #{tpu_custom_call.1} parent=75 // pred_check_branch
          %659 = sbr.rel (%p657) target = $region120
        $region119: #{tpu_custom_call.1} parent=75 // pred_region
          %660 = dma.done [#allocation24], 16
        $region120: #{tpu_custom_call.1} parent=75 // pred_fallthru
          _
        // Predicated region
        $region121: #{tpu_custom_call.1} parent=75 // pred_check
          %p661 = pneg %p309
        $region122: #{tpu_custom_call.1} parent=75 // pred_check_branch
          %663 = sbr.rel (%p661) target = $region124
        $region123: #{tpu_custom_call.1} parent=75 // pred_region
          %664 = dma.done [#allocation27], 256
        $region124: #{tpu_custom_call.1} parent=75 // pred_fallthru
          _
        // Predicated region
        $region125: #{tpu_custom_call.1} parent=75 // pred_check
          %p665 = pneg %p330
        $region126: #{tpu_custom_call.1} parent=75 // pred_check_branch
          %667 = sbr.rel (%p665) target = $region128
        $region127: #{tpu_custom_call.1} parent=75 // pred_region
          %668 = dma.done [#allocation27], 16
        $region128: #{tpu_custom_call.1} parent=75 // pred_fallthru
          _
        // Predicated region
        $region129: #{tpu_custom_call.1} parent=75 // pred_check
          %p669 = pneg %p351
        $region130: #{tpu_custom_call.1} parent=75 // pred_check_branch
          %671 = sbr.rel (%p669) target = $region132
        $region131: #{tpu_custom_call.1} parent=75 // pred_region
          %672 = dma.done [#allocation30], 512
        $region132: #{tpu_custom_call.1} parent=75 // pred_fallthru
          _
        %s673 = sand.u32 %s65, 1
        %s674 = scalar_lea.sflag [#allocation9], %s673
        %s675 = sand.u32 %s65, 1
        %s676 = smul.addr %s675, 8
        %s677 = scalar_lea.vmem [#allocation8], %s676
        %p678 = pneg %p78
        %p679 = pneg %p75
        %p680 = pneg %p99
        %p681 = pneg %p96
        %p682 = pneg %p120
        %p683 = pneg %p117
        %p684 = pneg %p141
        %p685 = pneg %p138
        %p686 = pneg %p162
        %p687 = pneg %p159
        %p688 = pneg %p183
        %p689 = pneg %p180
        %p690 = pneg %p204
        %p691 = pneg %p201
        %p692 = pneg %p225
        %p693 = pneg %p222
        %p694 = pneg %p246
        %p695 = pneg %p243
        %p696 = pneg %p267
        %p697 = pneg %p264
        %p698 = pneg %p288
        %p699 = pneg %p285
        %p700 = pneg %p309
        %p701 = pneg %p306
        %p702 = pneg %p330
        %p703 = pneg %p327
        %p704 = pneg %p351
        %p705 = pneg %p348
        %p706 = pneg %p379
        %p707 = pneg %p376
        %s708 = sand.u32 %s366, 1
        %s709 = scalar_lea.sflag [#allocation10], %s708
        %s710 = sand.u32 %s366, 1
        %s711 = smul.addr %s710, 8
        %s712 = scalar_lea.vmem [#allocation31], %s711
        %p713 = pneg %p407
        %p714 = pneg %p404
        %s715 = sand.u32 %s394, 1
        %s716 = scalar_lea.sflag [#allocation33], %s715
        %s717 = sand.u32 %s394, 1
        %s718 = smul.addr %s717, 8
        %s719 = scalar_lea.vmem [#allocation32], %s718
        %v721 = vld [vmem:[%s616] sm:$0xff]
        %vm722 = vcmask 261120
        %723 = vst.msk [vmem:[%s719] sm:$0xff] %vm722, %v721
        %v724 = vmul.f32 %v721, %v721
        %v725 = vsel %vm722, %v724, 0.0
        %726 = vadd.xlane.f32.xlu0 %v725
        %v727 = vpop.xlane.xlu0 %726
        %v728 = vrcp.pop 32.0
        %v729 = vmul.f32 %v727, %v728
        %v730 = vadd.f32 %v729, 1e-05
        %v731 = vrsqrt.pop %v730
        %v732 = vmul.f32 %v721, %v731
        %v733 = vld [vmem:[#allocation11] sm:$0x1]
        %v735 = vlaneseq
        %v736 = vshrl.u32 %v735, 7
        %v737 = vsub.s32 0, %v736
        %v738 = vrot.slane %v733, %v737
        %v740 = vmul.f32 %v732, %v738
        %v741 = vpack.c.bf16 %v740, %v740
        %v742 = vld [vmem:[#allocation13] sm:$0xf]
        %v743 = vld [vmem:[#allocation13 + $0x4] sm:$0xf]
        %v744 = vld [vmem:[#allocation13 + $0x8] sm:$0xf]
        %v745 = vld [vmem:[#allocation13 + $0xc] sm:$0xf]
        %v750 = vunpack.c.l.b16 %v742
        %v751 = vunpack.c.l.b16 %v743
        %v752 = vunpack.c.l.b16 %v744
        %v753 = vunpack.c.l.b16 %v745
        %v754 = vpack.c.b16 %v751, %v750
        %v755 = vpack.c.b16 %v753, %v752
        %v759 = vsel %vm722, %v741, 0
        %761 = vmatprep.subr.bf16.mxu0 0
        %762 = vmatpush1.bf16.msra.mxu0 %v754
        %763 = vmatprep.subr.bf16.mxu0 0
        %764 = vmatpush1.bf16.msra.mxu0 %v755
        %765 = vmatprep.subr.bf16.mxu0 0
        %766 = vmatpush1.bf16.msra.mxu0 0
        %767 = vmatprep.subr.bf16.mxu0 0
        %768 = vmatpush1.bf16.msra.mxu0 0
        %769 = vmatprep.subr.bf16.mxu0 0
        %770 = vmatpush1.bf16.msra.mxu0 0
        %771 = vmatprep.subr.bf16.mxu0 0
        %772 = vmatpush1.bf16.msra.mxu0 0
        %773 = vmatprep.subr.bf16.mxu0 0
        %774 = vmatpush1.bf16.msra.mxu0 0
        %775 = vmatprep.subr.bf16.mxu0 0
        %776 = vmatpush1.bf16.msra.mxu0 0
        %777 = vmatprep.subr.bf16.mxu0 0
        %778 = vmatpush1.bf16.msra.mxu0 0
        %779 = vmatprep.subr.bf16.mxu0 0
        %780 = vmatpush1.bf16.msra.mxu0 0
        %781 = vmatprep.subr.bf16.mxu0 0
        %782 = vmatpush1.bf16.msra.mxu0 0
        %783 = vmatprep.subr.bf16.mxu0 0
        %784 = vmatpush1.bf16.msra.mxu0 0
        %785 = vmatprep.subr.bf16.mxu0 0
        %786 = vmatpush1.bf16.msra.mxu0 0
        %787 = vmatprep.subr.bf16.mxu0 0
        %788 = vmatpush1.bf16.msra.mxu0 0
        %789 = vmatprep.subr.bf16.mxu0 0
        %790 = vmatpush1.bf16.msra.mxu0 0
        %791 = vmatprep.subr.bf16.mxu0 0
        %792 = vmatpush1.bf16.msra.mxu0 0
        %793 = vmatprep.mubr.bf16.mxu0 0
        %794 = vmatmul.mubr.bf16.gmra.mrb[0].mxu0 %v759
        %v795 = vpop.f32.mrb[0].mxu0
        %v796 = vadd.f32 0.0, %v795
        %v797 = vpop.f32.mrb[0].mxu0
        %v798 = vpop.f32.mrb[0].mxu0
        %v799 = vpop.f32.mrb[0].mxu0
        %800 = vdwg.mxu0
        %v801 = vld [vmem:[#allocation14] sm:$0xf]
        %v802 = vld [vmem:[#allocation14 + $0x4] sm:$0xf]
        %v803 = vld [vmem:[#allocation14 + $0x8] sm:$0xf]
        %v804 = vld [vmem:[#allocation14 + $0xc] sm:$0xf]
        %v809 = vunpack.c.l.b16 %v801
        %v810 = vunpack.c.l.b16 %v802
        %v811 = vunpack.c.l.b16 %v803
        %v812 = vunpack.c.l.b16 %v804
        %v813 = vpack.c.b16 %v810, %v809
        %v814 = vpack.c.b16 %v812, %v811
        %817 = vmatprep.subr.bf16.mxu0 0
        %818 = vmatpush1.bf16.msra.mxu0 %v813
        %819 = vmatprep.subr.bf16.mxu0 0
        %820 = vmatpush1.bf16.msra.mxu0 %v814
        %821 = vmatprep.subr.bf16.mxu0 0
        %822 = vmatpush1.bf16.msra.mxu0 0
        %823 = vmatprep.subr.bf16.mxu0 0
        %824 = vmatpush1.bf16.msra.mxu0 0
        %825 = vmatprep.subr.bf16.mxu0 0
        %826 = vmatpush1.bf16.msra.mxu0 0
        %827 = vmatprep.subr.bf16.mxu0 0
        %828 = vmatpush1.bf16.msra.mxu0 0
        %829 = vmatprep.subr.bf16.mxu0 0
        %830 = vmatpush1.bf16.msra.mxu0 0
        %831 = vmatprep.subr.bf16.mxu0 0
        %832 = vmatpush1.bf16.msra.mxu0 0
        %833 = vmatprep.subr.bf16.mxu0 0
        %834 = vmatpush1.bf16.msra.mxu0 0
        %835 = vmatprep.subr.bf16.mxu0 0
        %836 = vmatpush1.bf16.msra.mxu0 0
        %837 = vmatprep.subr.bf16.mxu0 0
        %838 = vmatpush1.bf16.msra.mxu0 0
        %839 = vmatprep.subr.bf16.mxu0 0
        %840 = vmatpush1.bf16.msra.mxu0 0
        %841 = vmatprep.subr.bf16.mxu0 0
        %842 = vmatpush1.bf16.msra.mxu0 0
        %843 = vmatprep.subr.bf16.mxu0 0
        %844 = vmatpush1.bf16.msra.mxu0 0
        %845 = vmatprep.subr.bf16.mxu0 0
        %846 = vmatpush1.bf16.msra.mxu0 0
        %847 = vmatprep.subr.bf16.mxu0 0
        %848 = vmatpush1.bf16.msra.mxu0 0
        %849 = vmatprep.mubr.bf16.mxu0 0
        %850 = vmatmul.mubr.bf16.gmra.mrb[0].mxu0 %v759
        %v851 = vpop.f32.mrb[0].mxu0
        %v852 = vadd.f32 0.0, %v851
        %v853 = vpop.f32.mrb[0].mxu0
        %v854 = vpop.f32.mrb[0].mxu0
        %v855 = vpop.f32.mrb[0].mxu0
        %856 = vdwg.mxu0
        %p857 = scmp.eq.s32.totalorder %s48, 0
        // Predicated region
        $region133: #{tpu_custom_call.1} parent=75 // pred_check
          %p858 = pneg %p857
        $region134: #{tpu_custom_call.1} parent=75 // pred_check_branch
          %860 = sbr.rel (%p858) target = $region136
        $region135: #{tpu_custom_call.1} parent=75 // pred_region
          %vm861 = vcmask 518144
          %862 = vst.msk [vmem:[#allocation2] sm:$0x7] %vm861, 0.0
        $region136: #{tpu_custom_call.1} parent=75 // pred_fallthru
          _
        %vm863 = vcmask 523264
        %864 = vst.msk [vmem:[#allocation2 + $0x3] sm:$0xff] %vm863, %v796
        %v865 = vld [vmem:[#allocation17] sm:$0x1]
        %v867 = vlaneseq
        %v868 = vshrl.u32 %v867, 7
        %v869 = vsub.s32 0, %v868
        %v870 = vrot.slane %v865, %v869
        %v872 = vadd.f32 %v870, 0.0
        %v873 = vld [vmem:[#allocation2] sm:$0xff]
        %v874 = vld [vmem:[#allocation16] sm:$0x1]
        %v875 = vlaneseq
        %v876 = vshrl.u32 %v875, 7
        %v877 = vsub.s32 0, %v876
        %v878 = vrot.slane %v874, %v877
        %v879 = vmul.f32 %v873, %v878
        %v880 = vadd.f32 %v872, %v879
        %v881 = vld [vmem:[#allocation2 + $0x1] sm:$0xff]
        %v882 = vld [vmem:[#allocation16 + $0x1] sm:$0x1]
        %v883 = vlaneseq
        %v884 = vshrl.u32 %v883, 7
        %v885 = vsub.s32 0, %v884
        %v886 = vrot.slane %v882, %v885
        %v887 = vmul.f32 %v881, %v886
        %v888 = vadd.f32 %v880, %v887
        %v889 = vld [vmem:[#allocation2 + $0x2] sm:$0xff]
        %v890 = vld [vmem:[#allocation16 + $0x2] sm:$0x1]
        %v891 = vlaneseq
        %v892 = vshrl.u32 %v891, 7
        %v893 = vsub.s32 0, %v892
        %v894 = vrot.slane %v890, %v893
        %v895 = vmul.f32 %v889, %v894
        %v896 = vadd.f32 %v888, %v895
        %v897 = vld [vmem:[#allocation2 + $0x3] sm:$0xff]
        %v898 = vld [vmem:[#allocation16 + $0x3] sm:$0x1]
        %v899 = vlaneseq
        %v900 = vshrl.u32 %v899, 7
        %v901 = vsub.s32 0, %v900
        %v902 = vrot.slane %v898, %v901
        %v903 = vmul.f32 %v897, %v902
        %v904 = vadd.f32 %v896, %v903
        %v905 = vld [vmem:[#allocation2 + $0x8] sm:$0x7]
        %vm906 = vcmask 518144
        %907 = vst.msk [vmem:[#allocation2] sm:$0x7] %vm906, %v905
        %v908 = vxor.u32 %v904, 2147483648
        %v909 = vmul.f32 %v908, 1.442695
        %v910 = vpow.pop %v909
        %v911 = vadd.f32 %v910, 1.0
        %v912 = vrcp.pop %v911
        %v913 = vmul.f32 1.0, %v912
        %v914 = vmul.f32 %v904, %v913
        %v915 = vpack.c.bf16 %v914, %v914
        %v916 = vld [vmem:[#allocation19] sm:$0xf]
        %v917 = vld [vmem:[#allocation19 + $0x4] sm:$0xf]
        %v918 = vld [vmem:[#allocation19 + $0x8] sm:$0xf]
        %v919 = vld [vmem:[#allocation19 + $0xc] sm:$0xf]
        %v920 = vld [vmem:[#allocation19 + $0x10] sm:$0xf]
        %v921 = vld [vmem:[#allocation19 + $0x14] sm:$0xf]
        %v922 = vld [vmem:[#allocation19 + $0x18] sm:$0xf]
        %v923 = vld [vmem:[#allocation19 + $0x1c] sm:$0xf]
        %v932 = vunpack.c.l.b16 %v916
        %v933 = vunpack.c.l.b16 %v917
        %v934 = vunpack.c.l.b16 %v918
        %v935 = vunpack.c.l.b16 %v919
        %v936 = vunpack.c.l.b16 %v920
        %v937 = vunpack.c.l.b16 %v921
        %v938 = vunpack.c.l.b16 %v922
        %v939 = vunpack.c.l.b16 %v923
        %v940 = vpack.c.b16 %v933, %v932
        %v941 = vpack.c.b16 %v935, %v934
        %v942 = vpack.c.b16 %v937, %v936
        %v943 = vpack.c.b16 %v939, %v938
        %v949 = vsel %vm863, %v915, 0
        %951 = vmatprep.subr.bf16.mxu0 0
        %952 = vmatpush1.bf16.msra.mxu0 %v940
        %953 = vmatprep.subr.bf16.mxu0 0
        %954 = vmatpush1.bf16.msra.mxu0 %v941
        %955 = vmatprep.subr.bf16.mxu0 0
        %956 = vmatpush1.bf16.msra.mxu0 %v942
        %957 = vmatprep.subr.bf16.mxu0 0
        %958 = vmatpush1.bf16.msra.mxu0 %v943
        %959 = vmatprep.subr.bf16.mxu0 0
        %960 = vmatpush1.bf16.msra.mxu0 0
        %961 = vmatprep.subr.bf16.mxu0 0
        %962 = vmatpush1.bf16.msra.mxu0 0
        %963 = vmatprep.subr.bf16.mxu0 0
        %964 = vmatpush1.bf16.msra.mxu0 0
        %965 = vmatprep.subr.bf16.mxu0 0
        %966 = vmatpush1.bf16.msra.mxu0 0
        %967 = vmatprep.subr.bf16.mxu0 0
        %968 = vmatpush1.bf16.msra.mxu0 0
        %969 = vmatprep.subr.bf16.mxu0 0
        %970 = vmatpush1.bf16.msra.mxu0 0
        %971 = vmatprep.subr.bf16.mxu0 0
        %972 = vmatpush1.bf16.msra.mxu0 0
        %973 = vmatprep.subr.bf16.mxu0 0
        %974 = vmatpush1.bf16.msra.mxu0 0
        %975 = vmatprep.subr.bf16.mxu0 0
        %976 = vmatpush1.bf16.msra.mxu0 0
        %977 = vmatprep.subr.bf16.mxu0 0
        %978 = vmatpush1.bf16.msra.mxu0 0
        %979 = vmatprep.subr.bf16.mxu0 0
        %980 = vmatpush1.bf16.msra.mxu0 0
        %981 = vmatprep.subr.bf16.mxu0 0
        %982 = vmatpush1.bf16.msra.mxu0 0
        %983 = vmatprep.mubr.bf16.mxu0 0
        %984 = vmatmul.mubr.bf16.gmra.mrb[0].mxu0 %v949
        %v985 = vpop.f32.mrb[0].mxu0
        %v986 = vadd.f32 0.0, %v985
        %v987 = vpop.f32.mrb[0].mxu0
        %v988 = vpop.f32.mrb[0].mxu0
        %v989 = vpop.f32.mrb[0].mxu0
        %990 = vdwg.mxu0
        %v991 = vld [vmem:[#allocation20] sm:$0xf]
        %v992 = vld [vmem:[#allocation20 + $0x4] sm:$0xf]
        %v993 = vld [vmem:[#allocation20 + $0x8] sm:$0xf]
        %v994 = vld [vmem:[#allocation20 + $0xc] sm:$0xf]
        %v995 = vld [vmem:[#allocation20 + $0x10] sm:$0xf]
        %v996 = vld [vmem:[#allocation20 + $0x14] sm:$0xf]
        %v997 = vld [vmem:[#allocation20 + $0x18] sm:$0xf]
        %v998 = vld [vmem:[#allocation20 + $0x1c] sm:$0xf]
        %v1007 = vunpack.c.l.b16 %v991
        %v1008 = vunpack.c.l.b16 %v992
        %v1009 = vunpack.c.l.b16 %v993
        %v1010 = vunpack.c.l.b16 %v994
        %v1011 = vunpack.c.l.b16 %v995
        %v1012 = vunpack.c.l.b16 %v996
        %v1013 = vunpack.c.l.b16 %v997
        %v1014 = vunpack.c.l.b16 %v998
        %v1015 = vpack.c.b16 %v1008, %v1007
        %v1016 = vpack.c.b16 %v1010, %v1009
        %v1017 = vpack.c.b16 %v1012, %v1011
        %v1018 = vpack.c.b16 %v1014, %v1013
        %1023 = vmatprep.subr.bf16.mxu0 0
        %1024 = vmatpush1.bf16.msra.mxu0 %v1015
        %1025 = vmatprep.subr.bf16.mxu0 0
        %1026 = vmatpush1.bf16.msra.mxu0 %v1016
        %1027 = vmatprep.subr.bf16.mxu0 0
        %1028 = vmatpush1.bf16.msra.mxu0 %v1017
        %1029 = vmatprep.subr.bf16.mxu0 0
        %1030 = vmatpush1.bf16.msra.mxu0 %v1018
        %1031 = vmatprep.subr.bf16.mxu0 0
        %1032 = vmatpush1.bf16.msra.mxu0 0
        %1033 = vmatprep.subr.bf16.mxu0 0
        %1034 = vmatpush1.bf16.msra.mxu0 0
        %1035 = vmatprep.subr.bf16.mxu0 0
        %1036 = vmatpush1.bf16.msra.mxu0 0
        %1037 = vmatprep.subr.bf16.mxu0 0
        %1038 = vmatpush1.bf16.msra.mxu0 0
        %1039 = vmatprep.subr.bf16.mxu0 0
        %1040 = vmatpush1.bf16.msra.mxu0 0
        %1041 = vmatprep.subr.bf16.mxu0 0
        %1042 = vmatpush1.bf16.msra.mxu0 0
        %1043 = vmatprep.subr.bf16.mxu0 0
        %1044 = vmatpush1.bf16.msra.mxu0 0
        %1045 = vmatprep.subr.bf16.mxu0 0
        %1046 = vmatpush1.bf16.msra.mxu0 0
        %1047 = vmatprep.subr.bf16.mxu0 0
        %1048 = vmatpush1.bf16.msra.mxu0 0
        %1049 = vmatprep.subr.bf16.mxu0 0
        %1050 = vmatpush1.bf16.msra.mxu0 0
        %1051 = vmatprep.subr.bf16.mxu0 0
        %1052 = vmatpush1.bf16.msra.mxu0 0
        %1053 = vmatprep.subr.bf16.mxu0 0
        %1054 = vmatpush1.bf16.msra.mxu0 0
        %1055 = vmatprep.mubr.bf16.mxu0 0
        %1056 = vmatmul.mubr.bf16.gmra.mrb[0].mxu0 %v949
        %v1057 = vpop.f32.mrb[0].mxu0
        %v1058 = vadd.f32 0.0, %v1057
        %v1059 = vpop.f32.mrb[0].mxu0
        %v1060 = vpop.f32.mrb[0].mxu0
        %v1061 = vpop.f32.mrb[0].mxu0
        %1062 = vdwg.mxu0
        %v1063 = vld [vmem:[#allocation22] sm:$0xf]
        %v1064 = vld [vmem:[#allocation22 + $0x4] sm:$0xf]
        %v1065 = vld [vmem:[#allocation22 + $0x8] sm:$0xf]
        %v1066 = vld [vmem:[#allocation22 + $0xc] sm:$0xf]
        %v1067 = vld [vmem:[#allocation22 + $0x10] sm:$0xf]
        %v1068 = vld [vmem:[#allocation22 + $0x14] sm:$0xf]
        %v1069 = vld [vmem:[#allocation22 + $0x18] sm:$0xf]
        %v1070 = vld [vmem:[#allocation22 + $0x1c] sm:$0xf]
        %v1079 = vunpack.c.l.b16 %v1063
        %v1080 = vunpack.c.l.b16 %v1064
        %v1081 = vunpack.c.l.b16 %v1065
        %v1082 = vunpack.c.l.b16 %v1066
        %v1083 = vunpack.c.l.b16 %v1067
        %v1084 = vunpack.c.l.b16 %v1068
        %v1085 = vunpack.c.l.b16 %v1069
        %v1086 = vunpack.c.l.b16 %v1070
        %v1087 = vpack.c.b16 %v1080, %v1079
        %v1088 = vpack.c.b16 %v1082, %v1081
        %v1089 = vpack.c.b16 %v1084, %v1083
        %v1090 = vpack.c.b16 %v1086, %v1085
        %1095 = vmatprep.subr.bf16.mxu0 0
        %1096 = vmatpush1.bf16.msra.mxu0 %v1087
        %1097 = vmatprep.subr.bf16.mxu0 0
        %1098 = vmatpush1.bf16.msra.mxu0 %v1088
        %1099 = vmatprep.subr.bf16.mxu0 0
        %1100 = vmatpush1.bf16.msra.mxu0 %v1089
        %1101 = vmatprep.subr.bf16.mxu0 0
        %1102 = vmatpush1.bf16.msra.mxu0 %v1090
        %1103 = vmatprep.subr.bf16.mxu0 0
        %1104 = vmatpush1.bf16.msra.mxu0 0
        %1105 = vmatprep.subr.bf16.mxu0 0
        %1106 = vmatpush1.bf16.msra.mxu0 0
        %1107 = vmatprep.subr.bf16.mxu0 0
        %1108 = vmatpush1.bf16.msra.mxu0 0
        %1109 = vmatprep.subr.bf16.mxu0 0
        %1110 = vmatpush1.bf16.msra.mxu0 0
        %1111 = vmatprep.subr.bf16.mxu0 0
        %1112 = vmatpush1.bf16.msra.mxu0 0
        %1113 = vmatprep.subr.bf16.mxu0 0
        %1114 = vmatpush1.bf16.msra.mxu0 0
        %1115 = vmatprep.subr.bf16.mxu0 0
        %1116 = vmatpush1.bf16.msra.mxu0 0
        %1117 = vmatprep.subr.bf16.mxu0 0
        %1118 = vmatpush1.bf16.msra.mxu0 0
        %1119 = vmatprep.subr.bf16.mxu0 0
        %1120 = vmatpush1.bf16.msra.mxu0 0
        %1121 = vmatprep.subr.bf16.mxu0 0
        %1122 = vmatpush1.bf16.msra.mxu0 0
        %1123 = vmatprep.subr.bf16.mxu0 0
        %1124 = vmatpush1.bf16.msra.mxu0 0
        %1125 = vmatprep.subr.bf16.mxu0 0
        %1126 = vmatpush1.bf16.msra.mxu0 0
        %1127 = vmatprep.mubr.bf16.mxu0 0
        %1128 = vmatmul.mubr.bf16.gmra.mrb[0].mxu0 %v949
        %v1129 = vpop.f32.mrb[0].mxu0
        %v1130 = vadd.f32 0.0, %v1129
        %v1131 = vpop.f32.mrb[0].mxu0
        %v1132 = vpop.f32.mrb[0].mxu0
        %v1133 = vpop.f32.mrb[0].mxu0
        %1134 = vdwg.mxu0
        %v1135 = vpack.c.bf16 %v986, %v986
        %v1136 = vld [vmem:[#allocation23] sm:$0xf]
        %v1137 = vld [vmem:[#allocation23 + $0x4] sm:$0xf]
        %v1138 = vld [vmem:[#allocation23 + $0x8] sm:$0xf]
        %v1139 = vld [vmem:[#allocation23 + $0xc] sm:$0xf]
        %v1140 = vld [vmem:[#allocation23 + $0x10] sm:$0xf]
        %v1141 = vld [vmem:[#allocation23 + $0x14] sm:$0xf]
        %v1142 = vld [vmem:[#allocation23 + $0x18] sm:$0xf]
        %v1143 = vld [vmem:[#allocation23 + $0x1c] sm:$0xf]
        %v1144 = vld [vmem:[#allocation23 + $0x20] sm:$0xf]
        %v1145 = vld [vmem:[#allocation23 + $0x24] sm:$0xf]
        %v1146 = vld [vmem:[#allocation23 + $0x28] sm:$0xf]
        %v1147 = vld [vmem:[#allocation23 + $0x2c] sm:$0xf]
        %v1148 = vld [vmem:[#allocation23 + $0x30] sm:$0xf]
        %v1149 = vld [vmem:[#allocation23 + $0x34] sm:$0xf]
        %v1150 = vld [vmem:[#allocation23 + $0x38] sm:$0xf]
        %v1151 = vld [vmem:[#allocation23 + $0x3c] sm:$0xf]
        %v1152 = vld [vmem:[#allocation25] sm:$0x1]
        %v1154 = vlaneseq
        %v1155 = vshrl.u32 %v1154, 7
        %v1156 = vsub.s32 0, %v1155
        %v1157 = vrot.slane %v1152, %v1156
        %v1175 = vunpack.c.l.b16 %v1136
        %v1176 = vunpack.c.l.b16 %v1137
        %v1177 = vunpack.c.l.b16 %v1138
        %v1178 = vunpack.c.l.b16 %v1139
        %v1179 = vunpack.c.l.b16 %v1140
        %v1180 = vunpack.c.l.b16 %v1141
        %v1181 = vunpack.c.l.b16 %v1142
        %v1182 = vunpack.c.l.b16 %v1143
        %v1183 = vunpack.c.l.b16 %v1144
        %v1184 = vunpack.c.l.b16 %v1145
        %v1185 = vunpack.c.l.b16 %v1146
        %v1186 = vunpack.c.l.b16 %v1147
        %v1187 = vunpack.c.l.b16 %v1148
        %v1188 = vunpack.c.l.b16 %v1149
        %v1189 = vunpack.c.l.b16 %v1150
        %v1190 = vunpack.c.l.b16 %v1151
        %v1191 = vpack.c.b16 %v1176, %v1175
        %v1192 = vpack.c.b16 %v1178, %v1177
        %v1193 = vpack.c.b16 %v1180, %v1179
        %v1194 = vpack.c.b16 %v1182, %v1181
        %v1195 = vpack.c.b16 %v1184, %v1183
        %v1196 = vpack.c.b16 %v1186, %v1185
        %v1197 = vpack.c.b16 %v1188, %v1187
        %v1198 = vpack.c.b16 %v1190, %v1189
        %1207 = vmatprep.subr.bf16.mxu0 0
        %1208 = vmatpush1.bf16.msra.mxu0 %v1191
        %1209 = vmatprep.subr.bf16.mxu0 0
        %1210 = vmatpush1.bf16.msra.mxu0 %v1192
        %1211 = vmatprep.subr.bf16.mxu0 0
        %1212 = vmatpush1.bf16.msra.mxu0 %v1193
        %1213 = vmatprep.subr.bf16.mxu0 0
        %1214 = vmatpush1.bf16.msra.mxu0 %v1194
        %1215 = vmatprep.subr.bf16.mxu0 0
        %1216 = vmatpush1.bf16.msra.mxu0 %v1195
        %1217 = vmatprep.subr.bf16.mxu0 0
        %1218 = vmatpush1.bf16.msra.mxu0 %v1196
        %1219 = vmatprep.subr.bf16.mxu0 0
        %1220 = vmatpush1.bf16.msra.mxu0 %v1197
        %1221 = vmatprep.subr.bf16.mxu0 0
        %1222 = vmatpush1.bf16.msra.mxu0 %v1198
        %1223 = vmatprep.subr.bf16.mxu0 0
        %1224 = vmatpush1.bf16.msra.mxu0 0
        %1225 = vmatprep.subr.bf16.mxu0 0
        %1226 = vmatpush1.bf16.msra.mxu0 0
        %1227 = vmatprep.subr.bf16.mxu0 0
        %1228 = vmatpush1.bf16.msra.mxu0 0
        %1229 = vmatprep.subr.bf16.mxu0 0
        %1230 = vmatpush1.bf16.msra.mxu0 0
        %1231 = vmatprep.subr.bf16.mxu0 0
        %1232 = vmatpush1.bf16.msra.mxu0 0
        %1233 = vmatprep.subr.bf16.mxu0 0
        %1234 = vmatpush1.bf16.msra.mxu0 0
        %1235 = vmatprep.subr.bf16.mxu0 0
        %1236 = vmatpush1.bf16.msra.mxu0 0
        %1237 = vmatprep.subr.bf16.mxu0 0
        %1238 = vmatpush1.bf16.msra.mxu0 0
        %1239 = vmatprep.mubr.bf16.mxu0 0
        %1240 = vmatmul.mubr.bf16.gmra.mrb[0].mxu0 %v1135
        %v1241 = vpop.f32.mrb[0].mxu0
        %v1242 = vadd.f32 %v1157, %v1241
        %v1243 = vpop.f32.mrb[0].mxu0
        %v1244 = vpop.f32.mrb[0].mxu0
        %v1245 = vpop.f32.mrb[0].mxu0
        %1246 = vdwg.mxu0
        %v1247 = vmax.f32 %v1242, 0.0
        %v1248 = vand.u32 2147483647, %v1242
        %v1249 = vsub.f32 0.0, %v1248
        %v1250 = vmul.f32 %v1249, 1.442695
        %v1251 = vpow.pop %v1250
        %v1252 = vadd.f32 %v1251, 1.0
        %v1253 = vlog2.pop %v1252
        %v1254 = vmul.f32 %v1253, 0.6931472
        %v1255 = vadd.f32 %v1247, %v1254
        %v1256 = vmul.f32 %v1255, %v914
        %vm1257 = vcmask 130048
        %1258 = vst.msk [vmem:[#allocation4] sm:$0xff] %vm1257, %v1130
        // Predicated region
        $region137: #{tpu_custom_call.1} parent=75 // pred_check
          %p1259 = pneg %p857
        $region138: #{tpu_custom_call.1} parent=75 // pred_check_branch
          %1261 = sbr.rel (%p1259) target = $region140
        $region139: #{tpu_custom_call.1} parent=75 // pred_region
          %1262 = vst.msk [vmem:[#allocation3] sm:$0xff] %vm863, 0.0
          %1263 = vst.msk [vmem:[#allocation3 + $0x8] sm:$0xff] %vm863, 0.0
        $region140: #{tpu_custom_call.1} parent=75 // pred_fallthru
          _
        %v1264 = vld [vmem:[#allocation26] sm:$0xff]
        %v1265 = vld [vmem:[#allocation26 + $0x8] sm:$0xff]
        %v1267 = vcombine.high %v1255, %v1255
        %v1269 = vunpack.c.l.s4 1966171168
        %v1270 = vunpack.c.0.s8 %v1269
        %v1271 = vlaneseq
        %v1272 = vshrl.u32 %v1271, 7
        %v1273 = vsub.s32 %v1270, %v1272
        %v1274 = vrot.slane %v1255, %v1273
        %v1276 = vunpack.c.l.s4 1966171168
        %v1277 = vunpack.c.0.s8 %v1276
        %v1278 = vlaneseq
        %v1279 = vshrl.u32 %v1278, 7
        %v1280 = vsub.s32 %v1277, %v1279
        %v1281 = vrot.slane %v1267, %v1280
        %v1282 = vcombine.high %v1274, %v1274
        %v1283 = vcombine.high %v1281, %v1281
        %v1285 = vunpack.c.l.s4 1966171168
        %v1286 = vunpack.c.0.s8 %v1285
        %v1287 = vlaneseq
        %v1288 = vshrl.u32 %v1287, 7
        %v1289 = vsub.s32 %v1286, %v1288
        %v1290 = vrot.slane %v1274, %v1289
        %v1292 = vunpack.c.l.s4 1966171168
        %v1293 = vunpack.c.0.s8 %v1292
        %v1294 = vlaneseq
        %v1295 = vshrl.u32 %v1294, 7
        %v1296 = vsub.s32 %v1293, %v1295
        %v1297 = vrot.slane %v1281, %v1296
        %v1299 = vunpack.c.l.s4 1966171168
        %v1300 = vunpack.c.0.s8 %v1299
        %v1301 = vlaneseq
        %v1302 = vshrl.u32 %v1301, 7
        %v1303 = vsub.s32 %v1300, %v1302
        %v1304 = vrot.slane %v1282, %v1303
        %v1306 = vunpack.c.l.s4 1966171168
        %v1307 = vunpack.c.0.s8 %v1306
        %v1308 = vlaneseq
        %v1309 = vshrl.u32 %v1308, 7
        %v1310 = vsub.s32 %v1307, %v1309
        %v1311 = vrot.slane %v1283, %v1310
        %v1312 = vcombine.high %v1290, %v1290
        %v1313 = vcombine.high %v1297, %v1297
        %v1314 = vcombine.high %v1304, %v1304
        %v1315 = vcombine.high %v1311, %v1311
        %v1316 = vlaneseq
        %v1317 = vshrl.u32 %v1316, 7
        %v1318 = vsub.s32 0, %v1317
        %v1319 = vrot.slane %v1290, %v1318
        %v1320 = vlaneseq
        %v1321 = vshrl.u32 %v1320, 7
        %v1322 = vsub.s32 0, %v1321
        %v1323 = vrot.slane %v1304, %v1322
        %v1324 = vlaneseq
        %v1325 = vshrl.u32 %v1324, 7
        %v1326 = vsub.s32 0, %v1325
        %v1327 = vrot.slane %v1312, %v1326
        %v1328 = vlaneseq
        %v1329 = vshrl.u32 %v1328, 7
        %v1330 = vsub.s32 0, %v1329
        %v1331 = vrot.slane %v1314, %v1330
        %v1332 = vlaneseq
        %v1333 = vshrl.u32 %v1332, 7
        %v1334 = vsub.s32 0, %v1333
        %v1335 = vrot.slane %v1297, %v1334
        %v1336 = vlaneseq
        %v1337 = vshrl.u32 %v1336, 7
        %v1338 = vsub.s32 0, %v1337
        %v1339 = vrot.slane %v1311, %v1338
        %v1340 = vlaneseq
        %v1341 = vshrl.u32 %v1340, 7
        %v1342 = vsub.s32 0, %v1341
        %v1343 = vrot.slane %v1313, %v1342
        %v1344 = vlaneseq
        %v1345 = vshrl.u32 %v1344, 7
        %v1346 = vsub.s32 0, %v1345
        %v1347 = vrot.slane %v1315, %v1346
        %v1356 = vmul.f32 %v1319, %v1264
        %v1357 = vmul.f32 %v1319, %v1265
        %v1358 = vmul.f32 %v1323, %v1264
        %v1359 = vmul.f32 %v1323, %v1265
        %v1360 = vmul.f32 %v1327, %v1264
        %v1361 = vmul.f32 %v1327, %v1265
        %v1362 = vmul.f32 %v1331, %v1264
        %v1363 = vmul.f32 %v1331, %v1265
        %v1364 = vmul.f32 %v1335, %v1264
        %v1365 = vmul.f32 %v1335, %v1265
        %v1366 = vmul.f32 %v1339, %v1264
        %v1367 = vmul.f32 %v1339, %v1265
        %v1368 = vmul.f32 %v1343, %v1264
        %v1369 = vmul.f32 %v1343, %v1265
        %v1370 = vmul.f32 %v1347, %v1264
        %v1371 = vmul.f32 %v1347, %v1265
        %v1372 = vmul.f32 %v1356, 1.442695
        %v1373 = vpow.pop %v1372
        %v1374 = vmul.f32 %v1357, 1.442695
        %v1375 = vpow.pop %v1374
        %v1376 = vmul.f32 %v1358, 1.442695
        %v1377 = vpow.pop %v1376
        %v1378 = vmul.f32 %v1359, 1.442695
        %v1379 = vpow.pop %v1378
        %v1380 = vmul.f32 %v1360, 1.442695
        %v1381 = vpow.pop %v1380
        %v1382 = vmul.f32 %v1361, 1.442695
        %v1383 = vpow.pop %v1382
        %v1384 = vmul.f32 %v1362, 1.442695
        %v1385 = vpow.pop %v1384
        %v1386 = vmul.f32 %v1363, 1.442695
        %v1387 = vpow.pop %v1386
        %v1388 = vmul.f32 %v1364, 1.442695
        %v1389 = vpow.pop %v1388
        %v1390 = vmul.f32 %v1365, 1.442695
        %v1391 = vpow.pop %v1390
        %v1392 = vmul.f32 %v1366, 1.442695
        %v1393 = vpow.pop %v1392
        %v1394 = vmul.f32 %v1367, 1.442695
        %v1395 = vpow.pop %v1394
        %v1396 = vmul.f32 %v1368, 1.442695
        %v1397 = vpow.pop %v1396
        %v1398 = vmul.f32 %v1369, 1.442695
        %v1399 = vpow.pop %v1398
        %v1400 = vmul.f32 %v1370, 1.442695
        %v1401 = vpow.pop %v1400
        %v1402 = vmul.f32 %v1371, 1.442695
        %v1403 = vpow.pop %v1402
        %1404 = vst.msk [vmem:[#allocation6] sm:$0xff] %vm863, %v1373
        %1405 = vst.msk [vmem:[#allocation6 + $0x8] sm:$0xff] %vm863, %v1375
        %1406 = vst.msk [vmem:[#allocation6 + $0x10] sm:$0xff] %vm863, %v1377
        %1407 = vst.msk [vmem:[#allocation6 + $0x18] sm:$0xff] %vm863, %v1379
        %1408 = vst.msk [vmem:[#allocation6 + $0x20] sm:$0xff] %vm863, %v1381
        %1409 = vst.msk [vmem:[#allocation6 + $0x28] sm:$0xff] %vm863, %v1383
        %1410 = vst.msk [vmem:[#allocation6 + $0x30] sm:$0xff] %vm863, %v1385
        %1411 = vst.msk [vmem:[#allocation6 + $0x38] sm:$0xff] %vm863, %v1387
        %1412 = vst.msk [vmem:[#allocation6 + $0x40] sm:$0xff] %vm863, %v1389
        %1413 = vst.msk [vmem:[#allocation6 + $0x48] sm:$0xff] %vm863, %v1391
        %1414 = vst.msk [vmem:[#allocation6 + $0x50] sm:$0xff] %vm863, %v1393
        %1415 = vst.msk [vmem:[#allocation6 + $0x58] sm:$0xff] %vm863, %v1395
        %1416 = vst.msk [vmem:[#allocation6 + $0x60] sm:$0xff] %vm863, %v1397
        %1417 = vst.msk [vmem:[#allocation6 + $0x68] sm:$0xff] %vm863, %v1399
        %1418 = vst.msk [vmem:[#allocation6 + $0x70] sm:$0xff] %vm863, %v1401
        %1419 = vst.msk [vmem:[#allocation6 + $0x78] sm:$0xff] %vm863, %v1403
        %v1420 = vlaneseq
        %v1421 = vshrl.u32 %v1420, 7
        %v1422 = vsub.s32 0, %v1421
        %v1423 = vrot.slane %v1058, %v1422
        %1425 = vbcast.lane.b32.xlu0 %v1423, 256
        %v1426 = vpop.permute.xlu0 %1425
        %s1428 = sor.u32 256, 8
        %1429 = vbcast.lane.b32.xlu0 %v1423, %s1428
        %v1430 = vpop.permute.xlu0 %1429
        %v1431 = vlaneseq
        %v1432 = vshrl.u32 %v1431, 7
        %v1433 = vsub.s32 1, %v1432
        %v1434 = vrot.slane %v1058, %v1433
        %1436 = vbcast.lane.b32.xlu0 %v1434, 256
        %v1437 = vpop.permute.xlu0 %1436
        %s1439 = sor.u32 256, 8
        %1440 = vbcast.lane.b32.xlu0 %v1434, %s1439
        %v1441 = vpop.permute.xlu0 %1440
        %v1442 = vlaneseq
        %v1443 = vshrl.u32 %v1442, 7
        %v1444 = vsub.s32 2, %v1443
        %v1445 = vrot.slane %v1058, %v1444
        %1447 = vbcast.lane.b32.xlu0 %v1445, 256
        %v1448 = vpop.permute.xlu0 %1447
        %s1450 = sor.u32 256, 8
        %1451 = vbcast.lane.b32.xlu0 %v1445, %s1450
        %v1452 = vpop.permute.xlu0 %1451
        %v1453 = vlaneseq
        %v1454 = vshrl.u32 %v1453, 7
        %v1455 = vsub.s32 3, %v1454
        %v1456 = vrot.slane %v1058, %v1455
        %1458 = vbcast.lane.b32.xlu0 %v1456, 256
        %v1459 = vpop.permute.xlu0 %1458
        %s1461 = sor.u32 256, 8
        %1462 = vbcast.lane.b32.xlu0 %v1456, %s1461
        %v1463 = vpop.permute.xlu0 %1462
        %v1464 = vlaneseq
        %v1465 = vshrl.u32 %v1464, 7
        %v1466 = vsub.s32 4, %v1465
        %v1467 = vrot.slane %v1058, %v1466
        %1469 = vbcast.lane.b32.xlu0 %v1467, 256
        %v1470 = vpop.permute.xlu0 %1469
        %s1472 = sor.u32 256, 8
        %1473 = vbcast.lane.b32.xlu0 %v1467, %s1472
        %v1474 = vpop.permute.xlu0 %1473
        %v1475 = vlaneseq
        %v1476 = vshrl.u32 %v1475, 7
        %v1477 = vsub.s32 5, %v1476
        %v1478 = vrot.slane %v1058, %v1477
        %1480 = vbcast.lane.b32.xlu0 %v1478, 256
        %v1481 = vpop.permute.xlu0 %1480
        %s1483 = sor.u32 256, 8
        %1484 = vbcast.lane.b32.xlu0 %v1478, %s1483
        %v1485 = vpop.permute.xlu0 %1484
        %v1486 = vlaneseq
        %v1487 = vshrl.u32 %v1486, 7
        %v1488 = vsub.s32 6, %v1487
        %v1489 = vrot.slane %v1058, %v1488
        %1491 = vbcast.lane.b32.xlu0 %v1489, 256
        %v1492 = vpop.permute.xlu0 %1491
        %s1494 = sor.u32 256, 8
        %1495 = vbcast.lane.b32.xlu0 %v1489, %s1494
        %v1496 = vpop.permute.xlu0 %1495
        %v1497 = vlaneseq
        %v1498 = vshrl.u32 %v1497, 7
        %v1499 = vsub.s32 7, %v1498
        %v1500 = vrot.slane %v1058, %v1499
        %1502 = vbcast.lane.b32.xlu0 %v1500, 256
        %v1503 = vpop.permute.xlu0 %1502
        %s1505 = sor.u32 256, 8
        %1506 = vbcast.lane.b32.xlu0 %v1500, %s1505
        %v1507 = vpop.permute.xlu0 %1506
        %v1509 = vcombine.high %v1256, %v1256
        %v1511 = vunpack.c.l.s4 1966171168
        %v1512 = vunpack.c.0.s8 %v1511
        %v1513 = vlaneseq
        %v1514 = vshrl.u32 %v1513, 7
        %v1515 = vsub.s32 %v1512, %v1514
        %v1516 = vrot.slane %v1256, %v1515
        %v1518 = vunpack.c.l.s4 1966171168
        %v1519 = vunpack.c.0.s8 %v1518
        %v1520 = vlaneseq
        %v1521 = vshrl.u32 %v1520, 7
        %v1522 = vsub.s32 %v1519, %v1521
        %v1523 = vrot.slane %v1509, %v1522
        %v1524 = vcombine.high %v1516, %v1516
        %v1525 = vcombine.high %v1523, %v1523
        %v1527 = vunpack.c.l.s4 1966171168
        %v1528 = vunpack.c.0.s8 %v1527
        %v1529 = vlaneseq
        %v1530 = vshrl.u32 %v1529, 7
        %v1531 = vsub.s32 %v1528, %v1530
        %v1532 = vrot.slane %v1516, %v1531
        %v1534 = vunpack.c.l.s4 1966171168
        %v1535 = vunpack.c.0.s8 %v1534
        %v1536 = vlaneseq
        %v1537 = vshrl.u32 %v1536, 7
        %v1538 = vsub.s32 %v1535, %v1537
        %v1539 = vrot.slane %v1523, %v1538
        %v1541 = vunpack.c.l.s4 1966171168
        %v1542 = vunpack.c.0.s8 %v1541
        %v1543 = vlaneseq
        %v1544 = vshrl.u32 %v1543, 7
        %v1545 = vsub.s32 %v1542, %v1544
        %v1546 = vrot.slane %v1524, %v1545
        %v1548 = vunpack.c.l.s4 1966171168
        %v1549 = vunpack.c.0.s8 %v1548
        %v1550 = vlaneseq
        %v1551 = vshrl.u32 %v1550, 7
        %v1552 = vsub.s32 %v1549, %v1551
        %v1553 = vrot.slane %v1525, %v1552
        %v1554 = vcombine.high %v1532, %v1532
        %v1555 = vcombine.high %v1539, %v1539
        %v1556 = vcombine.high %v1546, %v1546
        %v1557 = vcombine.high %v1553, %v1553
        %v1558 = vlaneseq
        %v1559 = vshrl.u32 %v1558, 7
        %v1560 = vsub.s32 0, %v1559
        %v1561 = vrot.slane %v1532, %v1560
        %v1562 = vlaneseq
        %v1563 = vshrl.u32 %v1562, 7
        %v1564 = vsub.s32 0, %v1563
        %v1565 = vrot.slane %v1546, %v1564
        %v1566 = vlaneseq
        %v1567 = vshrl.u32 %v1566, 7
        %v1568 = vsub.s32 0, %v1567
        %v1569 = vrot.slane %v1554, %v1568
        %v1570 = vlaneseq
        %v1571 = vshrl.u32 %v1570, 7
        %v1572 = vsub.s32 0, %v1571
        %v1573 = vrot.slane %v1556, %v1572
        %v1574 = vlaneseq
        %v1575 = vshrl.u32 %v1574, 7
        %v1576 = vsub.s32 0, %v1575
        %v1577 = vrot.slane %v1539, %v1576
        %v1578 = vlaneseq
        %v1579 = vshrl.u32 %v1578, 7
        %v1580 = vsub.s32 0, %v1579
        %v1581 = vrot.slane %v1553, %v1580
        %v1582 = vlaneseq
        %v1583 = vshrl.u32 %v1582, 7
        %v1584 = vsub.s32 0, %v1583
        %v1585 = vrot.slane %v1555, %v1584
        %v1586 = vlaneseq
        %v1587 = vshrl.u32 %v1586, 7
        %v1588 = vsub.s32 0, %v1587
        %v1589 = vrot.slane %v1557, %v1588
        %v1598 = vmul.f32 %v1426, %v1561
        %v1599 = vmul.f32 %v1430, %v1561
        %v1600 = vmul.f32 %v1437, %v1565
        %v1601 = vmul.f32 %v1441, %v1565
        %v1602 = vmul.f32 %v1448, %v1569
        %v1603 = vmul.f32 %v1452, %v1569
        %v1604 = vmul.f32 %v1459, %v1573
        %v1605 = vmul.f32 %v1463, %v1573
        %v1606 = vmul.f32 %v1470, %v1577
        %v1607 = vmul.f32 %v1474, %v1577
        %v1608 = vmul.f32 %v1481, %v1581
        %v1609 = vmul.f32 %v1485, %v1581
        %v1610 = vmul.f32 %v1492, %v1585
        %v1611 = vmul.f32 %v1496, %v1585
        %v1612 = vmul.f32 %v1503, %v1589
        %v1613 = vmul.f32 %v1507, %v1589
        %1614 = vst.msk [vmem:[#allocation7] sm:$0xff] %vm863, %v1598
        %1615 = vst.msk [vmem:[#allocation7 + $0x8] sm:$0xff] %vm863, %v1599
        %1616 = vst.msk [vmem:[#allocation7 + $0x10] sm:$0xff] %vm863, %v1600
        %1617 = vst.msk [vmem:[#allocation7 + $0x18] sm:$0xff] %vm863, %v1601
        %1618 = vst.msk [vmem:[#allocation7 + $0x20] sm:$0xff] %vm863, %v1602
        %1619 = vst.msk [vmem:[#allocation7 + $0x28] sm:$0xff] %vm863, %v1603
        %1620 = vst.msk [vmem:[#allocation7 + $0x30] sm:$0xff] %vm863, %v1604
        %1621 = vst.msk [vmem:[#allocation7 + $0x38] sm:$0xff] %vm863, %v1605
        %1622 = vst.msk [vmem:[#allocation7 + $0x40] sm:$0xff] %vm863, %v1606
        %1623 = vst.msk [vmem:[#allocation7 + $0x48] sm:$0xff] %vm863, %v1607
        %1624 = vst.msk [vmem:[#allocation7 + $0x50] sm:$0xff] %vm863, %v1608
        %1625 = vst.msk [vmem:[#allocation7 + $0x58] sm:$0xff] %vm863, %v1609
        %1626 = vst.msk [vmem:[#allocation7 + $0x60] sm:$0xff] %vm863, %v1610
        %1627 = vst.msk [vmem:[#allocation7 + $0x68] sm:$0xff] %vm863, %v1611
        %1628 = vst.msk [vmem:[#allocation7 + $0x70] sm:$0xff] %vm863, %v1612
        %1629 = vst.msk [vmem:[#allocation7 + $0x78] sm:$0xff] %vm863, %v1613
        %v1630 = vld [vmem:[#allocation3] sm:$0xff]
        %v1631 = vld [vmem:[#allocation3 + $0x8] sm:$0xff]
        %v1632 = vld [vmem:[#allocation4] sm:$0xff]
        %v1633 = vlaneseq
        %v1634 = vshrl.u32 %v1633, 7
        %v1635 = vsub.s32 0, %v1634
        %v1636 = vrot.slane %v1632, %v1635
        %1638 = vbcast.lane.b32.xlu0 %v1636, 256
        %v1639 = vpop.permute.xlu0 %1638
        %s1641 = sor.u32 256, 8
        %1642 = vbcast.lane.b32.xlu0 %v1636, %s1641
        %v1643 = vpop.permute.xlu0 %1642
        %v1644 = vlaneseq
        %v1645 = vshrl.u32 %v1644, 7
        %v1646 = vsub.s32 1, %v1645
        %v1647 = vrot.slane %v1632, %v1646
        %1649 = vbcast.lane.b32.xlu0 %v1647, 256
        %v1650 = vpop.permute.xlu0 %1649
        %s1652 = sor.u32 256, 8
        %1653 = vbcast.lane.b32.xlu0 %v1647, %s1652
        %v1654 = vpop.permute.xlu0 %1653
        %v1655 = vlaneseq
        %v1656 = vshrl.u32 %v1655, 7
        %v1657 = vsub.s32 2, %v1656
        %v1658 = vrot.slane %v1632, %v1657
        %1660 = vbcast.lane.b32.xlu0 %v1658, 256
        %v1661 = vpop.permute.xlu0 %1660
        %s1663 = sor.u32 256, 8
        %1664 = vbcast.lane.b32.xlu0 %v1658, %s1663
        %v1665 = vpop.permute.xlu0 %1664
        %v1666 = vlaneseq
        %v1667 = vshrl.u32 %v1666, 7
        %v1668 = vsub.s32 3, %v1667
        %v1669 = vrot.slane %v1632, %v1668
        %1671 = vbcast.lane.b32.xlu0 %v1669, 256
        %v1672 = vpop.permute.xlu0 %1671
        %s1674 = sor.u32 256, 8
        %1675 = vbcast.lane.b32.xlu0 %v1669, %s1674
        %v1676 = vpop.permute.xlu0 %1675
        %v1677 = vlaneseq
        %v1678 = vshrl.u32 %v1677, 7
        %v1679 = vsub.s32 4, %v1678
        %v1680 = vrot.slane %v1632, %v1679
        %1682 = vbcast.lane.b32.xlu0 %v1680, 256
        %v1683 = vpop.permute.xlu0 %1682
        %s1685 = sor.u32 256, 8
        %1686 = vbcast.lane.b32.xlu0 %v1680, %s1685
        %v1687 = vpop.permute.xlu0 %1686
        %v1688 = vlaneseq
        %v1689 = vshrl.u32 %v1688, 7
        %v1690 = vsub.s32 5, %v1689
        %v1691 = vrot.slane %v1632, %v1690
        %1693 = vbcast.lane.b32.xlu0 %v1691, 256
        %v1694 = vpop.permute.xlu0 %1693
        %s1696 = sor.u32 256, 8
        %1697 = vbcast.lane.b32.xlu0 %v1691, %s1696
        %v1698 = vpop.permute.xlu0 %1697
        %v1699 = vlaneseq
        %v1700 = vshrl.u32 %v1699, 7
        %v1701 = vsub.s32 6, %v1700
        %v1702 = vrot.slane %v1632, %v1701
        %1704 = vbcast.lane.b32.xlu0 %v1702, 256
        %v1705 = vpop.permute.xlu0 %1704
        %s1707 = sor.u32 256, 8
        %1708 = vbcast.lane.b32.xlu0 %v1702, %s1707
        %v1709 = vpop.permute.xlu0 %1708
        %v1710 = vlaneseq
        %v1711 = vshrl.u32 %v1710, 7
        %v1712 = vsub.s32 7, %v1711
        %v1713 = vrot.slane %v1632, %v1712
        %1715 = vbcast.lane.b32.xlu0 %v1713, 256
        %v1716 = vpop.permute.xlu0 %1715
        %s1718 = sor.u32 256, 8
        %1719 = vbcast.lane.b32.xlu0 %v1713, %s1718
        %v1720 = vpop.permute.xlu0 %1719
        %s1721 = smul.u32 0, 16
        %s1722 = scalar_lea.vmem [#allocation6], %s1721
        %v1723 = vld [vmem:[%s1722] sm:$0xff]
        %v1724 = vld [vmem:[%s1722 + $0x8] sm:$0xff]
        %v1725 = vmul.f32 %v1723, %v1630
        %v1726 = vmul.f32 %v1724, %v1631
        %s1727 = scalar_lea.vmem [#allocation7], %s1721
        %v1728 = vld [vmem:[%s1727] sm:$0xff]
        %v1729 = vld [vmem:[%s1727 + $0x8] sm:$0xff]
        %v1730 = vadd.f32 %v1725, %v1728
        %v1731 = vadd.f32 %v1726, %v1729
        %v1732 = vmul.f32 %v1639, %v1730
        %v1733 = vmul.f32 %v1643, %v1731
        %v1734 = vsel %vm863, %v1732, 0.0
        %v1735 = vsel %vm863, %v1733, 0.0
        %v1736 = vadd.f32 %v1734, %v1735
        %v1737 = vrot.slane %v1736, 4
        %v1738 = vadd.f32 %v1736, %v1737
        %v1739 = vrot.slane %v1738, 2
        %v1740 = vadd.f32 %v1738, %v1739
        %v1741 = vrot.slane %v1740, 1
        %v1742 = vadd.f32 %v1740, %v1741
        %s1743 = sadd.s32 0, 1
        %s1744 = smul.u32 %s1743, 16
        %s1745 = scalar_lea.vmem [#allocation6], %s1744
        %v1746 = vld [vmem:[%s1745] sm:$0xff]
        %v1747 = vld [vmem:[%s1745 + $0x8] sm:$0xff]
        %v1748 = vmul.f32 %v1746, %v1730
        %v1749 = vmul.f32 %v1747, %v1731
        %s1750 = scalar_lea.vmem [#allocation7], %s1744
        %v1751 = vld [vmem:[%s1750] sm:$0xff]
        %v1752 = vld [vmem:[%s1750 + $0x8] sm:$0xff]
        %v1753 = vadd.f32 %v1748, %v1751
        %v1754 = vadd.f32 %v1749, %v1752
        %v1755 = vmul.f32 %v1650, %v1753
        %v1756 = vmul.f32 %v1654, %v1754
        %v1757 = vsel %vm863, %v1755, 0.0
        %v1758 = vsel %vm863, %v1756, 0.0
        %v1759 = vadd.f32 %v1757, %v1758
        %v1760 = vrot.slane %v1759, 4
        %v1761 = vadd.f32 %v1759, %v1760
        %v1762 = vrot.slane %v1761, 2
        %v1763 = vadd.f32 %v1761, %v1762
        %v1764 = vrot.slane %v1763, 1
        %v1765 = vadd.f32 %v1763, %v1764
        %s1766 = sadd.s32 0, 2
        %s1767 = smul.u32 %s1766, 16
        %s1768 = scalar_lea.vmem [#allocation6], %s1767
        %v1769 = vld [vmem:[%s1768] sm:$0xff]
        %v1770 = vld [vmem:[%s1768 + $0x8] sm:$0xff]
        %v1771 = vmul.f32 %v1769, %v1753
        %v1772 = vmul.f32 %v1770, %v1754
        %s1773 = scalar_lea.vmem [#allocation7], %s1767
        %v1774 = vld [vmem:[%s1773] sm:$0xff]
        %v1775 = vld [vmem:[%s1773 + $0x8] sm:$0xff]
        %v1776 = vadd.f32 %v1771, %v1774
        %v1777 = vadd.f32 %v1772, %v1775
        %v1778 = vmul.f32 %v1661, %v1776
        %v1779 = vmul.f32 %v1665, %v1777
        %v1780 = vsel %vm863, %v1778, 0.0
        %v1781 = vsel %vm863, %v1779, 0.0
        %v1782 = vadd.f32 %v1780, %v1781
        %v1783 = vrot.slane %v1782, 4
        %v1784 = vadd.f32 %v1782, %v1783
        %v1785 = vrot.slane %v1784, 2
        %v1786 = vadd.f32 %v1784, %v1785
        %v1787 = vrot.slane %v1786, 1
        %v1788 = vadd.f32 %v1786, %v1787
        %s1789 = sadd.s32 0, 3
        %s1790 = smul.u32 %s1789, 16
        %s1791 = scalar_lea.vmem [#allocation6], %s1790
        %v1792 = vld [vmem:[%s1791] sm:$0xff]
        %v1793 = vld [vmem:[%s1791 + $0x8] sm:$0xff]
        %v1794 = vmul.f32 %v1792, %v1776
        %v1795 = vmul.f32 %v1793, %v1777
        %s1796 = scalar_lea.vmem [#allocation7], %s1790
        %v1797 = vld [vmem:[%s1796] sm:$0xff]
        %v1798 = vld [vmem:[%s1796 + $0x8] sm:$0xff]
        %v1799 = vadd.f32 %v1794, %v1797
        %v1800 = vadd.f32 %v1795, %v1798
        %v1801 = vmul.f32 %v1672, %v1799
        %v1802 = vmul.f32 %v1676, %v1800
        %v1803 = vsel %vm863, %v1801, 0.0
        %v1804 = vsel %vm863, %v1802, 0.0
        %v1805 = vadd.f32 %v1803, %v1804
        %v1806 = vrot.slane %v1805, 4
        %v1807 = vadd.f32 %v1805, %v1806
        %v1808 = vrot.slane %v1807, 2
        %v1809 = vadd.f32 %v1807, %v1808
        %v1810 = vrot.slane %v1809, 1
        %v1811 = vadd.f32 %v1809, %v1810
        %s1812 = sadd.s32 0, 4
        %s1813 = smul.u32 %s1812, 16
        %s1814 = scalar_lea.vmem [#allocation6], %s1813
        %v1815 = vld [vmem:[%s1814] sm:$0xff]
        %v1816 = vld [vmem:[%s1814 + $0x8] sm:$0xff]
        %v1817 = vmul.f32 %v1815, %v1799
        %v1818 = vmul.f32 %v1816, %v1800
        %s1819 = scalar_lea.vmem [#allocation7], %s1813
        %v1820 = vld [vmem:[%s1819] sm:$0xff]
        %v1821 = vld [vmem:[%s1819 + $0x8] sm:$0xff]
        %v1822 = vadd.f32 %v1817, %v1820
        %v1823 = vadd.f32 %v1818, %v1821
        %v1824 = vmul.f32 %v1683, %v1822
        %v1825 = vmul.f32 %v1687, %v1823
        %v1826 = vsel %vm863, %v1824, 0.0
        %v1827 = vsel %vm863, %v1825, 0.0
        %v1828 = vadd.f32 %v1826, %v1827
        %v1829 = vrot.slane %v1828, 4
        %v1830 = vadd.f32 %v1828, %v1829
        %v1831 = vrot.slane %v1830, 2
        %v1832 = vadd.f32 %v1830, %v1831
        %v1833 = vrot.slane %v1832, 1
        %v1834 = vadd.f32 %v1832, %v1833
        %s1835 = sadd.s32 0, 5
        %s1836 = smul.u32 %s1835, 16
        %s1837 = scalar_lea.vmem [#allocation6], %s1836
        %v1838 = vld [vmem:[%s1837] sm:$0xff]
        %v1839 = vld [vmem:[%s1837 + $0x8] sm:$0xff]
        %v1840 = vmul.f32 %v1838, %v1822
        %v1841 = vmul.f32 %v1839, %v1823
        %s1842 = scalar_lea.vmem [#allocation7], %s1836
        %v1843 = vld [vmem:[%s1842] sm:$0xff]
        %v1844 = vld [vmem:[%s1842 + $0x8] sm:$0xff]
        %v1845 = vadd.f32 %v1840, %v1843
        %v1846 = vadd.f32 %v1841, %v1844
        %v1847 = vmul.f32 %v1694, %v1845
        %v1848 = vmul.f32 %v1698, %v1846
        %v1849 = vsel %vm863, %v1847, 0.0
        %v1850 = vsel %vm863, %v1848, 0.0
        %v1851 = vadd.f32 %v1849, %v1850
        %v1852 = vrot.slane %v1851, 4
        %v1853 = vadd.f32 %v1851, %v1852
        %v1854 = vrot.slane %v1853, 2
        %v1855 = vadd.f32 %v1853, %v1854
        %v1856 = vrot.slane %v1855, 1
        %v1857 = vadd.f32 %v1855, %v1856
        %s1858 = sadd.s32 0, 6
        %s1859 = smul.u32 %s1858, 16
        %s1860 = scalar_lea.vmem [#allocation6], %s1859
        %v1861 = vld [vmem:[%s1860] sm:$0xff]
        %v1862 = vld [vmem:[%s1860 + $0x8] sm:$0xff]
        %v1863 = vmul.f32 %v1861, %v1845
        %v1864 = vmul.f32 %v1862, %v1846
        %s1865 = scalar_lea.vmem [#allocation7], %s1859
        %v1866 = vld [vmem:[%s1865] sm:$0xff]
        %v1867 = vld [vmem:[%s1865 + $0x8] sm:$0xff]
        %v1868 = vadd.f32 %v1863, %v1866
        %v1869 = vadd.f32 %v1864, %v1867
        %v1870 = vmul.f32 %v1705, %v1868
        %v1871 = vmul.f32 %v1709, %v1869
        %v1872 = vsel %vm863, %v1870, 0.0
        %v1873 = vsel %vm863, %v1871, 0.0
        %v1874 = vadd.f32 %v1872, %v1873
        %v1875 = vrot.slane %v1874, 4
        %v1876 = vadd.f32 %v1874, %v1875
        %v1877 = vrot.slane %v1876, 2
        %v1878 = vadd.f32 %v1876, %v1877
        %v1879 = vrot.slane %v1878, 1
        %v1880 = vadd.f32 %v1878, %v1879
        %s1881 = sadd.s32 0, 7
        %s1882 = smul.u32 %s1881, 16
        %s1883 = scalar_lea.vmem [#allocation6], %s1882
        %v1884 = vld [vmem:[%s1883] sm:$0xff]
        %v1885 = vld [vmem:[%s1883 + $0x8] sm:$0xff]
        %v1886 = vmul.f32 %v1884, %v1868
        %v1887 = vmul.f32 %v1885, %v1869
        %s1888 = scalar_lea.vmem [#allocation7], %s1882
        %v1889 = vld [vmem:[%s1888] sm:$0xff]
        %v1890 = vld [vmem:[%s1888 + $0x8] sm:$0xff]
        %v1891 = vadd.f32 %v1886, %v1889
        %v1892 = vadd.f32 %v1887, %v1890
        %v1893 = vmul.f32 %v1716, %v1891
        %v1894 = vmul.f32 %v1720, %v1892
        %v1895 = vsel %vm863, %v1893, 0.0
        %v1896 = vsel %vm863, %v1894, 0.0
        %v1897 = vadd.f32 %v1895, %v1896
        %v1898 = vrot.slane %v1897, 4
        %v1899 = vadd.f32 %v1897, %v1898
        %v1900 = vrot.slane %v1899, 2
        %v1901 = vadd.f32 %v1899, %v1900
        %v1902 = vrot.slane %v1901, 1
        %v1903 = vadd.f32 %v1901, %v1902
        %vm1904 = vcmask 1040384
        %v1905 = vsel %vm1904, %v1742, %v1765
        %vm1906 = vcmask 1041408
        %v1907 = vsel %vm1906, %v1905, %v1788
        %vm1908 = vcmask 1042432
        %v1909 = vsel %vm1908, %v1907, %v1811
        %vm1910 = vcmask 1043456
        %v1911 = vsel %vm1910, %v1909, %v1834
        %vm1912 = vcmask 1044480
        %v1913 = vsel %vm1912, %v1911, %v1857
        %vm1914 = vcmask 1045504
        %v1915 = vsel %vm1914, %v1913, %v1880
        %vm1916 = vcmask 1046528
        %v1917 = vsel %vm1916, %v1915, %v1903
        %1918 = vst.msk [vmem:[#allocation5] sm:$0xff] %vm863, %v1917
        %1919 = vst.msk [vmem:[#allocation3] sm:$0xff] %vm863, %v1891
        %1920 = vst.msk [vmem:[#allocation3 + $0x8] sm:$0xff] %vm863, %v1892
        %v1921 = vld [vmem:[#allocation5] sm:$0xff]
        %v1922 = vld [vmem:[#allocation28] sm:$0x1]
        %v1924 = vlaneseq
        %v1925 = vshrl.u32 %v1924, 7
        %v1926 = vsub.s32 0, %v1925
        %v1927 = vrot.slane %v1922, %v1926
        %v1929 = vmul.f32 %v1927, %v914
        %v1930 = vadd.f32 %v1921, %v1929
        %v1931 = vxor.u32 %v852, 2147483648
        %v1932 = vmul.f32 %v1931, 1.442695
        %v1933 = vpow.pop %v1932
        %v1934 = vadd.f32 %v1933, 1.0
        %v1935 = vrcp.pop %v1934
        %v1936 = vmul.f32 1.0, %v1935
        %v1937 = vmul.f32 %v852, %v1936
        %v1938 = vmul.f32 %v1930, %v1937
        %v1939 = vpack.c.bf16 %v1938, %v1938
        %v1940 = vld [vmem:[#allocation29] sm:$0xf]
        %v1941 = vld [vmem:[#allocation29 + $0x4] sm:$0xf]
        %v1942 = vld [vmem:[#allocation29 + $0x8] sm:$0xf]
        %v1943 = vld [vmem:[#allocation29 + $0xc] sm:$0xf]
        %v1944 = vld [vmem:[#allocation29 + $0x10] sm:$0xf]
        %v1945 = vld [vmem:[#allocation29 + $0x14] sm:$0xf]
        %v1946 = vld [vmem:[#allocation29 + $0x18] sm:$0xf]
        %v1947 = vld [vmem:[#allocation29 + $0x1c] sm:$0xf]
        %v1956 = vunpack.c.l.b16 %v1940
        %v1957 = vunpack.c.l.b16 %v1941
        %v1958 = vunpack.c.l.b16 %v1942
        %v1959 = vunpack.c.l.b16 %v1943
        %v1960 = vunpack.c.l.b16 %v1944
        %v1961 = vunpack.c.l.b16 %v1945
        %v1962 = vunpack.c.l.b16 %v1946
        %v1963 = vunpack.c.l.b16 %v1947
        %v1964 = vpack.c.b16 %v1957, %v1956
        %v1965 = vpack.c.b16 %v1959, %v1958
        %v1966 = vpack.c.b16 %v1961, %v1960
        %v1967 = vpack.c.b16 %v1963, %v1962
        %v1973 = vsel %vm863, %v1939, 0
        %1975 = vmatprep.subr.bf16.mxu0 0
        %1976 = vmatpush1.bf16.msra.mxu0 %v1964
        %1977 = vmatprep.subr.bf16.mxu0 0
        %1978 = vmatpush1.bf16.msra.mxu0 %v1965
        %1979 = vmatprep.subr.bf16.mxu0 0
        %1980 = vmatpush1.bf16.msra.mxu0 %v1966
        %1981 = vmatprep.subr.bf16.mxu0 0
        %1982 = vmatpush1.bf16.msra.mxu0 %v1967
        %1983 = vmatprep.subr.bf16.mxu0 0
        %1984 = vmatpush1.bf16.msra.mxu0 0
        %1985 = vmatprep.subr.bf16.mxu0 0
        %1986 = vmatpush1.bf16.msra.mxu0 0
        %1987 = vmatprep.subr.bf16.mxu0 0
        %1988 = vmatpush1.bf16.msra.mxu0 0
        %1989 = vmatprep.subr.bf16.mxu0 0
        %1990 = vmatpush1.bf16.msra.mxu0 0
        %1991 = vmatprep.subr.bf16.mxu0 0
        %1992 = vmatpush1.bf16.msra.mxu0 0
        %1993 = vmatprep.subr.bf16.mxu0 0
        %1994 = vmatpush1.bf16.msra.mxu0 0
        %1995 = vmatprep.subr.bf16.mxu0 0
        %1996 = vmatpush1.bf16.msra.mxu0 0
        %1997 = vmatprep.subr.bf16.mxu0 0
        %1998 = vmatpush1.bf16.msra.mxu0 0
        %1999 = vmatprep.subr.bf16.mxu0 0
        %2000 = vmatpush1.bf16.msra.mxu0 0
        %2001 = vmatprep.subr.bf16.mxu0 0
        %2002 = vmatpush1.bf16.msra.mxu0 0
        %2003 = vmatprep.subr.bf16.mxu0 0
        %2004 = vmatpush1.bf16.msra.mxu0 0
        %2005 = vmatprep.subr.bf16.mxu0 0
        %2006 = vmatpush1.bf16.msra.mxu0 0
        %2007 = vmatprep.mubr.bf16.mxu0 0
        %2008 = vmatmul.mubr.bf16.gmra.mrb[0].mxu0 %v1973
        %v2009 = vpop.f32.mrb[0].mxu0
        %v2010 = vadd.f32 0.0, %v2009
        %v2011 = vpop.f32.mrb[0].mxu0
        %v2012 = vpop.f32.mrb[0].mxu0
        %v2013 = vpop.f32.mrb[0].mxu0
        %2014 = vdwg.mxu0
        %2015 = vst.msk [vmem:[%s712] sm:$0xff] %vm722, %v2010
        %s2016 = sand.u32 %s366, 1
        %s2017 = scalar_lea.sflag [#allocation10], %s2016
        %s2018 = sand.u32 %s366, 1
        %s2019 = smul.addr %s2018, 8
        %s2020 = scalar_lea.vmem [#allocation31], %s2019
        %s2021 = sand.u32 %s394, 1
        %s2022 = scalar_lea.sflag [#allocation33], %s2021
        %s2023 = sand.u32 %s394, 1
        %s2024 = smul.addr %s2023, 8
        %s2025 = scalar_lea.vmem [#allocation32], %s2024
        // Predicated region
        $region141: #{tpu_custom_call.1} parent=75 // pred_check
          %p2026 = pneg %p376
        $region142: #{tpu_custom_call.1} parent=75 // pred_check_branch
          %2028 = sbr.rel (%p2026) target = $region144
        $region143: #{tpu_custom_call.1} parent=75 // pred_region
          %s2030 = ssub.s32 128, 128
          %2031 = vsyncadd %s2017, %s2030
          %s2032 = smul.addr %s47, 2
          %s2033 = sadd.s32 %s48, %s2032
          %s2034 = smul.addr %s2033, 128
          %s2035 = scalar_lea.hbm %s14, %s2034
          %s2037 = sshll.u32 %s2020, 4
          %s2038 = int_to_ptr.vmem [resolvable:$true] %s2037
          %2040 = dma.vmem_to_hbm [thread:$0]  %s2038, 128, %s2035, %s2017
        $region144: #{tpu_custom_call.1} parent=75 // pred_fallthru
          _
        // Predicated region
        $region145: #{tpu_custom_call.1} parent=75 // pred_check
          %p2041 = pneg %p404
        $region146: #{tpu_custom_call.1} parent=75 // pred_check_branch
          %2043 = sbr.rel (%p2041) target = $region148
        $region147: #{tpu_custom_call.1} parent=75 // pred_region
          %s2045 = ssub.s32 128, 128
          %2046 = vsyncadd %s2022, %s2045
          %s2047 = smul.addr %s47, 2
          %s2048 = sadd.s32 %s48, %s2047
          %s2049 = smul.addr %s2048, 128
          %s2050 = scalar_lea.hbm %s15, %s2049
          %s2052 = sshll.u32 %s2025, 4
          %s2053 = int_to_ptr.vmem [resolvable:$true] %s2052
          %2055 = dma.vmem_to_hbm [thread:$0]  %s2053, 128, %s2050, %s2022
        $region148: #{tpu_custom_call.1} parent=75 // pred_fallthru
          _
      $region76: #{tpu_custom_call.1} parent=5 // pred_fallthru
        _
      %p2056 = scmp.le.s32.totalorder 2, %s38
      // Predicated region
      $region149: #{tpu_custom_call.1} parent=5 // pred_check
        %p2057 = pneg %p2056
      $region150: #{tpu_custom_call.1} parent=5 // pred_check_branch
        %2059 = sbr.rel (%p2057) target = $region152
      $region151: #{tpu_custom_call.1} parent=5 // pred_region
        %s2060 = ssub.s32 %s38, 2
        // Predicated region
        $region153: #{tpu_custom_call.1} parent=151 // pred_check
          %p2061 = pneg %p382
        $region154: #{tpu_custom_call.1} parent=151 // pred_check_branch
          %2063 = sbr.rel (%p2061) target = $region156
        $region155: #{tpu_custom_call.1} parent=151 // pred_region
          %s2064 = sand.u32 %s367, 1
          %s2065 = scalar_lea.sflag [#allocation10], %s2064
          %s2066 = sand.u32 %s367, 1
          %s2067 = smul.addr %s2066, 8
          %s2068 = scalar_lea.vmem [#allocation31], %s2067
          %2069 = dma.done %s2065, 128
        $region156: #{tpu_custom_call.1} parent=151 // pred_fallthru
          _
        // Predicated region
        $region157: #{tpu_custom_call.1} parent=151 // pred_check
          %p2070 = pneg %p410
        $region158: #{tpu_custom_call.1} parent=151 // pred_check_branch
          %2072 = sbr.rel (%p2070) target = $region160
        $region159: #{tpu_custom_call.1} parent=151 // pred_region
          %s2073 = sand.u32 %s395, 1
          %s2074 = scalar_lea.sflag [#allocation33], %s2073
          %s2075 = sand.u32 %s395, 1
          %s2076 = smul.addr %s2075, 8
          %s2077 = scalar_lea.vmem [#allocation32], %s2076
          %2078 = dma.done %s2074, 128
        $region160: #{tpu_custom_call.1} parent=151 // pred_fallthru
          _
      $region152: #{tpu_custom_call.1} parent=5 // pred_fallthru
        _
    $region6: #{tpu_custom_call.1} parent=1 // loop_footer
      %s42 = sadd.s32 1, %s38
    $region7: #{tpu_custom_call.1} parent=1 // loop_footer_branch
      %37 = sbr.rel target = $region3
    $region8: #{tpu_custom_call.1} parent=1 // loop_exit
      _
    %2079 = vsyncpa [#allocation9], 1
    %s2080 = scalar_lea.sflag [#allocation9], 1
    %2081 = vsyncpa %s2080, 1
    %2082 = vsyncpa [#allocation12], 1
    %2083 = vsyncpa [#allocation15], 1
    %2084 = vsyncpa [#allocation18], 1
    %2085 = vsyncpa [#allocation21], 1
    %2086 = vsyncpa [#allocation24], 1
    %2087 = vsyncpa [#allocation27], 1
    %2088 = vsyncpa [#allocation30], 1
    %2089 = vsyncpa [#allocation10], 1
    %s2090 = scalar_lea.sflag [#allocation10], 1
    %2091 = vsyncpa %s2090, 1
    %2092 = vsyncpa [#allocation33], 1
    %s2093 = scalar_lea.sflag [#allocation33], 1
    %2094 = vsyncpa %s2093, 1

</llo_original>
